<compile_context>
chip_gen: v6e
topology: v6e:2x2x1
jax: 0.10.0
libtpu: 0.0.40
codegen_flags: <defaults>
</compile_context>

<pallas_src>
import functools

import jax
import jax.numpy as jnp
import numpy as np
from jax.experimental import pallas as pl
from jax.experimental.pallas import tpu as pltpu


def _equivariant_update_kernel(v_ref, s_ref, w_exp_ref, w1s_ref, w1n_ref, b1_ref,
                               w2_ref, b2_ref, v_out_ref, s_out_ref,
                               *, h_dim, epsilon, matmul_dtype):
    f32 = jnp.float32
    H = h_dim

    v01 = v_ref[...].astype(f32)            # [TN, 2H]  (comp0 | comp1 along lanes)
    s_val = s_ref[...].astype(f32)          # [TN, H]
    v0 = v01[:, :H]
    v1 = v01[:, H:]

    # vector_expansion (Linear, no bias), fused output heads: [TN,H] @ [H,2H].
    w_exp = w_exp_ref[...]
    exp0 = jnp.dot(v0.astype(matmul_dtype), w_exp, preferred_element_type=f32)  # [TN,2H]
    exp1 = jnp.dot(v1.astype(matmul_dtype), w_exp, preferred_element_type=f32)  # [TN,2H]
    v_u0, v_v0 = exp0[:, :H], exp0[:, H:]
    v_u1, v_v1 = exp1[:, :H], exp1[:, H:]

    # torch.norm over the size-2 component axis, + epsilon (kept in f32).
    v_v_norm = jnp.sqrt(v_v0 * v_v0 + v_v1 * v_v1) + epsilon                    # [TN,H]

    # scalar_net layer 1: cat([s, |v_v|], -1) @ W1 + b1 as two lane-aligned matmuls.
    h1 = jnp.tanh(
        jnp.dot(s_val.astype(matmul_dtype), w1s_ref[...], preferred_element_type=f32)
        + jnp.dot(v_v_norm.astype(matmul_dtype), w1n_ref[...], preferred_element_type=f32)
        + b1_ref[...])

    # scalar_net layer 2, fused output heads: [TN,H] @ [H,3H].
    out3 = jnp.dot(h1.astype(matmul_dtype), w2_ref[...],
                   preferred_element_type=f32) + b2_ref[...]                    # [TN,3H]
    a_vv = out3[:, :H]
    a_sv = out3[:, H:2 * H]
    a_ss = out3[:, 2 * H:]

    # Residual updates.  dv = v_u * a_vv (broadcast over components),
    # ds = a_ss + <v_u, v_v> * a_sv.
    v_out_ref[:, :H] = (v0 + v_u0 * a_vv).astype(v_out_ref.dtype)
    v_out_ref[:, H:] = (v1 + v_u1 * a_vv).astype(v_out_ref.dtype)
    s_out_ref[...] = (s_val + a_ss
                      + (v_u0 * v_v0 + v_u1 * v_v1) * a_sv).astype(s_out_ref.dtype)


def prepare_params(w_exp, w1, b1, w2, b2, *, matmul_dtype=jnp.bfloat16):
    """Split / cast the layer parameters once (call OUTSIDE jit, at model init).

    Weights are stored [in, out] (transposed vs. torch.nn.Linear.weight):
      w_exp [H, 2H], w1 [2H, H], b1 [H], w2 [H, 3H], b2 [3H].
    """
    H = w_exp.shape[0]
    assert w_exp.shape == (H, 2 * H)
    assert w1.shape == (2 * H, H) and b1.shape == (H,)
    assert w2.shape == (H, 3 * H) and b2.shape == (3 * H,)
    md = jnp.dtype(matmul_dtype)
    return dict(
        w_exp=w_exp.astype(md),                       # fused u|v heads
        w1_s=w1[:H, :].astype(md),
        w1_n=w1[H:, :].astype(md),
        b1=b1.reshape(1, H).astype(jnp.float32),
        w2=w2.astype(md),                             # fused vv|sv|ss heads
        b2=b2.reshape(1, 3 * H).astype(jnp.float32),
    )


def _vmem_plan(n, h, requested_tile, act_itemsize, md_itemsize,
               vmem_budget_bytes=32 * 1024 * 1024):
    """Pick the node tile and an explicit vmem_limit_bytes from a real VMEM estimate."""
    f32b = 4
    # Grid-invariant blocks (weights + biases), double-buffered by the pipeline.
    static_bytes = 7 * h * h * md_itemsize * 2 + 4 * h * f32b * 2
    # Per-node bytes: v(2H)+s(H) in & out tiles (double-buffered) + f32 intermediates
    # (v01, exp0/1, |v_v|, h1, out3, residual temporaries) ~ 14*H floats per node.
    per_node = 3 * h * act_itemsize * 2 * 2 + 14 * h * f32b

    if requested_tile is not None:
        assert n % requested_tile == 0, "tile_n must divide N"
        tile = requested_tile
    else:
        budget = max(vmem_budget_bytes - static_bytes, per_node * 8)
        max_tile = max(budget // per_node, 8)
        top = min(n, 1024)
        candidates = [c for c in range(top - top % 8, 7, -8) if n % c == 0]
        if not candidates:
            tile = n                                   # tiny / odd N: single block
        else:
            fitting = [c for c in candidates if c <= max_tile] or candidates[-1:]
            tile = fitting[0]
            # v7x megacore: prefer an even step count if it keeps the tile >= 256
            # (single-TC v5e/v6e only pay ~0.35us extra per grid step).
            if (n // tile) % 2 != 0:
                for c in fitting:
                    if (n // c) % 2 == 0 and c >= min(256, tile):
                        tile = c
                        break

    est_bytes = static_bytes + tile * per_node
    vmem_limit = min(max(est_bytes + (4 << 20), 16 << 20), 48 << 20)
    return tile, vmem_limit


def equivariant_update(v, s, params, *, epsilon=1e-8, tile_n=None):
    """Pallas forward of EquivariantUpdateLayer.

    v: [N, 2, H], s: [N, H].  `params` comes from prepare_params().
    Returns (v + dv, s + ds) with the same layout/dtype as the inputs.
    """
    N, two, H = v.shape
    assert two == 2 and s.shape == (N, H)
    md = jnp.dtype(params["w_exp"].dtype)

    tn, vmem_limit = _vmem_plan(N, H, tile_n,
                                act_itemsize=jnp.dtype(v.dtype).itemsize,
                                md_itemsize=md.itemsize)
    grid = (N // tn,)

    # Free, contiguous view: [N, 2, H] -> [N, 2H] (no HBM copy under jit).
    v_flat = v.reshape(N, 2 * H)

    kernel = functools.partial(_equivariant_update_kernel,
                               h_dim=H, epsilon=epsilon, matmul_dtype=md)

    v_spec = pl.BlockSpec((tn, 2 * H), lambda i: (i, 0))
    s_spec = pl.BlockSpec((tn, H), lambda i: (i, 0))
    wexp_spec = pl.BlockSpec((H, 2 * H), lambda i: (0, 0))
    w1_spec = pl.BlockSpec((H, H), lambda i: (0, 0))
    b1_spec = pl.BlockSpec((1, H), lambda i: (0, 0))
    w2_spec = pl.BlockSpec((H, 3 * H), lambda i: (0, 0))
    b2_spec = pl.BlockSpec((1, 3 * H), lambda i: (0, 0))

    v_out_flat, s_out = pl.pallas_call(
        kernel,
        out_shape=(
            jax.ShapeDtypeStruct((N, 2 * H), v.dtype),
            jax.ShapeDtypeStruct((N, H), s.dtype),
        ),
        grid_spec=pltpu.PrefetchScalarGridSpec(
            num_scalar_prefetch=0,
            grid=grid,
            in_specs=[v_spec, s_spec,
                      wexp_spec, w1_spec, w1_spec, b1_spec,
                      w2_spec, b2_spec],
            out_specs=[v_spec, s_spec],
        ),
        compiler_params=pltpu.CompilerParams(
            dimension_semantics=("parallel",),
            vmem_limit_bytes=int(vmem_limit)),
    )(v_flat, s, params["w_exp"], params["w1_s"], params["w1_n"], params["b1"],
      params["w2"], params["b2"])

    return v_out_flat.reshape(N, 2, H), s_out


def _reference(v, s, w_exp, w1, b1, w2, b2, epsilon=1e-8):
    """Pure-JAX (f32, highest precision) mirror of the PyTorch forward."""
    H = s.shape[-1]
    prec = jax.lax.Precision.HIGHEST
    v_expanded = jnp.einsum("nch,hk->nck", v, w_exp, precision=prec)
    v_u, v_v = v_expanded[..., :H], v_expanded[..., H:]
    v_v_norm = jnp.linalg.norm(v_v, axis=-2) + epsilon
    s_stack = jnp.concatenate([s, v_v_norm], axis=-1)
    h1 = jnp.tanh(jnp.dot(s_stack, w1, precision=prec) + b1)
    out3 = jnp.dot(h1, w2, precision=prec) + b2
    a_vv, a_sv, a_ss = out3[:, :H], out3[:, H:2 * H], out3[:, 2 * H:]
    dv = v_u * a_vv[:, None, :]
    ds = a_ss + jnp.sum(v_u * v_v, axis=-2) * a_sv
    return v + dv, s + ds


if __name__ == "__main__":
    N, H = 512, 32
    key = jax.random.PRNGKey(0)
    kv, ks, k0, k1, k2, k3, k4 = jax.random.split(key, 7)

    v = jax.random.normal(kv, (N, 2, H), dtype=jnp.float32)
    s = jax.random.normal(ks, (N, H), dtype=jnp.float32)

    # Deterministic synthetic parameters (stored [in, out]).
    w_exp = 0.1 * jax.random.normal(k0, (H, 2 * H), dtype=jnp.float32)
    w1 = 0.1 * jax.random.normal(k1, (2 * H, H), dtype=jnp.float32)
    b1 = 0.1 * jax.random.normal(k2, (H,), dtype=jnp.float32)
    w2 = 0.1 * jax.random.normal(k3, (H, 3 * H), dtype=jnp.float32)
    b2 = 0.1 * jax.random.normal(k4, (3 * H,), dtype=jnp.float32)

    v_ref, s_ref = _reference(v, s, w_exp, w1, b1, w2, b2)
    jax.block_until_ready((v_ref, s_ref))

    run = jax.jit(equivariant_update)

    # Exact-precision path (f32 matmuls).
    params_f32 = prepare_params(w_exp, w1, b1, w2, b2, matmul_dtype=jnp.float32)
    v_f32, s_f32 = run(v, s, params_f32)
    jax.block_until_ready((v_f32, s_f32))
    np.testing.assert_allclose(np.asarray(v_f32), np.asarray(v_ref), rtol=1e-3, atol=1e-3)
    np.testing.assert_allclose(np.asarray(s_f32), np.asarray(s_ref), rtol=1e-3, atol=1e-3)

    # Default fast path (bf16 matmul operands, f32 accumulation) -- looser tolerance.
    params_bf16 = prepare_params(w_exp, w1, b1, w2, b2, matmul_dtype=jnp.bfloat16)
    v_bf, s_bf = run(v, s, params_bf16)
    jax.block_until_ready((v_bf, s_bf))
    np.testing.assert_allclose(np.asarray(v_bf), np.asarray(v_ref), rtol=5e-2, atol=5e-2)
    np.testing.assert_allclose(np.asarray(s_bf), np.asarray(s_ref), rtol=5e-2, atol=5e-2)

    print("KERNEL_OK")
</pallas_src>

<mosaic_0001>
module attributes {stable_mosaic.version = 11 : i64} {
  func.func @_equivariant_update_kernel(%arg0: i32, %arg1: memref<256x64xf32, #tpu.memory_space<vmem>>, %arg2: memref<256x32xf32, #tpu.memory_space<vmem>>, %arg3: memref<32x64xf32, #tpu.memory_space<vmem>>, %arg4: memref<32x32xf32, #tpu.memory_space<vmem>>, %arg5: memref<32x32xf32, #tpu.memory_space<vmem>>, %arg6: memref<1x32xf32, #tpu.memory_space<vmem>>, %arg7: memref<32x96xf32, #tpu.memory_space<vmem>>, %arg8: memref<1x96xf32, #tpu.memory_space<vmem>>, %arg9: memref<256x64xf32, #tpu.memory_space<vmem>>, %arg10: memref<256x32xf32, #tpu.memory_space<vmem>>) attributes {dimension_semantics = [#tpu.dimension_semantics<parallel>], iteration_bounds = array<i64: 2>, scalar_prefetch = 0 : i64, scratch_operands = 0 : i64, tpu.core_type = #tpu.core_type<tc>, window_params = [{transform_indices = @transform_0, window_bounds = array<i64: 256, 64>}, {transform_indices = @transform_1, window_bounds = array<i64: 256, 32>}, {pipeline_mode = #tpu.pipeline_mode<synchronous>, transform_indices = @transform_2, window_bounds = array<i64: 32, 64>}, {pipeline_mode = #tpu.pipeline_mode<synchronous>, transform_indices = @transform_3, window_bounds = array<i64: 32, 32>}, {pipeline_mode = #tpu.pipeline_mode<synchronous>, transform_indices = @transform_4, window_bounds = array<i64: 32, 32>}, {pipeline_mode = #tpu.pipeline_mode<synchronous>, transform_indices = @transform_5, window_bounds = array<i64: 1, 32>}, {pipeline_mode = #tpu.pipeline_mode<synchronous>, transform_indices = @transform_6, window_bounds = array<i64: 32, 96>}, {pipeline_mode = #tpu.pipeline_mode<synchronous>, transform_indices = @transform_7, window_bounds = array<i64: 1, 96>}, {transform_indices = @transform_8, window_bounds = array<i64: 256, 64>}, {transform_indices = @transform_9, window_bounds = array<i64: 256, 32>}]} {
    %c0 = arith.constant 0 : index
    %c0_0 = arith.constant 0 : index
    %0 = vector.load %arg1[%c0, %c0_0] : memref<256x64xf32, #tpu.memory_space<vmem>>, vector<256x64xf32>
    %c0_1 = arith.constant 0 : index
    %c0_2 = arith.constant 0 : index
    %1 = vector.load %arg2[%c0_1, %c0_2] : memref<256x32xf32, #tpu.memory_space<vmem>>, vector<256x32xf32>
    %2 = vector.extract_strided_slice %0 {offsets = [0, 0], sizes = [256, 32], strides = [1, 1]} : vector<256x64xf32> to vector<256x32xf32>
    %3 = vector.extract_strided_slice %0 {offsets = [0, 32], sizes = [256, 32], strides = [1, 1]} : vector<256x64xf32> to vector<256x32xf32>
    %c0_3 = arith.constant 0 : index
    %c0_4 = arith.constant 0 : index
    %4 = vector.load %arg3[%c0_3, %c0_4] : memref<32x64xf32, #tpu.memory_space<vmem>>, vector<32x64xf32>
    %cst = arith.constant dense<0.000000e+00> : vector<256x64xf32>
    %5 = tpu.matmul %2, %4, %cst {dimension_numbers = #tpu.dot_dimension_numbers<[1], [0], [0], [1], [0, 0, 1, 1], [], []>} : vector<256x32xf32>, vector<32x64xf32>, vector<256x64xf32> -> vector<256x64xf32>
    %cst_5 = arith.constant dense<0.000000e+00> : vector<256x64xf32>
    %6 = tpu.matmul %3, %4, %cst_5 {dimension_numbers = #tpu.dot_dimension_numbers<[1], [0], [0], [1], [0, 0, 1, 1], [], []>} : vector<256x32xf32>, vector<32x64xf32>, vector<256x64xf32> -> vector<256x64xf32>
    %7 = vector.extract_strided_slice %5 {offsets = [0, 0], sizes = [256, 32], strides = [1, 1]} : vector<256x64xf32> to vector<256x32xf32>
    %8 = vector.extract_strided_slice %5 {offsets = [0, 32], sizes = [256, 32], strides = [1, 1]} : vector<256x64xf32> to vector<256x32xf32>
    %9 = vector.extract_strided_slice %6 {offsets = [0, 0], sizes = [256, 32], strides = [1, 1]} : vector<256x64xf32> to vector<256x32xf32>
    %10 = vector.extract_strided_slice %6 {offsets = [0, 32], sizes = [256, 32], strides = [1, 1]} : vector<256x64xf32> to vector<256x32xf32>
    %11 = arith.mulf %8, %8 : vector<256x32xf32>
    %12 = arith.mulf %10, %10 : vector<256x32xf32>
    %13 = arith.addf %11, %12 : vector<256x32xf32>
    %14 = math.sqrt %13 : vector<256x32xf32>
    %cst_6 = arith.constant 9.99999993E-9 : f32
    %15 = vector.broadcast %cst_6 : f32 to vector<256x32xf32>
    %16 = arith.addf %14, %15 : vector<256x32xf32>
    %c0_7 = arith.constant 0 : index
    %c0_8 = arith.constant 0 : index
    %17 = vector.load %arg4[%c0_7, %c0_8] : memref<32x32xf32, #tpu.memory_space<vmem>>, vector<32x32xf32>
    %cst_9 = arith.constant dense<0.000000e+00> : vector<256x32xf32>
    %18 = tpu.matmul %1, %17, %cst_9 {dimension_numbers = #tpu.dot_dimension_numbers<[1], [0], [0], [1], [0, 0, 1, 1], [], []>} : vector<256x32xf32>, vector<32x32xf32>, vector<256x32xf32> -> vector<256x32xf32>
    %c0_10 = arith.constant 0 : index
    %c0_11 = arith.constant 0 : index
    %19 = vector.load %arg5[%c0_10, %c0_11] : memref<32x32xf32, #tpu.memory_space<vmem>>, vector<32x32xf32>
    %cst_12 = arith.constant dense<0.000000e+00> : vector<256x32xf32>
    %20 = tpu.matmul %16, %19, %cst_12 {dimension_numbers = #tpu.dot_dimension_numbers<[1], [0], [0], [1], [0, 0, 1, 1], [], []>} : vector<256x32xf32>, vector<32x32xf32>, vector<256x32xf32> -> vector<256x32xf32>
    %21 = arith.addf %18, %20 : vector<256x32xf32>
    %c0_13 = arith.constant 0 : index
    %c0_14 = arith.constant 0 : index
    %22 = vector.load %arg6[%c0_13, %c0_14] : memref<1x32xf32, #tpu.memory_space<vmem>>, vector<1x32xf32>
    %23 = vector.broadcast %22 : vector<1x32xf32> to vector<256x32xf32>
    %24 = arith.addf %21, %23 : vector<256x32xf32>
    %25 = math.tanh %24 : vector<256x32xf32>
    %c0_15 = arith.constant 0 : index
    %c0_16 = arith.constant 0 : index
    %26 = vector.load %arg7[%c0_15, %c0_16] : memref<32x96xf32, #tpu.memory_space<vmem>>, vector<32x96xf32>
    %cst_17 = arith.constant dense<0.000000e+00> : vector<256x96xf32>
    %27 = tpu.matmul %25, %26, %cst_17 {dimension_numbers = #tpu.dot_dimension_numbers<[1], [0], [0], [1], [0, 0, 1, 1], [], []>} : vector<256x32xf32>, vector<32x96xf32>, vector<256x96xf32> -> vector<256x96xf32>
    %c0_18 = arith.constant 0 : index
    %c0_19 = arith.constant 0 : index
    %28 = vector.load %arg8[%c0_18, %c0_19] : memref<1x96xf32, #tpu.memory_space<vmem>>, vector<1x96xf32>
    %29 = vector.broadcast %28 : vector<1x96xf32> to vector<256x96xf32>
    %30 = arith.addf %27, %29 : vector<256x96xf32>
    %31 = vector.extract_strided_slice %30 {offsets = [0, 0], sizes = [256, 32], strides = [1, 1]} : vector<256x96xf32> to vector<256x32xf32>
    %32 = vector.extract_strided_slice %30 {offsets = [0, 32], sizes = [256, 32], strides = [1, 1]} : vector<256x96xf32> to vector<256x32xf32>
    %33 = vector.extract_strided_slice %30 {offsets = [0, 64], sizes = [256, 32], strides = [1, 1]} : vector<256x96xf32> to vector<256x32xf32>
    %34 = arith.mulf %7, %31 : vector<256x32xf32>
    %35 = arith.addf %2, %34 : vector<256x32xf32>
    %c0_20 = arith.constant 0 : index
    %c0_21 = arith.constant 0 : index
    %36 = vector.load %arg9[%c0_20, %c0_21] : memref<256x64xf32, #tpu.memory_space<vmem>>, vector<256x32xf32>
    tpu.vector_store %arg9[%c0_20, %c0_21], %35 {strides = array<i32>} : memref<256x64xf32, #tpu.memory_space<vmem>>, vector<256x32xf32>,
    %37 = arith.mulf %9, %31 : vector<256x32xf32>
    %38 = arith.addf %3, %37 : vector<256x32xf32>
    %c0_22 = arith.constant 0 : index
    %c32 = arith.constant 32 : index
    %39 = vector.load %arg9[%c0_22, %c32] : memref<256x64xf32, #tpu.memory_space<vmem>>, vector<256x32xf32>
    tpu.vector_store %arg9[%c0_22, %c32], %38 {strides = array<i32>} : memref<256x64xf32, #tpu.memory_space<vmem>>, vector<256x32xf32>,
    %40 = arith.addf %1, %33 : vector<256x32xf32>
    %41 = arith.mulf %7, %8 : vector<256x32xf32>
    %42 = arith.mulf %9, %10 : vector<256x32xf32>
    %43 = arith.addf %41, %42 : vector<256x32xf32>
    %44 = arith.mulf %43, %32 : vector<256x32xf32>
    %45 = arith.addf %40, %44 : vector<256x32xf32>
    %c0_23 = arith.constant 0 : index
    %c0_24 = arith.constant 0 : index
    %46 = vector.load %arg10[%c0_23, %c0_24] : memref<256x32xf32, #tpu.memory_space<vmem>>, vector<256x32xf32>
    tpu.vector_store %arg10[%c0_23, %c0_24], %45 {strides = array<i32>} : memref<256x32xf32, #tpu.memory_space<vmem>>, vector<256x32xf32>,
    return
  }
  func.func @transform_0(%arg0: i32) -> (i32, i32) {
    %c0_i32 = arith.constant 0 : i32
    %c0_i32_0 = arith.constant 0 : i32
    return %arg0, %c0_i32 : i32, i32
  }
  func.func @transform_1(%arg0: i32) -> (i32, i32) {
    %c0_i32 = arith.constant 0 : i32
    %c0_i32_0 = arith.constant 0 : i32
    return %arg0, %c0_i32 : i32, i32
  }
  func.func @transform_2(%arg0: i32) -> (i32, i32) {
    %c0_i32 = arith.constant 0 : i32
    %c0_i32_0 = arith.constant 0 : i32
    %c0_i32_1 = arith.constant 0 : i32
    return %c0_i32, %c0_i32_0 : i32, i32
  }
  func.func @transform_3(%arg0: i32) -> (i32, i32) {
    %c0_i32 = arith.constant 0 : i32
    %c0_i32_0 = arith.constant 0 : i32
    %c0_i32_1 = arith.constant 0 : i32
    return %c0_i32, %c0_i32_0 : i32, i32
  }
  func.func @transform_4(%arg0: i32) -> (i32, i32) {
    %c0_i32 = arith.constant 0 : i32
    %c0_i32_0 = arith.constant 0 : i32
    %c0_i32_1 = arith.constant 0 : i32
    return %c0_i32, %c0_i32_0 : i32, i32
  }
  func.func @transform_5(%arg0: i32) -> (i32, i32) {
    %c0_i32 = arith.constant 0 : i32
    %c0_i32_0 = arith.constant 0 : i32
    %c0_i32_1 = arith.constant 0 : i32
    return %c0_i32, %c0_i32_0 : i32, i32
  }
  func.func @transform_6(%arg0: i32) -> (i32, i32) {
    %c0_i32 = arith.constant 0 : i32
    %c0_i32_0 = arith.constant 0 : i32
    %c0_i32_1 = arith.constant 0 : i32
    return %c0_i32, %c0_i32_0 : i32, i32
  }
  func.func @transform_7(%arg0: i32) -> (i32, i32) {
    %c0_i32 = arith.constant 0 : i32
    %c0_i32_0 = arith.constant 0 : i32
    %c0_i32_1 = arith.constant 0 : i32
    return %c0_i32, %c0_i32_0 : i32, i32
  }
  func.func @transform_8(%arg0: i32) -> (i32, i32) {
    %c0_i32 = arith.constant 0 : i32
    %c0_i32_0 = arith.constant 0 : i32
    return %arg0, %c0_i32 : i32, i32
  }
  func.func @transform_9(%arg0: i32) -> (i32, i32) {
    %c0_i32 = arith.constant 0 : i32
    %c0_i32_0 = arith.constant 0 : i32
    return %arg0, %c0_i32 : i32, i32
  }
}

</mosaic_0001>

<llo_original>
// kernel: equivariant_update.1
$region0: #{equivariant_update.1}
  #allocation0 [shape = 'u32[]', space=smem, size = 0x4, offset = 0x4, fixed_abs, tag = 'smem constant byte address 0x4 - core index']
  #allocation1 [shape = 'u32[144,128]{1,0:T(1,128)}', space=vmem, size = 0x12000, scoped, tag = 'internal scratch']
  %s0 = inlined_call_operand.vmem [shape: f32[512,64], index: 0, kind: input, shape index: {}]
  %s1 = inlined_call_operand.vmem [shape: f32[512,32], index: 1, kind: input, shape index: {}]
  %s2 = inlined_call_operand.vmem [shape: f32[32,64], index: 2, kind: input, shape index: {}]
  %s3 = inlined_call_operand.vmem [shape: f32[32,32], index: 3, kind: input, shape index: {}]
  %s4 = inlined_call_operand.vmem [shape: f32[32,32], index: 4, kind: input, shape index: {}]
  %s5 = inlined_call_operand.vmem [shape: f32[1,32], index: 5, kind: input, shape index: {}]
  %s6 = inlined_call_operand.vmem [shape: f32[32,96], index: 6, kind: input, shape index: {}]
  %s7 = inlined_call_operand.vmem [shape: f32[1,96], index: 7, kind: input, shape index: {}]
  %s8 = inlined_call_operand.vmem [shape: f32[512,64], index: 8, kind: output, shape index: {0}]
  %s9 = inlined_call_operand.vmem [shape: f32[512,32], index: 9, kind: output, shape index: {1}]
  %10 = xla_tuple %s8, %s9
  %s11 = sld [smem:[#allocation0]]
  $region73: #{equivariant_update.1} parent=0
    _
  %s13 = ssub.s32 1, %s11
  %s14 = scalar_select 0, %s13, %s11
  loop: start=0, step=1, limit=4
  $region2: #{equivariant_update.1} parent=0 // loop_pre_header
    _
  $region3: #{equivariant_update.1} parent=0 // loop_header
    %s16 = sphi 0, %s20
    %p17 = scmp.ge.s32.totalorder %s16, 4
    %s26 = sphi 0, %s28
    %s29 = sphi 0, %s26
    %s30 = sphi 0, %s29
    %s46 = sphi 0, %s30
    %s52 = sphi 0, %s54
    %s55 = sphi 0, %s52
    %s56 = sphi 0, %s55
    %s72 = sphi 0, %s56
    %s76 = sphi 0, %s76
    %s78 = sphi 0, %s76
    %s79 = sphi 0, %s78
    %s93 = sphi 0, %s79
    %s97 = sphi 0, %s97
    %s99 = sphi 0, %s97
    %s100 = sphi 0, %s99
    %s114 = sphi 0, %s100
    %s118 = sphi 0, %s118
    %s120 = sphi 0, %s118
    %s121 = sphi 0, %s120
    %s135 = sphi 0, %s121
    %s139 = sphi 0, %s139
    %s141 = sphi 0, %s139
    %s142 = sphi 0, %s141
    %s156 = sphi 0, %s142
    %s160 = sphi 0, %s160
    %s162 = sphi 0, %s160
    %s163 = sphi 0, %s162
    %s177 = sphi 0, %s163
    %s181 = sphi 0, %s181
    %s183 = sphi 0, %s181
    %s184 = sphi 0, %s183
    %s198 = sphi 0, %s184
    %s204 = sphi 0, %s206
    %s207 = sphi 0, %s204
    %s208 = sphi 0, %s207
    %s224 = sphi 0, %s208
    %s230 = sphi 0, %s232
    %s233 = sphi 0, %s230
    %s234 = sphi 0, %s233
    %s250 = sphi 0, %s234
  $region4: #{equivariant_update.1} parent=0 // loop_header_branch
    %19 = sbr.rel (%p17) target = $region8
  $region5: #{equivariant_update.1} parent=0 // loop_body
    %s21 = ssub.s32 %s16, 1
    %s22 = ssub.s32 %s16, 2
    %s23 = sadd.s32 %s16, 1
    %s24 = ssub.s32 %s16, %s23
    %p25 = scmp.eq.s32.totalorder %s24, 0
    %s27 = sadd.s32 %s26, 1
    %s28 = scalar_select %p25, %s26, %s27
    %p31 = pneg %p25
    %p32 = scmp.eq.s32.totalorder %s16, 1
    %p33 = por %p31, %p32
    %p34 = scmp.ne.s32.totalorder %s26, %s29
    %p35 = scmp.eq.s32.totalorder %s16, 0
    %p36 = por %p34, %p35
    %p37 = scmp.ne.s32.totalorder %s26, %s29
    %p38 = scmp.eq.s32.totalorder %s21, 1
    %p39 = por %p37, %p38
    %p40 = scmp.ne.s32.totalorder %s29, %s30
    %p41 = scmp.eq.s32.totalorder %s21, 0
    %p42 = por %p40, %p41
    %p43 = scmp.ne.s32.totalorder %s29, %s30
    %p44 = scmp.eq.s32.totalorder %s22, 1
    %p45 = por %p43, %p44
    %p47 = scmp.ne.s32.totalorder %s30, %s46
    %p48 = scmp.eq.s32.totalorder %s22, 0
    %p49 = por %p47, %p48
    %s50 = ssub.s32 %s16, %s23
    %p51 = scmp.eq.s32.totalorder %s50, 0
    %s53 = sadd.s32 %s52, 1
    %s54 = scalar_select %p51, %s52, %s53
    %p57 = pneg %p51
    %p58 = scmp.eq.s32.totalorder %s16, 1
    %p59 = por %p57, %p58
    %p60 = scmp.ne.s32.totalorder %s52, %s55
    %p61 = scmp.eq.s32.totalorder %s16, 0
    %p62 = por %p60, %p61
    %p63 = scmp.ne.s32.totalorder %s52, %s55
    %p64 = scmp.eq.s32.totalorder %s21, 1
    %p65 = por %p63, %p64
    %p66 = scmp.ne.s32.totalorder %s55, %s56
    %p67 = scmp.eq.s32.totalorder %s21, 0
    %p68 = por %p66, %p67
    %p69 = scmp.ne.s32.totalorder %s55, %s56
    %p70 = scmp.eq.s32.totalorder %s22, 1
    %p71 = por %p69, %p70
    %p73 = scmp.ne.s32.totalorder %s56, %s72
    %p74 = scmp.eq.s32.totalorder %s22, 0
    %p75 = por %p73, %p74
    %s77 = sadd.s32 %s76, 1
    %p80 = scmp.eq.s32.totalorder %s16, 1
    %p81 = scmp.ne.s32.totalorder %s76, %s78
    %p82 = scmp.eq.s32.totalorder %s16, 0
    %p83 = por %p81, %p82
    %p84 = scmp.ne.s32.totalorder %s76, %s78
    %p85 = scmp.eq.s32.totalorder %s21, 1
    %p86 = por %p84, %p85
    %p87 = scmp.ne.s32.totalorder %s78, %s79
    %p88 = scmp.eq.s32.totalorder %s21, 0
    %p89 = por %p87, %p88
    %p90 = scmp.ne.s32.totalorder %s78, %s79
    %p91 = scmp.eq.s32.totalorder %s22, 1
    %p92 = por %p90, %p91
    %p94 = scmp.ne.s32.totalorder %s79, %s93
    %p95 = scmp.eq.s32.totalorder %s22, 0
    %p96 = por %p94, %p95
    %s98 = sadd.s32 %s97, 1
    %p101 = scmp.eq.s32.totalorder %s16, 1
    %p102 = scmp.ne.s32.totalorder %s97, %s99
    %p103 = scmp.eq.s32.totalorder %s16, 0
    %p104 = por %p102, %p103
    %p105 = scmp.ne.s32.totalorder %s97, %s99
    %p106 = scmp.eq.s32.totalorder %s21, 1
    %p107 = por %p105, %p106
    %p108 = scmp.ne.s32.totalorder %s99, %s100
    %p109 = scmp.eq.s32.totalorder %s21, 0
    %p110 = por %p108, %p109
    %p111 = scmp.ne.s32.totalorder %s99, %s100
    %p112 = scmp.eq.s32.totalorder %s22, 1
    %p113 = por %p111, %p112
    %p115 = scmp.ne.s32.totalorder %s100, %s114
    %p116 = scmp.eq.s32.totalorder %s22, 0
    %p117 = por %p115, %p116
    %s119 = sadd.s32 %s118, 1
    %p122 = scmp.eq.s32.totalorder %s16, 1
    %p123 = scmp.ne.s32.totalorder %s118, %s120
    %p124 = scmp.eq.s32.totalorder %s16, 0
    %p125 = por %p123, %p124
    %p126 = scmp.ne.s32.totalorder %s118, %s120
    %p127 = scmp.eq.s32.totalorder %s21, 1
    %p128 = por %p126, %p127
    %p129 = scmp.ne.s32.totalorder %s120, %s121
    %p130 = scmp.eq.s32.totalorder %s21, 0
    %p131 = por %p129, %p130
    %p132 = scmp.ne.s32.totalorder %s120, %s121
    %p133 = scmp.eq.s32.totalorder %s22, 1
    %p134 = por %p132, %p133
    %p136 = scmp.ne.s32.totalorder %s121, %s135
    %p137 = scmp.eq.s32.totalorder %s22, 0
    %p138 = por %p136, %p137
    %s140 = sadd.s32 %s139, 1
    %p143 = scmp.eq.s32.totalorder %s16, 1
    %p144 = scmp.ne.s32.totalorder %s139, %s141
    %p145 = scmp.eq.s32.totalorder %s16, 0
    %p146 = por %p144, %p145
    %p147 = scmp.ne.s32.totalorder %s139, %s141
    %p148 = scmp.eq.s32.totalorder %s21, 1
    %p149 = por %p147, %p148
    %p150 = scmp.ne.s32.totalorder %s141, %s142
    %p151 = scmp.eq.s32.totalorder %s21, 0
    %p152 = por %p150, %p151
    %p153 = scmp.ne.s32.totalorder %s141, %s142
    %p154 = scmp.eq.s32.totalorder %s22, 1
    %p155 = por %p153, %p154
    %p157 = scmp.ne.s32.totalorder %s142, %s156
    %p158 = scmp.eq.s32.totalorder %s22, 0
    %p159 = por %p157, %p158
    %s161 = sadd.s32 %s160, 1
    %p164 = scmp.eq.s32.totalorder %s16, 1
    %p165 = scmp.ne.s32.totalorder %s160, %s162
    %p166 = scmp.eq.s32.totalorder %s16, 0
    %p167 = por %p165, %p166
    %p168 = scmp.ne.s32.totalorder %s160, %s162
    %p169 = scmp.eq.s32.totalorder %s21, 1
    %p170 = por %p168, %p169
    %p171 = scmp.ne.s32.totalorder %s162, %s163
    %p172 = scmp.eq.s32.totalorder %s21, 0
    %p173 = por %p171, %p172
    %p174 = scmp.ne.s32.totalorder %s162, %s163
    %p175 = scmp.eq.s32.totalorder %s22, 1
    %p176 = por %p174, %p175
    %p178 = scmp.ne.s32.totalorder %s163, %s177
    %p179 = scmp.eq.s32.totalorder %s22, 0
    %p180 = por %p178, %p179
    %s182 = sadd.s32 %s181, 1
    %p185 = scmp.eq.s32.totalorder %s16, 1
    %p186 = scmp.ne.s32.totalorder %s181, %s183
    %p187 = scmp.eq.s32.totalorder %s16, 0
    %p188 = por %p186, %p187
    %p189 = scmp.ne.s32.totalorder %s181, %s183
    %p190 = scmp.eq.s32.totalorder %s21, 1
    %p191 = por %p189, %p190
    %p192 = scmp.ne.s32.totalorder %s183, %s184
    %p193 = scmp.eq.s32.totalorder %s21, 0
    %p194 = por %p192, %p193
    %p195 = scmp.ne.s32.totalorder %s183, %s184
    %p196 = scmp.eq.s32.totalorder %s22, 1
    %p197 = por %p195, %p196
    %p199 = scmp.ne.s32.totalorder %s184, %s198
    %p200 = scmp.eq.s32.totalorder %s22, 0
    %p201 = por %p199, %p200
    %s202 = ssub.s32 %s16, %s23
    %p203 = scmp.eq.s32.totalorder %s202, 0
    %s205 = sadd.s32 %s204, 1
    %s206 = scalar_select %p203, %s204, %s205
    %p209 = pneg %p203
    %p210 = scmp.eq.s32.totalorder %s16, 1
    %p211 = por %p209, %p210
    %p212 = scmp.ne.s32.totalorder %s204, %s207
    %p213 = scmp.eq.s32.totalorder %s16, 0
    %p214 = por %p212, %p213
    %p215 = scmp.ne.s32.totalorder %s204, %s207
    %p216 = scmp.eq.s32.totalorder %s21, 1
    %p217 = por %p215, %p216
    %p218 = scmp.ne.s32.totalorder %s207, %s208
    %p219 = scmp.eq.s32.totalorder %s21, 0
    %p220 = por %p218, %p219
    %p221 = scmp.ne.s32.totalorder %s207, %s208
    %p222 = scmp.eq.s32.totalorder %s22, 1
    %p223 = por %p221, %p222
    %p225 = scmp.ne.s32.totalorder %s208, %s224
    %p226 = scmp.eq.s32.totalorder %s22, 0
    %p227 = por %p225, %p226
    %s228 = ssub.s32 %s16, %s23
    %p229 = scmp.eq.s32.totalorder %s228, 0
    %s231 = sadd.s32 %s230, 1
    %s232 = scalar_select %p229, %s230, %s231
    %p235 = pneg %p229
    %p236 = scmp.eq.s32.totalorder %s16, 1
    %p237 = por %p235, %p236
    %p238 = scmp.ne.s32.totalorder %s230, %s233
    %p239 = scmp.eq.s32.totalorder %s16, 0
    %p240 = por %p238, %p239
    %p241 = scmp.ne.s32.totalorder %s230, %s233
    %p242 = scmp.eq.s32.totalorder %s21, 1
    %p243 = por %p241, %p242
    %p244 = scmp.ne.s32.totalorder %s233, %s234
    %p245 = scmp.eq.s32.totalorder %s21, 0
    %p246 = por %p244, %p245
    %p247 = scmp.ne.s32.totalorder %s233, %s234
    %p248 = scmp.eq.s32.totalorder %s22, 1
    %p249 = por %p247, %p248
    %p251 = scmp.ne.s32.totalorder %s234, %s250
    %p252 = scmp.eq.s32.totalorder %s22, 0
    %p253 = por %p251, %p252
    %p254 = scmp.le.s32.totalorder 1, %s16
    %p255 = scmp.lt.s32.totalorder %s16, 3
    %p256 = pnand %p254, %p255
    %p257 = pneg %p256
    // Predicated region
    $region9: #{equivariant_update.1} parent=5 // pred_check
      _
    $region10: #{equivariant_update.1} parent=5 // pred_check_branch
      %259 = sbr.rel (%p256) target = $region12
    $region11: #{equivariant_update.1} parent=5 // pred_region
      %s260 = ssub.s32 %s16, 1
      // Predicated region
      $region13: #{equivariant_update.1} parent=11 // pred_check
        %p261 = pneg %p89
      $region14: #{equivariant_update.1} parent=11 // pred_check_branch
        %263 = sbr.rel (%p261) target = $region16
      $region15: #{equivariant_update.1} parent=11 // pred_region
        _
      $region16: #{equivariant_update.1} parent=11 // pred_fallthru
        _
      // Predicated region
      $region17: #{equivariant_update.1} parent=11 // pred_check
        %p264 = pneg %p110
      $region18: #{equivariant_update.1} parent=11 // pred_check_branch
        %266 = sbr.rel (%p264) target = $region20
      $region19: #{equivariant_update.1} parent=11 // pred_region
        _
      $region20: #{equivariant_update.1} parent=11 // pred_fallthru
        _
      // Predicated region
      $region21: #{equivariant_update.1} parent=11 // pred_check
        %p267 = pneg %p131
      $region22: #{equivariant_update.1} parent=11 // pred_check_branch
        %269 = sbr.rel (%p267) target = $region24
      $region23: #{equivariant_update.1} parent=11 // pred_region
        _
      $region24: #{equivariant_update.1} parent=11 // pred_fallthru
        _
      // Predicated region
      $region25: #{equivariant_update.1} parent=11 // pred_check
        %p270 = pneg %p152
      $region26: #{equivariant_update.1} parent=11 // pred_check_branch
        %272 = sbr.rel (%p270) target = $region28
      $region27: #{equivariant_update.1} parent=11 // pred_region
        _
      $region28: #{equivariant_update.1} parent=11 // pred_fallthru
        _
      // Predicated region
      $region29: #{equivariant_update.1} parent=11 // pred_check
        %p273 = pneg %p173
      $region30: #{equivariant_update.1} parent=11 // pred_check_branch
        %275 = sbr.rel (%p273) target = $region32
      $region31: #{equivariant_update.1} parent=11 // pred_region
        _
      $region32: #{equivariant_update.1} parent=11 // pred_fallthru
        _
      // Predicated region
      $region33: #{equivariant_update.1} parent=11 // pred_check
        %p276 = pneg %p194
      $region34: #{equivariant_update.1} parent=11 // pred_check_branch
        %278 = sbr.rel (%p276) target = $region36
      $region35: #{equivariant_update.1} parent=11 // pred_region
        _
      $region36: #{equivariant_update.1} parent=11 // pred_fallthru
        _
    $region12: #{equivariant_update.1} parent=5 // pred_fallthru
      _
    %p279 = scmp.lt.s32.totalorder %s16, 2
    // Predicated region
    $region37: #{equivariant_update.1} parent=5 // pred_check
      %p280 = pneg %p279
    $region38: #{equivariant_update.1} parent=5 // pred_check_branch
      %282 = sbr.rel (%p280) target = $region40
    $region39: #{equivariant_update.1} parent=5 // pred_region
      // Predicated region
      $region41: #{equivariant_update.1} parent=39 // pred_check
        %p283 = pneg %p36
      $region42: #{equivariant_update.1} parent=39 // pred_check_branch
        %285 = sbr.rel (%p283) target = $region44
      $region43: #{equivariant_update.1} parent=39 // pred_region
        %s286 = smul.u32 32, %s16
        %p287 = scmp.lt.s32.totalorder %s286, 63
        %s288 = scalar_select %p287, %s286, 63
        %s289 = smul.addr %s288, 8
        %s290 = scalar_lea.vmem %s0, %s289
        %s291 = smul.u32 32, %s16
      $region44: #{equivariant_update.1} parent=39 // pred_fallthru
        _
      // Predicated region
      $region45: #{equivariant_update.1} parent=39 // pred_check
        %p292 = pneg %p62
      $region46: #{equivariant_update.1} parent=39 // pred_check_branch
        %294 = sbr.rel (%p292) target = $region48
      $region47: #{equivariant_update.1} parent=39 // pred_region
        %s295 = smul.u32 32, %s16
        %p296 = scmp.lt.s32.totalorder %s295, 63
        %s297 = scalar_select %p296, %s295, 63
        %s298 = smul.addr %s297, 8
        %s299 = scalar_lea.vmem %s1, %s298
        %s300 = smul.u32 32, %s16
      $region48: #{equivariant_update.1} parent=39 // pred_fallthru
        _
    $region40: #{equivariant_update.1} parent=5 // pred_fallthru
      _
    %p301 = scmp.le.s32.totalorder 1, %s16
    %p302 = scmp.lt.s32.totalorder %s16, 3
    %p303 = pnand %p301, %p302
    %p304 = pneg %p303
    // Predicated region
    $region49: #{equivariant_update.1} parent=5 // pred_check
      _
    $region50: #{equivariant_update.1} parent=5 // pred_check_branch
      %306 = sbr.rel (%p303) target = $region52
    $region51: #{equivariant_update.1} parent=5 // pred_region
      %s307 = ssub.s32 %s16, 1
      %s308 = smul.u32 32, %s21
      %p309 = scmp.lt.s32.totalorder %s308, 63
      %s310 = scalar_select %p309, %s308, 63
      %s311 = smul.addr %s310, 8
      %s312 = scalar_lea.vmem %s0, %s311
      %p313 = pneg %p42
      %p314 = pneg %p39
      %s315 = smul.u32 32, %s21
      %p316 = scmp.lt.s32.totalorder %s315, 63
      %s317 = scalar_select %p316, %s315, 63
      %s318 = smul.addr %s317, 8
      %s319 = scalar_lea.vmem %s1, %s318
      %p320 = pneg %p68
      %p321 = pneg %p65
      %p322 = pneg %p89
      %p323 = pneg %p86
      %p324 = pneg %p110
      %p325 = pneg %p107
      %p326 = pneg %p131
      %p327 = pneg %p128
      %p328 = pneg %p152
      %p329 = pneg %p149
      %p330 = pneg %p173
      %p331 = pneg %p170
      %p332 = pneg %p194
      %p333 = pneg %p191
      %p334 = pneg %p220
      %p335 = pneg %p217
      %s336 = smul.u32 32, %s21
      %p337 = scmp.lt.s32.totalorder %s336, 63
      %s338 = scalar_select %p337, %s336, 63
      %s339 = smul.addr %s338, 8
      %s340 = scalar_lea.vmem %s8, %s339
      %p341 = pneg %p246
      %p342 = pneg %p243
      %s343 = smul.u32 32, %s21
      %p344 = scmp.lt.s32.totalorder %s343, 63
      %s345 = scalar_select %p344, %s343, 63
      %s346 = smul.addr %s345, 8
      %s347 = scalar_lea.vmem %s9, %s346
      %s348 = smul.u32 32, %s21
      %p349 = scmp.lt.s32.totalorder %s348, 63
      %s350 = scalar_select %p349, %s348, 63
      %s351 = smul.addr %s350, 8
      %s352 = scalar_lea.vmem %s0, %s351
      %s353 = smul.u32 32, %s21
      %s354 = smul.u32 32, %s21
      %p355 = scmp.lt.s32.totalorder %s354, 63
      %s356 = scalar_select %p355, %s354, 63
      %s357 = smul.addr %s356, 8
      %s358 = scalar_lea.vmem %s1, %s357
      %s359 = smul.u32 32, %s21
      %s360 = smul.u32 32, %s21
      %p361 = scmp.lt.s32.totalorder %s360, 63
      %s362 = scalar_select %p361, %s360, 63
      %s363 = smul.addr %s362, 8
      %s364 = scalar_lea.vmem %s8, %s363
      %s365 = smul.u32 32, %s21
      %s366 = smul.u32 32, %s21
      %p367 = scmp.lt.s32.totalorder %s366, 63
      %s368 = scalar_select %p367, %s366, 63
      %s369 = smul.addr %s368, 8
      %s370 = scalar_lea.vmem %s9, %s369
      %s371 = smul.u32 32, %s21
      %v372 = vld [vmem:[%s352] sm:$0xff]
      %v373 = vld [vmem:[%s352 + $0x8] sm:$0xff]
      %v374 = vld [vmem:[%s352 + $0x10] sm:$0xff]
      %v375 = vld [vmem:[%s352 + $0x18] sm:$0xff]
      %v376 = vld [vmem:[%s352 + $0x20] sm:$0xff]
      %v377 = vld [vmem:[%s352 + $0x28] sm:$0xff]
      %v378 = vld [vmem:[%s352 + $0x30] sm:$0xff]
      %v379 = vld [vmem:[%s352 + $0x38] sm:$0xff]
      %v380 = vld [vmem:[%s352 + $0x40] sm:$0xff]
      %v381 = vld [vmem:[%s352 + $0x48] sm:$0xff]
      %v382 = vld [vmem:[%s352 + $0x50] sm:$0xff]
      %v383 = vld [vmem:[%s352 + $0x58] sm:$0xff]
      %v384 = vld [vmem:[%s352 + $0x60] sm:$0xff]
      %v385 = vld [vmem:[%s352 + $0x68] sm:$0xff]
      %v386 = vld [vmem:[%s352 + $0x70] sm:$0xff]
      %v387 = vld [vmem:[%s352 + $0x78] sm:$0xff]
      %v388 = vld [vmem:[%s352 + $0x80] sm:$0xff]
      %v389 = vld [vmem:[%s352 + $0x88] sm:$0xff]
      %v390 = vld [vmem:[%s352 + $0x90] sm:$0xff]
      %v391 = vld [vmem:[%s352 + $0x98] sm:$0xff]
      %v392 = vld [vmem:[%s352 + $0xa0] sm:$0xff]
      %v393 = vld [vmem:[%s352 + $0xa8] sm:$0xff]
      %v394 = vld [vmem:[%s352 + $0xb0] sm:$0xff]
      %v395 = vld [vmem:[%s352 + $0xb8] sm:$0xff]
      %v396 = vld [vmem:[%s352 + $0xc0] sm:$0xff]
      %v397 = vld [vmem:[%s352 + $0xc8] sm:$0xff]
      %v398 = vld [vmem:[%s352 + $0xd0] sm:$0xff]
      %v399 = vld [vmem:[%s352 + $0xd8] sm:$0xff]
      %v400 = vld [vmem:[%s352 + $0xe0] sm:$0xff]
      %v401 = vld [vmem:[%s352 + $0xe8] sm:$0xff]
      %v402 = vld [vmem:[%s352 + $0xf0] sm:$0xff]
      %v403 = vld [vmem:[%s352 + $0xf8] sm:$0xff]
      %v404 = vld [vmem:[%s358] sm:$0xff]
      %v405 = vld [vmem:[%s358 + $0x8] sm:$0xff]
      %v406 = vld [vmem:[%s358 + $0x10] sm:$0xff]
      %v407 = vld [vmem:[%s358 + $0x18] sm:$0xff]
      %v408 = vld [vmem:[%s358 + $0x20] sm:$0xff]
      %v409 = vld [vmem:[%s358 + $0x28] sm:$0xff]
      %v410 = vld [vmem:[%s358 + $0x30] sm:$0xff]
      %v411 = vld [vmem:[%s358 + $0x38] sm:$0xff]
      %v412 = vld [vmem:[%s358 + $0x40] sm:$0xff]
      %v413 = vld [vmem:[%s358 + $0x48] sm:$0xff]
      %v414 = vld [vmem:[%s358 + $0x50] sm:$0xff]
      %v415 = vld [vmem:[%s358 + $0x58] sm:$0xff]
      %v416 = vld [vmem:[%s358 + $0x60] sm:$0xff]
      %v417 = vld [vmem:[%s358 + $0x68] sm:$0xff]
      %v418 = vld [vmem:[%s358 + $0x70] sm:$0xff]
      %v419 = vld [vmem:[%s358 + $0x78] sm:$0xff]
      %v420 = vld [vmem:[%s358 + $0x80] sm:$0xff]
      %v421 = vld [vmem:[%s358 + $0x88] sm:$0xff]
      %v422 = vld [vmem:[%s358 + $0x90] sm:$0xff]
      %v423 = vld [vmem:[%s358 + $0x98] sm:$0xff]
      %v424 = vld [vmem:[%s358 + $0xa0] sm:$0xff]
      %v425 = vld [vmem:[%s358 + $0xa8] sm:$0xff]
      %v426 = vld [vmem:[%s358 + $0xb0] sm:$0xff]
      %v427 = vld [vmem:[%s358 + $0xb8] sm:$0xff]
      %v428 = vld [vmem:[%s358 + $0xc0] sm:$0xff]
      %v429 = vld [vmem:[%s358 + $0xc8] sm:$0xff]
      %v430 = vld [vmem:[%s358 + $0xd0] sm:$0xff]
      %v431 = vld [vmem:[%s358 + $0xd8] sm:$0xff]
      %v432 = vld [vmem:[%s358 + $0xe0] sm:$0xff]
      %v433 = vld [vmem:[%s358 + $0xe8] sm:$0xff]
      %v434 = vld [vmem:[%s358 + $0xf0] sm:$0xff]
      %v435 = vld [vmem:[%s358 + $0xf8] sm:$0xff]
      %v436 = vld [vmem:[%s2] sm:$0xff]
      %v437 = vld [vmem:[%s2 + $0x8] sm:$0xff]
      %v438 = vld [vmem:[%s2 + $0x10] sm:$0xff]
      %v439 = vld [vmem:[%s2 + $0x18] sm:$0xff]
      %vm440 = vcmask 261120
      %v442 = vsel %vm440, %v372, 0
      %v445 = vsel %vm440, %v373, 0
      %v448 = vsel %vm440, %v374, 0
      %v451 = vsel %vm440, %v375, 0
      %v454 = vsel %vm440, %v376, 0
      %v457 = vsel %vm440, %v377, 0
      %v460 = vsel %vm440, %v378, 0
      %v463 = vsel %vm440, %v379, 0
      %v466 = vsel %vm440, %v380, 0
      %v469 = vsel %vm440, %v381, 0
      %v472 = vsel %vm440, %v382, 0
      %v475 = vsel %vm440, %v383, 0
      %v478 = vsel %vm440, %v384, 0
      %v481 = vsel %vm440, %v385, 0
      %v484 = vsel %vm440, %v386, 0
      %v487 = vsel %vm440, %v387, 0
      %v490 = vsel %vm440, %v388, 0
      %v493 = vsel %vm440, %v389, 0
      %v496 = vsel %vm440, %v390, 0
      %v499 = vsel %vm440, %v391, 0
      %v502 = vsel %vm440, %v392, 0
      %v505 = vsel %vm440, %v393, 0
      %v508 = vsel %vm440, %v394, 0
      %v511 = vsel %vm440, %v395, 0
      %v514 = vsel %vm440, %v396, 0
      %v517 = vsel %vm440, %v397, 0
      %v520 = vsel %vm440, %v398, 0
      %v523 = vsel %vm440, %v399, 0
      %v526 = vsel %vm440, %v400, 0
      %v529 = vsel %vm440, %v401, 0
      %v532 = vsel %vm440, %v402, 0
      %v535 = vsel %vm440, %v403, 0
      %537 = vmatprep.subr.mxu0 0.0
      %538 = vmatpush1.msra.mxu0 0.0
      %539 = vmatprep.subr.mxu0 0.0
      %540 = vmatpush1.msra.mxu0 0.0
      %541 = vmatprep.subr.mxu0 0.0
      %542 = vmatpush1.msra.mxu0 0.0
      %543 = vmatprep.subr.mxu0 0.0
      %544 = vmatpush1.msra.mxu0 0.0
      %545 = vmatprep.subr.mxu0 0.0
      %546 = vmatpush1.msra.mxu0 0.0
      %547 = vmatprep.subr.mxu0 0.0
      %548 = vmatpush1.msra.mxu0 0.0
      %549 = vmatprep.subr.mxu0 0.0
      %550 = vmatpush1.msra.mxu0 0.0
      %551 = vmatprep.subr.mxu0 0.0
      %552 = vmatpush1.msra.mxu0 0.0
      %553 = vmatprep.subr.mxu0 0.0
      %554 = vmatpush1.msra.mxu0 0.0
      %555 = vmatprep.subr.mxu0 0.0
      %556 = vmatpush1.msra.mxu0 0.0
      %557 = vmatprep.subr.mxu0 0.0
      %558 = vmatpush1.msra.mxu0 0.0
      %559 = vmatprep.subr.mxu0 0.0
      %560 = vmatpush1.msra.mxu0 0.0
      %561 = vmatprep.subr.mxu0 0.0
      %562 = vmatpush1.msra.mxu0 %v439
      %563 = vmatprep.subr.mxu0 0.0
      %564 = vmatpush1.msra.mxu0 %v438
      %565 = vmatprep.subr.mxu0 0.0
      %566 = vmatpush1.msra.mxu0 %v437
      %567 = vmatprep.subr.mxu0 0.0
      %568 = vmatpush1.msra.mxu0 %v436
      %569 = vmatprep.subr.mxu0 0.0
      %570 = vmatpush2.msra.mxu0 0.0
      %571 = vmatprep.subr.mxu0 0.0
      %572 = vmatpush2.msra.mxu0 0.0
      %573 = vmatprep.subr.mxu0 0.0
      %574 = vmatpush2.msra.mxu0 0.0
      %575 = vmatprep.subr.mxu0 0.0
      %576 = vmatpush2.msra.mxu0 0.0
      %577 = vmatprep.subr.mxu0 0.0
      %578 = vmatpush2.msra.mxu0 0.0
      %579 = vmatprep.subr.mxu0 0.0
      %580 = vmatpush2.msra.mxu0 0.0
      %581 = vmatprep.subr.mxu0 0.0
      %582 = vmatpush2.msra.mxu0 0.0
      %583 = vmatprep.subr.mxu0 0.0
      %584 = vmatpush2.msra.mxu0 0.0
      %585 = vmatprep.subr.mxu0 0.0
      %586 = vmatpush2.msra.mxu0 0.0
      %587 = vmatprep.subr.mxu0 0.0
      %588 = vmatpush2.msra.mxu0 0.0
      %589 = vmatprep.subr.mxu0 0.0
      %590 = vmatpush2.msra.mxu0 0.0
      %591 = vmatprep.subr.mxu0 0.0
      %592 = vmatpush2.msra.mxu0 0.0
      %593 = vmatprep.subr.mxu0 0.0
      %594 = vmatpush2.msra.mxu0 0.0
      %595 = vmatprep.subr.mxu0 0.0
      %596 = vmatpush2.msra.mxu0 0.0
      %597 = vmatprep.subr.mxu0 0.0
      %598 = vmatpush2.msra.mxu0 0.0
      %599 = vmatprep.subr.mxu0 0.0
      %600 = vmatpush2.msra.mxu0 0.0
      %601 = vmatprep.mubr.f32.mxu0 0.0
      %602 = vmatmul.mubr.f32.gmra.mxu0 %v442
      %v603 = vpop.f32.mrf.mxu0
      %v604 = vadd.f32 0.0, %v603
      %v605 = vpop.f32.mrf.mxu0
      %606 = vmatprep.mubr.f32.mxu0 0.0
      %607 = vmatmul.mubr.f32.gmra.mxu0 %v445
      %v608 = vpop.f32.mrf.mxu0
      %v609 = vadd.f32 0.0, %v608
      %v610 = vpop.f32.mrf.mxu0
      %611 = vmatprep.mubr.f32.mxu0 0.0
      %612 = vmatmul.mubr.f32.gmra.mxu0 %v448
      %v613 = vpop.f32.mrf.mxu0
      %v614 = vadd.f32 0.0, %v613
      %v615 = vpop.f32.mrf.mxu0
      %616 = vmatprep.mubr.f32.mxu0 0.0
      %617 = vmatmul.mubr.f32.gmra.mxu0 %v451
      %v618 = vpop.f32.mrf.mxu0
      %v619 = vadd.f32 0.0, %v618
      %v620 = vpop.f32.mrf.mxu0
      %621 = vmatprep.mubr.f32.mxu0 0.0
      %622 = vmatmul.mubr.f32.gmra.mxu0 %v454
      %v623 = vpop.f32.mrf.mxu0
      %v624 = vadd.f32 0.0, %v623
      %v625 = vpop.f32.mrf.mxu0
      %626 = vmatprep.mubr.f32.mxu0 0.0
      %627 = vmatmul.mubr.f32.gmra.mxu0 %v457
      %v628 = vpop.f32.mrf.mxu0
      %v629 = vadd.f32 0.0, %v628
      %v630 = vpop.f32.mrf.mxu0
      %631 = vmatprep.mubr.f32.mxu0 0.0
      %632 = vmatmul.mubr.f32.gmra.mxu0 %v460
      %v633 = vpop.f32.mrf.mxu0
      %v634 = vadd.f32 0.0, %v633
      %v635 = vpop.f32.mrf.mxu0
      %636 = vmatprep.mubr.f32.mxu0 0.0
      %637 = vmatmul.mubr.f32.gmra.mxu0 %v463
      %v638 = vpop.f32.mrf.mxu0
      %v639 = vadd.f32 0.0, %v638
      %v640 = vpop.f32.mrf.mxu0
      %641 = vmatprep.mubr.f32.mxu0 0.0
      %642 = vmatmul.mubr.f32.gmra.mxu0 %v466
      %v643 = vpop.f32.mrf.mxu0
      %v644 = vadd.f32 0.0, %v643
      %v645 = vpop.f32.mrf.mxu0
      %646 = vmatprep.mubr.f32.mxu0 0.0
      %647 = vmatmul.mubr.f32.gmra.mxu0 %v469
      %v648 = vpop.f32.mrf.mxu0
      %v649 = vadd.f32 0.0, %v648
      %v650 = vpop.f32.mrf.mxu0
      %651 = vmatprep.mubr.f32.mxu0 0.0
      %652 = vmatmul.mubr.f32.gmra.mxu0 %v472
      %v653 = vpop.f32.mrf.mxu0
      %v654 = vadd.f32 0.0, %v653
      %v655 = vpop.f32.mrf.mxu0
      %656 = vmatprep.mubr.f32.mxu0 0.0
      %657 = vmatmul.mubr.f32.gmra.mxu0 %v475
      %v658 = vpop.f32.mrf.mxu0
      %v659 = vadd.f32 0.0, %v658
      %v660 = vpop.f32.mrf.mxu0
      %661 = vmatprep.mubr.f32.mxu0 0.0
      %662 = vmatmul.mubr.f32.gmra.mxu0 %v478
      %v663 = vpop.f32.mrf.mxu0
      %v664 = vadd.f32 0.0, %v663
      %v665 = vpop.f32.mrf.mxu0
      %666 = vmatprep.mubr.f32.mxu0 0.0
      %667 = vmatmul.mubr.f32.gmra.mxu0 %v481
      %v668 = vpop.f32.mrf.mxu0
      %v669 = vadd.f32 0.0, %v668
      %v670 = vpop.f32.mrf.mxu0
      %671 = vmatprep.mubr.f32.mxu0 0.0
      %672 = vmatmul.mubr.f32.gmra.mxu0 %v484
      %v673 = vpop.f32.mrf.mxu0
      %v674 = vadd.f32 0.0, %v673
      %v675 = vpop.f32.mrf.mxu0
      %676 = vmatprep.mubr.f32.mxu0 0.0
      %677 = vmatmul.mubr.f32.gmra.mxu0 %v487
      %v678 = vpop.f32.mrf.mxu0
      %v679 = vadd.f32 0.0, %v678
      %v680 = vpop.f32.mrf.mxu0
      %681 = vmatprep.mubr.f32.mxu0 0.0
      %682 = vmatmul.mubr.f32.gmra.mxu0 %v490
      %v683 = vpop.f32.mrf.mxu0
      %v684 = vadd.f32 0.0, %v683
      %v685 = vpop.f32.mrf.mxu0
      %686 = vmatprep.mubr.f32.mxu0 0.0
      %687 = vmatmul.mubr.f32.gmra.mxu0 %v493
      %v688 = vpop.f32.mrf.mxu0
      %v689 = vadd.f32 0.0, %v688
      %v690 = vpop.f32.mrf.mxu0
      %691 = vmatprep.mubr.f32.mxu0 0.0
      %692 = vmatmul.mubr.f32.gmra.mxu0 %v496
      %v693 = vpop.f32.mrf.mxu0
      %v694 = vadd.f32 0.0, %v693
      %v695 = vpop.f32.mrf.mxu0
      %696 = vmatprep.mubr.f32.mxu0 0.0
      %697 = vmatmul.mubr.f32.gmra.mxu0 %v499
      %v698 = vpop.f32.mrf.mxu0
      %v699 = vadd.f32 0.0, %v698
      %v700 = vpop.f32.mrf.mxu0
      %701 = vmatprep.mubr.f32.mxu0 0.0
      %702 = vmatmul.mubr.f32.gmra.mxu0 %v502
      %v703 = vpop.f32.mrf.mxu0
      %v704 = vadd.f32 0.0, %v703
      %v705 = vpop.f32.mrf.mxu0
      %706 = vmatprep.mubr.f32.mxu0 0.0
      %707 = vmatmul.mubr.f32.gmra.mxu0 %v505
      %v708 = vpop.f32.mrf.mxu0
      %v709 = vadd.f32 0.0, %v708
      %v710 = vpop.f32.mrf.mxu0
      %711 = vmatprep.mubr.f32.mxu0 0.0
      %712 = vmatmul.mubr.f32.gmra.mxu0 %v508
      %v713 = vpop.f32.mrf.mxu0
      %v714 = vadd.f32 0.0, %v713
      %v715 = vpop.f32.mrf.mxu0
      %716 = vmatprep.mubr.f32.mxu0 0.0
      %717 = vmatmul.mubr.f32.gmra.mxu0 %v511
      %v718 = vpop.f32.mrf.mxu0
      %v719 = vadd.f32 0.0, %v718
      %v720 = vpop.f32.mrf.mxu0
      %721 = vmatprep.mubr.f32.mxu0 0.0
      %722 = vmatmul.mubr.f32.gmra.mxu0 %v514
      %v723 = vpop.f32.mrf.mxu0
      %v724 = vadd.f32 0.0, %v723
      %v725 = vpop.f32.mrf.mxu0
      %726 = vmatprep.mubr.f32.mxu0 0.0
      %727 = vmatmul.mubr.f32.gmra.mxu0 %v517
      %v728 = vpop.f32.mrf.mxu0
      %v729 = vadd.f32 0.0, %v728
      %v730 = vpop.f32.mrf.mxu0
      %731 = vmatprep.mubr.f32.mxu0 0.0
      %732 = vmatmul.mubr.f32.gmra.mxu0 %v520
      %v733 = vpop.f32.mrf.mxu0
      %v734 = vadd.f32 0.0, %v733
      %v735 = vpop.f32.mrf.mxu0
      %736 = vmatprep.mubr.f32.mxu0 0.0
      %737 = vmatmul.mubr.f32.gmra.mxu0 %v523
      %v738 = vpop.f32.mrf.mxu0
      %v739 = vadd.f32 0.0, %v738
      %v740 = vpop.f32.mrf.mxu0
      %741 = vmatprep.mubr.f32.mxu0 0.0
      %742 = vmatmul.mubr.f32.gmra.mxu0 %v526
      %v743 = vpop.f32.mrf.mxu0
      %v744 = vadd.f32 0.0, %v743
      %v745 = vpop.f32.mrf.mxu0
      %746 = vmatprep.mubr.f32.mxu0 0.0
      %747 = vmatmul.mubr.f32.gmra.mxu0 %v529
      %v748 = vpop.f32.mrf.mxu0
      %v749 = vadd.f32 0.0, %v748
      %v750 = vpop.f32.mrf.mxu0
      %751 = vmatprep.mubr.f32.mxu0 0.0
      %752 = vmatmul.mubr.f32.gmra.mxu0 %v532
      %v753 = vpop.f32.mrf.mxu0
      %v754 = vadd.f32 0.0, %v753
      %v755 = vpop.f32.mrf.mxu0
      %756 = vmatprep.mubr.f32.mxu0 0.0
      %757 = vmatmul.mubr.f32.gmra.mxu0 %v535
      %v758 = vpop.f32.mrf.mxu0
      %v759 = vadd.f32 0.0, %v758
      %v760 = vpop.f32.mrf.mxu0
      %761 = vdwg.mxu0
      %762 = vrot.lane.b32.xlu0 %v372, 96
      %v763 = vpop.permute.xlu0 %762
      %764 = vrot.lane.b32.xlu0 %v373, 96
      %v765 = vpop.permute.xlu0 %764
      %766 = vrot.lane.b32.xlu0 %v374, 96
      %v767 = vpop.permute.xlu0 %766
      %768 = vrot.lane.b32.xlu0 %v375, 96
      %v769 = vpop.permute.xlu0 %768
      %770 = vrot.lane.b32.xlu0 %v376, 96
      %v771 = vpop.permute.xlu0 %770
      %772 = vrot.lane.b32.xlu0 %v377, 96
      %v773 = vpop.permute.xlu0 %772
      %774 = vrot.lane.b32.xlu0 %v378, 96
      %v775 = vpop.permute.xlu0 %774
      %776 = vrot.lane.b32.xlu0 %v379, 96
      %v777 = vpop.permute.xlu0 %776
      %778 = vrot.lane.b32.xlu0 %v380, 96
      %v779 = vpop.permute.xlu0 %778
      %780 = vrot.lane.b32.xlu0 %v381, 96
      %v781 = vpop.permute.xlu0 %780
      %782 = vrot.lane.b32.xlu0 %v382, 96
      %v783 = vpop.permute.xlu0 %782
      %784 = vrot.lane.b32.xlu0 %v383, 96
      %v785 = vpop.permute.xlu0 %784
      %786 = vrot.lane.b32.xlu0 %v384, 96
      %v787 = vpop.permute.xlu0 %786
      %788 = vrot.lane.b32.xlu0 %v385, 96
      %v789 = vpop.permute.xlu0 %788
      %790 = vrot.lane.b32.xlu0 %v386, 96
      %v791 = vpop.permute.xlu0 %790
      %792 = vrot.lane.b32.xlu0 %v387, 96
      %v793 = vpop.permute.xlu0 %792
      %794 = vrot.lane.b32.xlu0 %v388, 96
      %v795 = vpop.permute.xlu0 %794
      %796 = vrot.lane.b32.xlu0 %v389, 96
      %v797 = vpop.permute.xlu0 %796
      %798 = vrot.lane.b32.xlu0 %v390, 96
      %v799 = vpop.permute.xlu0 %798
      %800 = vrot.lane.b32.xlu0 %v391, 96
      %v801 = vpop.permute.xlu0 %800
      %802 = vrot.lane.b32.xlu0 %v392, 96
      %v803 = vpop.permute.xlu0 %802
      %804 = vrot.lane.b32.xlu0 %v393, 96
      %v805 = vpop.permute.xlu0 %804
      %806 = vrot.lane.b32.xlu0 %v394, 96
      %v807 = vpop.permute.xlu0 %806
      %808 = vrot.lane.b32.xlu0 %v395, 96
      %v809 = vpop.permute.xlu0 %808
      %810 = vrot.lane.b32.xlu0 %v396, 96
      %v811 = vpop.permute.xlu0 %810
      %812 = vrot.lane.b32.xlu0 %v397, 96
      %v813 = vpop.permute.xlu0 %812
      %814 = vrot.lane.b32.xlu0 %v398, 96
      %v815 = vpop.permute.xlu0 %814
      %816 = vrot.lane.b32.xlu0 %v399, 96
      %v817 = vpop.permute.xlu0 %816
      %818 = vrot.lane.b32.xlu0 %v400, 96
      %v819 = vpop.permute.xlu0 %818
      %820 = vrot.lane.b32.xlu0 %v401, 96
      %v821 = vpop.permute.xlu0 %820
      %822 = vrot.lane.b32.xlu0 %v402, 96
      %v823 = vpop.permute.xlu0 %822
      %824 = vrot.lane.b32.xlu0 %v403, 96
      %v825 = vpop.permute.xlu0 %824
      %v826 = vsel %vm440, %v763, 0
      %v828 = vsel %vm440, %v765, 0
      %v830 = vsel %vm440, %v767, 0
      %v832 = vsel %vm440, %v769, 0
      %v834 = vsel %vm440, %v771, 0
      %v836 = vsel %vm440, %v773, 0
      %v838 = vsel %vm440, %v775, 0
      %v840 = vsel %vm440, %v777, 0
      %v842 = vsel %vm440, %v779, 0
      %v844 = vsel %vm440, %v781, 0
      %v846 = vsel %vm440, %v783, 0
      %v848 = vsel %vm440, %v785, 0
      %v850 = vsel %vm440, %v787, 0
      %v852 = vsel %vm440, %v789, 0
      %v854 = vsel %vm440, %v791, 0
      %v856 = vsel %vm440, %v793, 0
      %v858 = vsel %vm440, %v795, 0
      %v860 = vsel %vm440, %v797, 0
      %v862 = vsel %vm440, %v799, 0
      %v864 = vsel %vm440, %v801, 0
      %v866 = vsel %vm440, %v803, 0
      %v868 = vsel %vm440, %v805, 0
      %v870 = vsel %vm440, %v807, 0
      %v872 = vsel %vm440, %v809, 0
      %v874 = vsel %vm440, %v811, 0
      %v876 = vsel %vm440, %v813, 0
      %v878 = vsel %vm440, %v815, 0
      %v880 = vsel %vm440, %v817, 0
      %v882 = vsel %vm440, %v819, 0
      %v884 = vsel %vm440, %v821, 0
      %v886 = vsel %vm440, %v823, 0
      %v888 = vsel %vm440, %v825, 0
      %890 = vmatprep.subr.mxu0 0.0
      %891 = vmatpush1.msra.mxu0 0.0
      %892 = vmatprep.subr.mxu0 0.0
      %893 = vmatpush1.msra.mxu0 0.0
      %894 = vmatprep.subr.mxu0 0.0
      %895 = vmatpush1.msra.mxu0 0.0
      %896 = vmatprep.subr.mxu0 0.0
      %897 = vmatpush1.msra.mxu0 0.0
      %898 = vmatprep.subr.mxu0 0.0
      %899 = vmatpush1.msra.mxu0 0.0
      %900 = vmatprep.subr.mxu0 0.0
      %901 = vmatpush1.msra.mxu0 0.0
      %902 = vmatprep.subr.mxu0 0.0
      %903 = vmatpush1.msra.mxu0 0.0
      %904 = vmatprep.subr.mxu0 0.0
      %905 = vmatpush1.msra.mxu0 0.0
      %906 = vmatprep.subr.mxu0 0.0
      %907 = vmatpush1.msra.mxu0 0.0
      %908 = vmatprep.subr.mxu0 0.0
      %909 = vmatpush1.msra.mxu0 0.0
      %910 = vmatprep.subr.mxu0 0.0
      %911 = vmatpush1.msra.mxu0 0.0
      %912 = vmatprep.subr.mxu0 0.0
      %913 = vmatpush1.msra.mxu0 0.0
      %914 = vmatprep.subr.mxu0 0.0
      %915 = vmatpush1.msra.mxu0 %v439
      %916 = vmatprep.subr.mxu0 0.0
      %917 = vmatpush1.msra.mxu0 %v438
      %918 = vmatprep.subr.mxu0 0.0
      %919 = vmatpush1.msra.mxu0 %v437
      %920 = vmatprep.subr.mxu0 0.0
      %921 = vmatpush1.msra.mxu0 %v436
      %922 = vmatprep.subr.mxu0 0.0
      %923 = vmatpush2.msra.mxu0 0.0
      %924 = vmatprep.subr.mxu0 0.0
      %925 = vmatpush2.msra.mxu0 0.0
      %926 = vmatprep.subr.mxu0 0.0
      %927 = vmatpush2.msra.mxu0 0.0
      %928 = vmatprep.subr.mxu0 0.0
      %929 = vmatpush2.msra.mxu0 0.0
      %930 = vmatprep.subr.mxu0 0.0
      %931 = vmatpush2.msra.mxu0 0.0
      %932 = vmatprep.subr.mxu0 0.0
      %933 = vmatpush2.msra.mxu0 0.0
      %934 = vmatprep.subr.mxu0 0.0
      %935 = vmatpush2.msra.mxu0 0.0
      %936 = vmatprep.subr.mxu0 0.0
      %937 = vmatpush2.msra.mxu0 0.0
      %938 = vmatprep.subr.mxu0 0.0
      %939 = vmatpush2.msra.mxu0 0.0
      %940 = vmatprep.subr.mxu0 0.0
      %941 = vmatpush2.msra.mxu0 0.0
      %942 = vmatprep.subr.mxu0 0.0
      %943 = vmatpush2.msra.mxu0 0.0
      %944 = vmatprep.subr.mxu0 0.0
      %945 = vmatpush2.msra.mxu0 0.0
      %946 = vmatprep.subr.mxu0 0.0
      %947 = vmatpush2.msra.mxu0 0.0
      %948 = vmatprep.subr.mxu0 0.0
      %949 = vmatpush2.msra.mxu0 0.0
      %950 = vmatprep.subr.mxu0 0.0
      %951 = vmatpush2.msra.mxu0 0.0
      %952 = vmatprep.subr.mxu0 0.0
      %953 = vmatpush2.msra.mxu0 0.0
      %954 = vmatprep.mubr.f32.mxu0 0.0
      %955 = vmatmul.mubr.f32.gmra.mxu0 %v826
      %v956 = vpop.f32.mrf.mxu0
      %v957 = vadd.f32 0.0, %v956
      %v958 = vpop.f32.mrf.mxu0
      %959 = vmatprep.mubr.f32.mxu0 0.0
      %960 = vmatmul.mubr.f32.gmra.mxu0 %v828
      %v961 = vpop.f32.mrf.mxu0
      %v962 = vadd.f32 0.0, %v961
      %v963 = vpop.f32.mrf.mxu0
      %964 = vmatprep.mubr.f32.mxu0 0.0
      %965 = vmatmul.mubr.f32.gmra.mxu0 %v830
      %v966 = vpop.f32.mrf.mxu0
      %v967 = vadd.f32 0.0, %v966
      %v968 = vpop.f32.mrf.mxu0
      %969 = vmatprep.mubr.f32.mxu0 0.0
      %970 = vmatmul.mubr.f32.gmra.mxu0 %v832
      %v971 = vpop.f32.mrf.mxu0
      %v972 = vadd.f32 0.0, %v971
      %v973 = vpop.f32.mrf.mxu0
      %974 = vmatprep.mubr.f32.mxu0 0.0
      %975 = vmatmul.mubr.f32.gmra.mxu0 %v834
      %v976 = vpop.f32.mrf.mxu0
      %v977 = vadd.f32 0.0, %v976
      %v978 = vpop.f32.mrf.mxu0
      %979 = vmatprep.mubr.f32.mxu0 0.0
      %980 = vmatmul.mubr.f32.gmra.mxu0 %v836
      %v981 = vpop.f32.mrf.mxu0
      %v982 = vadd.f32 0.0, %v981
      %v983 = vpop.f32.mrf.mxu0
      %984 = vmatprep.mubr.f32.mxu0 0.0
      %985 = vmatmul.mubr.f32.gmra.mxu0 %v838
      %v986 = vpop.f32.mrf.mxu0
      %v987 = vadd.f32 0.0, %v986
      %v988 = vpop.f32.mrf.mxu0
      %989 = vmatprep.mubr.f32.mxu0 0.0
      %990 = vmatmul.mubr.f32.gmra.mxu0 %v840
      %v991 = vpop.f32.mrf.mxu0
      %v992 = vadd.f32 0.0, %v991
      %v993 = vpop.f32.mrf.mxu0
      %994 = vmatprep.mubr.f32.mxu0 0.0
      %995 = vmatmul.mubr.f32.gmra.mxu0 %v842
      %v996 = vpop.f32.mrf.mxu0
      %v997 = vadd.f32 0.0, %v996
      %v998 = vpop.f32.mrf.mxu0
      %999 = vmatprep.mubr.f32.mxu0 0.0
      %1000 = vmatmul.mubr.f32.gmra.mxu0 %v844
      %v1001 = vpop.f32.mrf.mxu0
      %v1002 = vadd.f32 0.0, %v1001
      %v1003 = vpop.f32.mrf.mxu0
      %1004 = vmatprep.mubr.f32.mxu0 0.0
      %1005 = vmatmul.mubr.f32.gmra.mxu0 %v846
      %v1006 = vpop.f32.mrf.mxu0
      %v1007 = vadd.f32 0.0, %v1006
      %v1008 = vpop.f32.mrf.mxu0
      %1009 = vmatprep.mubr.f32.mxu0 0.0
      %1010 = vmatmul.mubr.f32.gmra.mxu0 %v848
      %v1011 = vpop.f32.mrf.mxu0
      %v1012 = vadd.f32 0.0, %v1011
      %v1013 = vpop.f32.mrf.mxu0
      %1014 = vmatprep.mubr.f32.mxu0 0.0
      %1015 = vmatmul.mubr.f32.gmra.mxu0 %v850
      %v1016 = vpop.f32.mrf.mxu0
      %v1017 = vadd.f32 0.0, %v1016
      %v1018 = vpop.f32.mrf.mxu0
      %1019 = vmatprep.mubr.f32.mxu0 0.0
      %1020 = vmatmul.mubr.f32.gmra.mxu0 %v852
      %v1021 = vpop.f32.mrf.mxu0
      %v1022 = vadd.f32 0.0, %v1021
      %v1023 = vpop.f32.mrf.mxu0
      %1024 = vmatprep.mubr.f32.mxu0 0.0
      %1025 = vmatmul.mubr.f32.gmra.mxu0 %v854
      %v1026 = vpop.f32.mrf.mxu0
      %v1027 = vadd.f32 0.0, %v1026
      %v1028 = vpop.f32.mrf.mxu0
      %1029 = vmatprep.mubr.f32.mxu0 0.0
      %1030 = vmatmul.mubr.f32.gmra.mxu0 %v856
      %v1031 = vpop.f32.mrf.mxu0
      %v1032 = vadd.f32 0.0, %v1031
      %v1033 = vpop.f32.mrf.mxu0
      %1034 = vmatprep.mubr.f32.mxu0 0.0
      %1035 = vmatmul.mubr.f32.gmra.mxu0 %v858
      %v1036 = vpop.f32.mrf.mxu0
      %v1037 = vadd.f32 0.0, %v1036
      %v1038 = vpop.f32.mrf.mxu0
      %1039 = vmatprep.mubr.f32.mxu0 0.0
      %1040 = vmatmul.mubr.f32.gmra.mxu0 %v860
      %v1041 = vpop.f32.mrf.mxu0
      %v1042 = vadd.f32 0.0, %v1041
      %v1043 = vpop.f32.mrf.mxu0
      %1044 = vmatprep.mubr.f32.mxu0 0.0
      %1045 = vmatmul.mubr.f32.gmra.mxu0 %v862
      %v1046 = vpop.f32.mrf.mxu0
      %v1047 = vadd.f32 0.0, %v1046
      %v1048 = vpop.f32.mrf.mxu0
      %1049 = vmatprep.mubr.f32.mxu0 0.0
      %1050 = vmatmul.mubr.f32.gmra.mxu0 %v864
      %v1051 = vpop.f32.mrf.mxu0
      %v1052 = vadd.f32 0.0, %v1051
      %v1053 = vpop.f32.mrf.mxu0
      %1054 = vmatprep.mubr.f32.mxu0 0.0
      %1055 = vmatmul.mubr.f32.gmra.mxu0 %v866
      %v1056 = vpop.f32.mrf.mxu0
      %v1057 = vadd.f32 0.0, %v1056
      %v1058 = vpop.f32.mrf.mxu0
      %1059 = vmatprep.mubr.f32.mxu0 0.0
      %1060 = vmatmul.mubr.f32.gmra.mxu0 %v868
      %v1061 = vpop.f32.mrf.mxu0
      %v1062 = vadd.f32 0.0, %v1061
      %v1063 = vpop.f32.mrf.mxu0
      %1064 = vmatprep.mubr.f32.mxu0 0.0
      %1065 = vmatmul.mubr.f32.gmra.mxu0 %v870
      %v1066 = vpop.f32.mrf.mxu0
      %v1067 = vadd.f32 0.0, %v1066
      %v1068 = vpop.f32.mrf.mxu0
      %1069 = vmatprep.mubr.f32.mxu0 0.0
      %1070 = vmatmul.mubr.f32.gmra.mxu0 %v872
      %v1071 = vpop.f32.mrf.mxu0
      %v1072 = vadd.f32 0.0, %v1071
      %v1073 = vpop.f32.mrf.mxu0
      %1074 = vmatprep.mubr.f32.mxu0 0.0
      %1075 = vmatmul.mubr.f32.gmra.mxu0 %v874
      %v1076 = vpop.f32.mrf.mxu0
      %v1077 = vadd.f32 0.0, %v1076
      %v1078 = vpop.f32.mrf.mxu0
      %1079 = vmatprep.mubr.f32.mxu0 0.0
      %1080 = vmatmul.mubr.f32.gmra.mxu0 %v876
      %v1081 = vpop.f32.mrf.mxu0
      %v1082 = vadd.f32 0.0, %v1081
      %v1083 = vpop.f32.mrf.mxu0
      %1084 = vmatprep.mubr.f32.mxu0 0.0
      %1085 = vmatmul.mubr.f32.gmra.mxu0 %v878
      %v1086 = vpop.f32.mrf.mxu0
      %v1087 = vadd.f32 0.0, %v1086
      %v1088 = vpop.f32.mrf.mxu0
      %1089 = vmatprep.mubr.f32.mxu0 0.0
      %1090 = vmatmul.mubr.f32.gmra.mxu0 %v880
      %v1091 = vpop.f32.mrf.mxu0
      %v1092 = vadd.f32 0.0, %v1091
      %v1093 = vpop.f32.mrf.mxu0
      %1094 = vmatprep.mubr.f32.mxu0 0.0
      %1095 = vmatmul.mubr.f32.gmra.mxu0 %v882
      %v1096 = vpop.f32.mrf.mxu0
      %v1097 = vadd.f32 0.0, %v1096
      %v1098 = vpop.f32.mrf.mxu0
      %1099 = vmatprep.mubr.f32.mxu0 0.0
      %1100 = vmatmul.mubr.f32.gmra.mxu0 %v884
      %v1101 = vpop.f32.mrf.mxu0
      %v1102 = vadd.f32 0.0, %v1101
      %v1103 = vpop.f32.mrf.mxu0
      %1104 = vmatprep.mubr.f32.mxu0 0.0
      %1105 = vmatmul.mubr.f32.gmra.mxu0 %v886
      %v1106 = vpop.f32.mrf.mxu0
      %v1107 = vadd.f32 0.0, %v1106
      %v1108 = vpop.f32.mrf.mxu0
      %1109 = vmatprep.mubr.f32.mxu0 0.0
      %1110 = vmatmul.mubr.f32.gmra.mxu0 %v888
      %v1111 = vpop.f32.mrf.mxu0
      %v1112 = vadd.f32 0.0, %v1111
      %v1113 = vpop.f32.mrf.mxu0
      %1114 = vdwg.mxu0
      %v1115 = vmul.f32 %v604, %v604
      %v1116 = vmul.f32 %v609, %v609
      %v1117 = vmul.f32 %v614, %v614
      %v1118 = vmul.f32 %v619, %v619
      %v1119 = vmul.f32 %v624, %v624
      %v1120 = vmul.f32 %v629, %v629
      %v1121 = vmul.f32 %v634, %v634
      %v1122 = vmul.f32 %v639, %v639
      %v1123 = vmul.f32 %v644, %v644
      %v1124 = vmul.f32 %v649, %v649
      %v1125 = vmul.f32 %v654, %v654
      %v1126 = vmul.f32 %v659, %v659
      %v1127 = vmul.f32 %v664, %v664
      %v1128 = vmul.f32 %v669, %v669
      %v1129 = vmul.f32 %v674, %v674
      %v1130 = vmul.f32 %v679, %v679
      %v1131 = vmul.f32 %v684, %v684
      %v1132 = vmul.f32 %v689, %v689
      %v1133 = vmul.f32 %v694, %v694
      %v1134 = vmul.f32 %v699, %v699
      %v1135 = vmul.f32 %v704, %v704
      %v1136 = vmul.f32 %v709, %v709
      %v1137 = vmul.f32 %v714, %v714
      %v1138 = vmul.f32 %v719, %v719
      %v1139 = vmul.f32 %v724, %v724
      %v1140 = vmul.f32 %v729, %v729
      %v1141 = vmul.f32 %v734, %v734
      %v1142 = vmul.f32 %v739, %v739
      %v1143 = vmul.f32 %v744, %v744
      %v1144 = vmul.f32 %v749, %v749
      %v1145 = vmul.f32 %v754, %v754
      %v1146 = vmul.f32 %v759, %v759
      %v1147 = vmul.f32 %v957, %v957
      %v1148 = vmul.f32 %v962, %v962
      %v1149 = vmul.f32 %v967, %v967
      %v1150 = vmul.f32 %v972, %v972
      %v1151 = vmul.f32 %v977, %v977
      %v1152 = vmul.f32 %v982, %v982
      %v1153 = vmul.f32 %v987, %v987
      %v1154 = vmul.f32 %v992, %v992
      %v1155 = vmul.f32 %v997, %v997
      %v1156 = vmul.f32 %v1002, %v1002
      %v1157 = vmul.f32 %v1007, %v1007
      %v1158 = vmul.f32 %v1012, %v1012
      %v1159 = vmul.f32 %v1017, %v1017
      %v1160 = vmul.f32 %v1022, %v1022
      %v1161 = vmul.f32 %v1027, %v1027
      %v1162 = vmul.f32 %v1032, %v1032
      %v1163 = vmul.f32 %v1037, %v1037
      %v1164 = vmul.f32 %v1042, %v1042
      %v1165 = vmul.f32 %v1047, %v1047
      %v1166 = vmul.f32 %v1052, %v1052
      %v1167 = vmul.f32 %v1057, %v1057
      %v1168 = vmul.f32 %v1062, %v1062
      %v1169 = vmul.f32 %v1067, %v1067
      %v1170 = vmul.f32 %v1072, %v1072
      %v1171 = vmul.f32 %v1077, %v1077
      %v1172 = vmul.f32 %v1082, %v1082
      %v1173 = vmul.f32 %v1087, %v1087
      %v1174 = vmul.f32 %v1092, %v1092
      %v1175 = vmul.f32 %v1097, %v1097
      %v1176 = vmul.f32 %v1102, %v1102
      %v1177 = vmul.f32 %v1107, %v1107
      %v1178 = vmul.f32 %v1112, %v1112
      %v1179 = vadd.f32 %v1115, %v1147
      %v1180 = vadd.f32 %v1116, %v1148
      %v1181 = vadd.f32 %v1117, %v1149
      %v1182 = vadd.f32 %v1118, %v1150
      %v1183 = vadd.f32 %v1119, %v1151
      %v1184 = vadd.f32 %v1120, %v1152
      %v1185 = vadd.f32 %v1121, %v1153
      %v1186 = vadd.f32 %v1122, %v1154
      %v1187 = vadd.f32 %v1123, %v1155
      %v1188 = vadd.f32 %v1124, %v1156
      %v1189 = vadd.f32 %v1125, %v1157
      %v1190 = vadd.f32 %v1126, %v1158
      %v1191 = vadd.f32 %v1127, %v1159
      %v1192 = vadd.f32 %v1128, %v1160
      %v1193 = vadd.f32 %v1129, %v1161
      %v1194 = vadd.f32 %v1130, %v1162
      %v1195 = vadd.f32 %v1131, %v1163
      %v1196 = vadd.f32 %v1132, %v1164
      %v1197 = vadd.f32 %v1133, %v1165
      %v1198 = vadd.f32 %v1134, %v1166
      %v1199 = vadd.f32 %v1135, %v1167
      %v1200 = vadd.f32 %v1136, %v1168
      %v1201 = vadd.f32 %v1137, %v1169
      %v1202 = vadd.f32 %v1138, %v1170
      %v1203 = vadd.f32 %v1139, %v1171
      %v1204 = vadd.f32 %v1140, %v1172
      %v1205 = vadd.f32 %v1141, %v1173
      %v1206 = vadd.f32 %v1142, %v1174
      %v1207 = vadd.f32 %v1143, %v1175
      %v1208 = vadd.f32 %v1144, %v1176
      %v1209 = vadd.f32 %v1145, %v1177
      %v1210 = vadd.f32 %v1146, %v1178
      %v1211 = vrsqrt.pop %v1179
      %v1212 = vmul.f32 %v1179, %v1211
      %vm1213 = vcmp.eq.f32.partialorder %v1179, inf
      %v1214 = vsel %vm1213, %v1179, %v1212
      %vm1215 = vcmp.eq.f32.partialorder %v1179, 0.0
      %v1216 = vand.u32 %v1179, 2147483648
      %v1217 = vsel %vm1215, %v1216, %v1214
      %v1218 = vrsqrt.pop %v1180
      %v1219 = vmul.f32 %v1180, %v1218
      %vm1220 = vcmp.eq.f32.partialorder %v1180, inf
      %v1221 = vsel %vm1220, %v1180, %v1219
      %vm1222 = vcmp.eq.f32.partialorder %v1180, 0.0
      %v1223 = vand.u32 %v1180, 2147483648
      %v1224 = vsel %vm1222, %v1223, %v1221
      %v1225 = vrsqrt.pop %v1181
      %v1226 = vmul.f32 %v1181, %v1225
      %vm1227 = vcmp.eq.f32.partialorder %v1181, inf
      %v1228 = vsel %vm1227, %v1181, %v1226
      %vm1229 = vcmp.eq.f32.partialorder %v1181, 0.0
      %v1230 = vand.u32 %v1181, 2147483648
      %v1231 = vsel %vm1229, %v1230, %v1228
      %v1232 = vrsqrt.pop %v1182
      %v1233 = vmul.f32 %v1182, %v1232
      %vm1234 = vcmp.eq.f32.partialorder %v1182, inf
      %v1235 = vsel %vm1234, %v1182, %v1233
      %vm1236 = vcmp.eq.f32.partialorder %v1182, 0.0
      %v1237 = vand.u32 %v1182, 2147483648
      %v1238 = vsel %vm1236, %v1237, %v1235
      %v1239 = vrsqrt.pop %v1183
      %v1240 = vmul.f32 %v1183, %v1239
      %vm1241 = vcmp.eq.f32.partialorder %v1183, inf
      %v1242 = vsel %vm1241, %v1183, %v1240
      %vm1243 = vcmp.eq.f32.partialorder %v1183, 0.0
      %v1244 = vand.u32 %v1183, 2147483648
      %v1245 = vsel %vm1243, %v1244, %v1242
      %v1246 = vrsqrt.pop %v1184
      %v1247 = vmul.f32 %v1184, %v1246
      %vm1248 = vcmp.eq.f32.partialorder %v1184, inf
      %v1249 = vsel %vm1248, %v1184, %v1247
      %vm1250 = vcmp.eq.f32.partialorder %v1184, 0.0
      %v1251 = vand.u32 %v1184, 2147483648
      %v1252 = vsel %vm1250, %v1251, %v1249
      %v1253 = vrsqrt.pop %v1185
      %v1254 = vmul.f32 %v1185, %v1253
      %vm1255 = vcmp.eq.f32.partialorder %v1185, inf
      %v1256 = vsel %vm1255, %v1185, %v1254
      %vm1257 = vcmp.eq.f32.partialorder %v1185, 0.0
      %v1258 = vand.u32 %v1185, 2147483648
      %v1259 = vsel %vm1257, %v1258, %v1256
      %v1260 = vrsqrt.pop %v1186
      %v1261 = vmul.f32 %v1186, %v1260
      %vm1262 = vcmp.eq.f32.partialorder %v1186, inf
      %v1263 = vsel %vm1262, %v1186, %v1261
      %vm1264 = vcmp.eq.f32.partialorder %v1186, 0.0
      %v1265 = vand.u32 %v1186, 2147483648
      %v1266 = vsel %vm1264, %v1265, %v1263
      %v1267 = vrsqrt.pop %v1187
      %v1268 = vmul.f32 %v1187, %v1267
      %vm1269 = vcmp.eq.f32.partialorder %v1187, inf
      %v1270 = vsel %vm1269, %v1187, %v1268
      %vm1271 = vcmp.eq.f32.partialorder %v1187, 0.0
      %v1272 = vand.u32 %v1187, 2147483648
      %v1273 = vsel %vm1271, %v1272, %v1270
      %v1274 = vrsqrt.pop %v1188
      %v1275 = vmul.f32 %v1188, %v1274
      %vm1276 = vcmp.eq.f32.partialorder %v1188, inf
      %v1277 = vsel %vm1276, %v1188, %v1275
      %vm1278 = vcmp.eq.f32.partialorder %v1188, 0.0
      %v1279 = vand.u32 %v1188, 2147483648
      %v1280 = vsel %vm1278, %v1279, %v1277
      %v1281 = vrsqrt.pop %v1189
      %v1282 = vmul.f32 %v1189, %v1281
      %vm1283 = vcmp.eq.f32.partialorder %v1189, inf
      %v1284 = vsel %vm1283, %v1189, %v1282
      %vm1285 = vcmp.eq.f32.partialorder %v1189, 0.0
      %v1286 = vand.u32 %v1189, 2147483648
      %v1287 = vsel %vm1285, %v1286, %v1284
      %v1288 = vrsqrt.pop %v1190
      %v1289 = vmul.f32 %v1190, %v1288
      %vm1290 = vcmp.eq.f32.partialorder %v1190, inf
      %v1291 = vsel %vm1290, %v1190, %v1289
      %vm1292 = vcmp.eq.f32.partialorder %v1190, 0.0
      %v1293 = vand.u32 %v1190, 2147483648
      %v1294 = vsel %vm1292, %v1293, %v1291
      %v1295 = vrsqrt.pop %v1191
      %v1296 = vmul.f32 %v1191, %v1295
      %vm1297 = vcmp.eq.f32.partialorder %v1191, inf
      %v1298 = vsel %vm1297, %v1191, %v1296
      %vm1299 = vcmp.eq.f32.partialorder %v1191, 0.0
      %v1300 = vand.u32 %v1191, 2147483648
      %v1301 = vsel %vm1299, %v1300, %v1298
      %v1302 = vrsqrt.pop %v1192
      %v1303 = vmul.f32 %v1192, %v1302
      %vm1304 = vcmp.eq.f32.partialorder %v1192, inf
      %v1305 = vsel %vm1304, %v1192, %v1303
      %vm1306 = vcmp.eq.f32.partialorder %v1192, 0.0
      %v1307 = vand.u32 %v1192, 2147483648
      %v1308 = vsel %vm1306, %v1307, %v1305
      %v1309 = vrsqrt.pop %v1193
      %v1310 = vmul.f32 %v1193, %v1309
      %vm1311 = vcmp.eq.f32.partialorder %v1193, inf
      %v1312 = vsel %vm1311, %v1193, %v1310
      %vm1313 = vcmp.eq.f32.partialorder %v1193, 0.0
      %v1314 = vand.u32 %v1193, 2147483648
      %v1315 = vsel %vm1313, %v1314, %v1312
      %v1316 = vrsqrt.pop %v1194
      %v1317 = vmul.f32 %v1194, %v1316
      %vm1318 = vcmp.eq.f32.partialorder %v1194, inf
      %v1319 = vsel %vm1318, %v1194, %v1317
      %vm1320 = vcmp.eq.f32.partialorder %v1194, 0.0
      %v1321 = vand.u32 %v1194, 2147483648
      %v1322 = vsel %vm1320, %v1321, %v1319
      %v1323 = vrsqrt.pop %v1195
      %v1324 = vmul.f32 %v1195, %v1323
      %vm1325 = vcmp.eq.f32.partialorder %v1195, inf
      %v1326 = vsel %vm1325, %v1195, %v1324
      %vm1327 = vcmp.eq.f32.partialorder %v1195, 0.0
      %v1328 = vand.u32 %v1195, 2147483648
      %v1329 = vsel %vm1327, %v1328, %v1326
      %v1330 = vrsqrt.pop %v1196
      %v1331 = vmul.f32 %v1196, %v1330
      %vm1332 = vcmp.eq.f32.partialorder %v1196, inf
      %v1333 = vsel %vm1332, %v1196, %v1331
      %vm1334 = vcmp.eq.f32.partialorder %v1196, 0.0
      %v1335 = vand.u32 %v1196, 2147483648
      %v1336 = vsel %vm1334, %v1335, %v1333
      %v1337 = vrsqrt.pop %v1197
      %v1338 = vmul.f32 %v1197, %v1337
      %vm1339 = vcmp.eq.f32.partialorder %v1197, inf
      %v1340 = vsel %vm1339, %v1197, %v1338
      %vm1341 = vcmp.eq.f32.partialorder %v1197, 0.0
      %v1342 = vand.u32 %v1197, 2147483648
      %v1343 = vsel %vm1341, %v1342, %v1340
      %v1344 = vrsqrt.pop %v1198
      %v1345 = vmul.f32 %v1198, %v1344
      %vm1346 = vcmp.eq.f32.partialorder %v1198, inf
      %v1347 = vsel %vm1346, %v1198, %v1345
      %vm1348 = vcmp.eq.f32.partialorder %v1198, 0.0
      %v1349 = vand.u32 %v1198, 2147483648
      %v1350 = vsel %vm1348, %v1349, %v1347
      %v1351 = vrsqrt.pop %v1199
      %v1352 = vmul.f32 %v1199, %v1351
      %vm1353 = vcmp.eq.f32.partialorder %v1199, inf
      %v1354 = vsel %vm1353, %v1199, %v1352
      %vm1355 = vcmp.eq.f32.partialorder %v1199, 0.0
      %v1356 = vand.u32 %v1199, 2147483648
      %v1357 = vsel %vm1355, %v1356, %v1354
      %v1358 = vrsqrt.pop %v1200
      %v1359 = vmul.f32 %v1200, %v1358
      %vm1360 = vcmp.eq.f32.partialorder %v1200, inf
      %v1361 = vsel %vm1360, %v1200, %v1359
      %vm1362 = vcmp.eq.f32.partialorder %v1200, 0.0
      %v1363 = vand.u32 %v1200, 2147483648
      %v1364 = vsel %vm1362, %v1363, %v1361
      %v1365 = vrsqrt.pop %v1201
      %v1366 = vmul.f32 %v1201, %v1365
      %vm1367 = vcmp.eq.f32.partialorder %v1201, inf
      %v1368 = vsel %vm1367, %v1201, %v1366
      %vm1369 = vcmp.eq.f32.partialorder %v1201, 0.0
      %v1370 = vand.u32 %v1201, 2147483648
      %v1371 = vsel %vm1369, %v1370, %v1368
      %v1372 = vrsqrt.pop %v1202
      %v1373 = vmul.f32 %v1202, %v1372
      %vm1374 = vcmp.eq.f32.partialorder %v1202, inf
      %v1375 = vsel %vm1374, %v1202, %v1373
      %vm1376 = vcmp.eq.f32.partialorder %v1202, 0.0
      %v1377 = vand.u32 %v1202, 2147483648
      %v1378 = vsel %vm1376, %v1377, %v1375
      %v1379 = vrsqrt.pop %v1203
      %v1380 = vmul.f32 %v1203, %v1379
      %vm1381 = vcmp.eq.f32.partialorder %v1203, inf
      %v1382 = vsel %vm1381, %v1203, %v1380
      %vm1383 = vcmp.eq.f32.partialorder %v1203, 0.0
      %v1384 = vand.u32 %v1203, 2147483648
      %v1385 = vsel %vm1383, %v1384, %v1382
      %v1386 = vrsqrt.pop %v1204
      %v1387 = vmul.f32 %v1204, %v1386
      %vm1388 = vcmp.eq.f32.partialorder %v1204, inf
      %v1389 = vsel %vm1388, %v1204, %v1387
      %vm1390 = vcmp.eq.f32.partialorder %v1204, 0.0
      %v1391 = vand.u32 %v1204, 2147483648
      %v1392 = vsel %vm1390, %v1391, %v1389
      %v1393 = vrsqrt.pop %v1205
      %v1394 = vmul.f32 %v1205, %v1393
      %vm1395 = vcmp.eq.f32.partialorder %v1205, inf
      %v1396 = vsel %vm1395, %v1205, %v1394
      %vm1397 = vcmp.eq.f32.partialorder %v1205, 0.0
      %v1398 = vand.u32 %v1205, 2147483648
      %v1399 = vsel %vm1397, %v1398, %v1396
      %v1400 = vrsqrt.pop %v1206
      %v1401 = vmul.f32 %v1206, %v1400
      %vm1402 = vcmp.eq.f32.partialorder %v1206, inf
      %v1403 = vsel %vm1402, %v1206, %v1401
      %vm1404 = vcmp.eq.f32.partialorder %v1206, 0.0
      %v1405 = vand.u32 %v1206, 2147483648
      %v1406 = vsel %vm1404, %v1405, %v1403
      %v1407 = vrsqrt.pop %v1207
      %v1408 = vmul.f32 %v1207, %v1407
      %vm1409 = vcmp.eq.f32.partialorder %v1207, inf
      %v1410 = vsel %vm1409, %v1207, %v1408
      %vm1411 = vcmp.eq.f32.partialorder %v1207, 0.0
      %v1412 = vand.u32 %v1207, 2147483648
      %v1413 = vsel %vm1411, %v1412, %v1410
      %v1414 = vrsqrt.pop %v1208
      %v1415 = vmul.f32 %v1208, %v1414
      %vm1416 = vcmp.eq.f32.partialorder %v1208, inf
      %v1417 = vsel %vm1416, %v1208, %v1415
      %vm1418 = vcmp.eq.f32.partialorder %v1208, 0.0
      %v1419 = vand.u32 %v1208, 2147483648
      %v1420 = vsel %vm1418, %v1419, %v1417
      %v1421 = vrsqrt.pop %v1209
      %v1422 = vmul.f32 %v1209, %v1421
      %vm1423 = vcmp.eq.f32.partialorder %v1209, inf
      %v1424 = vsel %vm1423, %v1209, %v1422
      %vm1425 = vcmp.eq.f32.partialorder %v1209, 0.0
      %v1426 = vand.u32 %v1209, 2147483648
      %v1427 = vsel %vm1425, %v1426, %v1424
      %v1428 = vrsqrt.pop %v1210
      %v1429 = vmul.f32 %v1210, %v1428
      %vm1430 = vcmp.eq.f32.partialorder %v1210, inf
      %v1431 = vsel %vm1430, %v1210, %v1429
      %vm1432 = vcmp.eq.f32.partialorder %v1210, 0.0
      %v1433 = vand.u32 %v1210, 2147483648
      %v1434 = vsel %vm1432, %v1433, %v1431
      %v1435 = vadd.f32 %v1217, 1e-08
      %v1436 = vadd.f32 %v1224, 1e-08
      %v1437 = vadd.f32 %v1231, 1e-08
      %v1438 = vadd.f32 %v1238, 1e-08
      %v1439 = vadd.f32 %v1245, 1e-08
      %v1440 = vadd.f32 %v1252, 1e-08
      %v1441 = vadd.f32 %v1259, 1e-08
      %v1442 = vadd.f32 %v1266, 1e-08
      %v1443 = vadd.f32 %v1273, 1e-08
      %v1444 = vadd.f32 %v1280, 1e-08
      %v1445 = vadd.f32 %v1287, 1e-08
      %v1446 = vadd.f32 %v1294, 1e-08
      %v1447 = vadd.f32 %v1301, 1e-08
      %v1448 = vadd.f32 %v1308, 1e-08
      %v1449 = vadd.f32 %v1315, 1e-08
      %v1450 = vadd.f32 %v1322, 1e-08
      %v1451 = vadd.f32 %v1329, 1e-08
      %v1452 = vadd.f32 %v1336, 1e-08
      %v1453 = vadd.f32 %v1343, 1e-08
      %v1454 = vadd.f32 %v1350, 1e-08
      %v1455 = vadd.f32 %v1357, 1e-08
      %v1456 = vadd.f32 %v1364, 1e-08
      %v1457 = vadd.f32 %v1371, 1e-08
      %v1458 = vadd.f32 %v1378, 1e-08
      %v1459 = vadd.f32 %v1385, 1e-08
      %v1460 = vadd.f32 %v1392, 1e-08
      %v1461 = vadd.f32 %v1399, 1e-08
      %v1462 = vadd.f32 %v1406, 1e-08
      %v1463 = vadd.f32 %v1413, 1e-08
      %v1464 = vadd.f32 %v1420, 1e-08
      %v1465 = vadd.f32 %v1427, 1e-08
      %v1466 = vadd.f32 %v1434, 1e-08
      %v1467 = vld [vmem:[%s3] sm:$0xff]
      %v1468 = vld [vmem:[%s3 + $0x8] sm:$0xff]
      %v1469 = vld [vmem:[%s3 + $0x10] sm:$0xff]
      %v1470 = vld [vmem:[%s3 + $0x18] sm:$0xff]
      %v1471 = vld [vmem:[%s4] sm:$0xff]
      %v1472 = vld [vmem:[%s4 + $0x8] sm:$0xff]
      %v1473 = vld [vmem:[%s4 + $0x10] sm:$0xff]
      %v1474 = vld [vmem:[%s4 + $0x18] sm:$0xff]
      %1507 = vrot.lane.b32.xlu0 %v1435, 96
      %v1508 = vpop.permute.xlu0 %1507
      %1509 = vrot.lane.b32.xlu0 %v1436, 96
      %v1510 = vpop.permute.xlu0 %1509
      %1511 = vrot.lane.b32.xlu0 %v1437, 96
      %v1512 = vpop.permute.xlu0 %1511
      %1513 = vrot.lane.b32.xlu0 %v1438, 96
      %v1514 = vpop.permute.xlu0 %1513
      %1515 = vrot.lane.b32.xlu0 %v1439, 96
      %v1516 = vpop.permute.xlu0 %1515
      %1517 = vrot.lane.b32.xlu0 %v1440, 96
      %v1518 = vpop.permute.xlu0 %1517
      %1519 = vrot.lane.b32.xlu0 %v1441, 96
      %v1520 = vpop.permute.xlu0 %1519
      %1521 = vrot.lane.b32.xlu0 %v1442, 96
      %v1522 = vpop.permute.xlu0 %1521
      %1523 = vrot.lane.b32.xlu0 %v1443, 96
      %v1524 = vpop.permute.xlu0 %1523
      %1525 = vrot.lane.b32.xlu0 %v1444, 96
      %v1526 = vpop.permute.xlu0 %1525
      %1527 = vrot.lane.b32.xlu0 %v1445, 96
      %v1528 = vpop.permute.xlu0 %1527
      %1529 = vrot.lane.b32.xlu0 %v1446, 96
      %v1530 = vpop.permute.xlu0 %1529
      %1531 = vrot.lane.b32.xlu0 %v1447, 96
      %v1532 = vpop.permute.xlu0 %1531
      %1533 = vrot.lane.b32.xlu0 %v1448, 96
      %v1534 = vpop.permute.xlu0 %1533
      %1535 = vrot.lane.b32.xlu0 %v1449, 96
      %v1536 = vpop.permute.xlu0 %1535
      %1537 = vrot.lane.b32.xlu0 %v1450, 96
      %v1538 = vpop.permute.xlu0 %1537
      %1539 = vrot.lane.b32.xlu0 %v1451, 96
      %v1540 = vpop.permute.xlu0 %1539
      %1541 = vrot.lane.b32.xlu0 %v1452, 96
      %v1542 = vpop.permute.xlu0 %1541
      %1543 = vrot.lane.b32.xlu0 %v1453, 96
      %v1544 = vpop.permute.xlu0 %1543
      %1545 = vrot.lane.b32.xlu0 %v1454, 96
      %v1546 = vpop.permute.xlu0 %1545
      %1547 = vrot.lane.b32.xlu0 %v1455, 96
      %v1548 = vpop.permute.xlu0 %1547
      %1549 = vrot.lane.b32.xlu0 %v1456, 96
      %v1550 = vpop.permute.xlu0 %1549
      %1551 = vrot.lane.b32.xlu0 %v1457, 96
      %v1552 = vpop.permute.xlu0 %1551
      %1553 = vrot.lane.b32.xlu0 %v1458, 96
      %v1554 = vpop.permute.xlu0 %1553
      %1555 = vrot.lane.b32.xlu0 %v1459, 96
      %v1556 = vpop.permute.xlu0 %1555
      %1557 = vrot.lane.b32.xlu0 %v1460, 96
      %v1558 = vpop.permute.xlu0 %1557
      %1559 = vrot.lane.b32.xlu0 %v1461, 96
      %v1560 = vpop.permute.xlu0 %1559
      %1561 = vrot.lane.b32.xlu0 %v1462, 96
      %v1562 = vpop.permute.xlu0 %1561
      %1563 = vrot.lane.b32.xlu0 %v1463, 96
      %v1564 = vpop.permute.xlu0 %1563
      %1565 = vrot.lane.b32.xlu0 %v1464, 96
      %v1566 = vpop.permute.xlu0 %1565
      %1567 = vrot.lane.b32.xlu0 %v1465, 96
      %v1568 = vpop.permute.xlu0 %1567
      %1569 = vrot.lane.b32.xlu0 %v1466, 96
      %v1570 = vpop.permute.xlu0 %1569
      %v1571 = vsel %vm440, %v1508, 0
      %v1573 = vsel %vm440, %v1510, 0
      %v1575 = vsel %vm440, %v1512, 0
      %v1577 = vsel %vm440, %v1514, 0
      %v1579 = vsel %vm440, %v1516, 0
      %v1581 = vsel %vm440, %v1518, 0
      %v1583 = vsel %vm440, %v1520, 0
      %v1585 = vsel %vm440, %v1522, 0
      %v1587 = vsel %vm440, %v1524, 0
      %v1589 = vsel %vm440, %v1526, 0
      %v1591 = vsel %vm440, %v1528, 0
      %v1593 = vsel %vm440, %v1530, 0
      %v1595 = vsel %vm440, %v1532, 0
      %v1597 = vsel %vm440, %v1534, 0
      %v1599 = vsel %vm440, %v1536, 0
      %v1601 = vsel %vm440, %v1538, 0
      %v1603 = vsel %vm440, %v1540, 0
      %v1605 = vsel %vm440, %v1542, 0
      %v1607 = vsel %vm440, %v1544, 0
      %v1609 = vsel %vm440, %v1546, 0
      %v1611 = vsel %vm440, %v1548, 0
      %v1613 = vsel %vm440, %v1550, 0
      %v1615 = vsel %vm440, %v1552, 0
      %v1617 = vsel %vm440, %v1554, 0
      %v1619 = vsel %vm440, %v1556, 0
      %v1621 = vsel %vm440, %v1558, 0
      %v1623 = vsel %vm440, %v1560, 0
      %v1625 = vsel %vm440, %v1562, 0
      %v1627 = vsel %vm440, %v1564, 0
      %v1629 = vsel %vm440, %v1566, 0
      %v1631 = vsel %vm440, %v1568, 0
      %v1633 = vsel %vm440, %v1570, 0
      %1635 = vmatprep.subr.mxu0 0.0
      %1636 = vmatpush1.msra.mxu0 0.0
      %1637 = vmatprep.subr.mxu0 0.0
      %1638 = vmatpush1.msra.mxu0 0.0
      %1639 = vmatprep.subr.mxu0 0.0
      %1640 = vmatpush1.msra.mxu0 0.0
      %1641 = vmatprep.subr.mxu0 0.0
      %1642 = vmatpush1.msra.mxu0 0.0
      %1643 = vmatprep.subr.mxu0 0.0
      %1644 = vmatpush1.msra.mxu0 0.0
      %1645 = vmatprep.subr.mxu0 0.0
      %1646 = vmatpush1.msra.mxu0 0.0
      %1647 = vmatprep.subr.mxu0 0.0
      %1648 = vmatpush1.msra.mxu0 0.0
      %1649 = vmatprep.subr.mxu0 0.0
      %1650 = vmatpush1.msra.mxu0 0.0
      %1651 = vmatprep.subr.mxu0 0.0
      %1652 = vmatpush1.msra.mxu0 0.0
      %1653 = vmatprep.subr.mxu0 0.0
      %1654 = vmatpush1.msra.mxu0 0.0
      %1655 = vmatprep.subr.mxu0 0.0
      %1656 = vmatpush1.msra.mxu0 0.0
      %1657 = vmatprep.subr.mxu0 0.0
      %1658 = vmatpush1.msra.mxu0 0.0
      %1659 = vmatprep.subr.mxu0 0.0
      %1660 = vmatpush1.msra.mxu0 %v1474
      %1661 = vmatprep.subr.mxu0 0.0
      %1662 = vmatpush1.msra.mxu0 %v1473
      %1663 = vmatprep.subr.mxu0 0.0
      %1664 = vmatpush1.msra.mxu0 %v1472
      %1665 = vmatprep.subr.mxu0 0.0
      %1666 = vmatpush1.msra.mxu0 %v1471
      %1667 = vmatprep.subr.mxu0 0.0
      %1668 = vmatpush2.msra.mxu0 0.0
      %1669 = vmatprep.subr.mxu0 0.0
      %1670 = vmatpush2.msra.mxu0 0.0
      %1671 = vmatprep.subr.mxu0 0.0
      %1672 = vmatpush2.msra.mxu0 0.0
      %1673 = vmatprep.subr.mxu0 0.0
      %1674 = vmatpush2.msra.mxu0 0.0
      %1675 = vmatprep.subr.mxu0 0.0
      %1676 = vmatpush2.msra.mxu0 0.0
      %1677 = vmatprep.subr.mxu0 0.0
      %1678 = vmatpush2.msra.mxu0 0.0
      %1679 = vmatprep.subr.mxu0 0.0
      %1680 = vmatpush2.msra.mxu0 0.0
      %1681 = vmatprep.subr.mxu0 0.0
      %1682 = vmatpush2.msra.mxu0 0.0
      %1683 = vmatprep.subr.mxu0 0.0
      %1684 = vmatpush2.msra.mxu0 0.0
      %1685 = vmatprep.subr.mxu0 0.0
      %1686 = vmatpush2.msra.mxu0 0.0
      %1687 = vmatprep.subr.mxu0 0.0
      %1688 = vmatpush2.msra.mxu0 0.0
      %1689 = vmatprep.subr.mxu0 0.0
      %1690 = vmatpush2.msra.mxu0 0.0
      %1691 = vmatprep.subr.mxu0 0.0
      %1692 = vmatpush2.msra.mxu0 0.0
      %1693 = vmatprep.subr.mxu0 0.0
      %1694 = vmatpush2.msra.mxu0 0.0
      %1695 = vmatprep.subr.mxu0 0.0
      %1696 = vmatpush2.msra.mxu0 0.0
      %1697 = vmatprep.subr.mxu0 0.0
      %1698 = vmatpush2.msra.mxu0 0.0
      %1699 = vmatprep.mubr.f32.mxu0 0.0
      %1700 = vmatmul.mubr.f32.gmra.mxu0 %v1571
      %v1701 = vpop.f32.mrf.mxu0
      %v1702 = vadd.f32 0.0, %v1701
      %v1703 = vpop.f32.mrf.mxu0
      %1704 = vmatprep.mubr.f32.mxu0 0.0
      %1705 = vmatmul.mubr.f32.gmra.mxu0 %v1573
      %v1706 = vpop.f32.mrf.mxu0
      %v1707 = vadd.f32 0.0, %v1706
      %v1708 = vpop.f32.mrf.mxu0
      %1709 = vmatprep.mubr.f32.mxu0 0.0
      %1710 = vmatmul.mubr.f32.gmra.mxu0 %v1575
      %v1711 = vpop.f32.mrf.mxu0
      %v1712 = vadd.f32 0.0, %v1711
      %v1713 = vpop.f32.mrf.mxu0
      %1714 = vmatprep.mubr.f32.mxu0 0.0
      %1715 = vmatmul.mubr.f32.gmra.mxu0 %v1577
      %v1716 = vpop.f32.mrf.mxu0
      %v1717 = vadd.f32 0.0, %v1716
      %v1718 = vpop.f32.mrf.mxu0
      %1719 = vmatprep.mubr.f32.mxu0 0.0
      %1720 = vmatmul.mubr.f32.gmra.mxu0 %v1579
      %v1721 = vpop.f32.mrf.mxu0
      %v1722 = vadd.f32 0.0, %v1721
      %v1723 = vpop.f32.mrf.mxu0
      %1724 = vmatprep.mubr.f32.mxu0 0.0
      %1725 = vmatmul.mubr.f32.gmra.mxu0 %v1581
      %v1726 = vpop.f32.mrf.mxu0
      %v1727 = vadd.f32 0.0, %v1726
      %v1728 = vpop.f32.mrf.mxu0
      %1729 = vmatprep.mubr.f32.mxu0 0.0
      %1730 = vmatmul.mubr.f32.gmra.mxu0 %v1583
      %v1731 = vpop.f32.mrf.mxu0
      %v1732 = vadd.f32 0.0, %v1731
      %v1733 = vpop.f32.mrf.mxu0
      %1734 = vmatprep.mubr.f32.mxu0 0.0
      %1735 = vmatmul.mubr.f32.gmra.mxu0 %v1585
      %v1736 = vpop.f32.mrf.mxu0
      %v1737 = vadd.f32 0.0, %v1736
      %v1738 = vpop.f32.mrf.mxu0
      %1739 = vmatprep.mubr.f32.mxu0 0.0
      %1740 = vmatmul.mubr.f32.gmra.mxu0 %v1587
      %v1741 = vpop.f32.mrf.mxu0
      %v1742 = vadd.f32 0.0, %v1741
      %v1743 = vpop.f32.mrf.mxu0
      %1744 = vmatprep.mubr.f32.mxu0 0.0
      %1745 = vmatmul.mubr.f32.gmra.mxu0 %v1589
      %v1746 = vpop.f32.mrf.mxu0
      %v1747 = vadd.f32 0.0, %v1746
      %v1748 = vpop.f32.mrf.mxu0
      %1749 = vmatprep.mubr.f32.mxu0 0.0
      %1750 = vmatmul.mubr.f32.gmra.mxu0 %v1591
      %v1751 = vpop.f32.mrf.mxu0
      %v1752 = vadd.f32 0.0, %v1751
      %v1753 = vpop.f32.mrf.mxu0
      %1754 = vmatprep.mubr.f32.mxu0 0.0
      %1755 = vmatmul.mubr.f32.gmra.mxu0 %v1593
      %v1756 = vpop.f32.mrf.mxu0
      %v1757 = vadd.f32 0.0, %v1756
      %v1758 = vpop.f32.mrf.mxu0
      %1759 = vmatprep.mubr.f32.mxu0 0.0
      %1760 = vmatmul.mubr.f32.gmra.mxu0 %v1595
      %v1761 = vpop.f32.mrf.mxu0
      %v1762 = vadd.f32 0.0, %v1761
      %v1763 = vpop.f32.mrf.mxu0
      %1764 = vmatprep.mubr.f32.mxu0 0.0
      %1765 = vmatmul.mubr.f32.gmra.mxu0 %v1597
      %v1766 = vpop.f32.mrf.mxu0
      %v1767 = vadd.f32 0.0, %v1766
      %v1768 = vpop.f32.mrf.mxu0
      %1769 = vmatprep.mubr.f32.mxu0 0.0
      %1770 = vmatmul.mubr.f32.gmra.mxu0 %v1599
      %v1771 = vpop.f32.mrf.mxu0
      %v1772 = vadd.f32 0.0, %v1771
      %v1773 = vpop.f32.mrf.mxu0
      %1774 = vmatprep.mubr.f32.mxu0 0.0
      %1775 = vmatmul.mubr.f32.gmra.mxu0 %v1601
      %v1776 = vpop.f32.mrf.mxu0
      %v1777 = vadd.f32 0.0, %v1776
      %v1778 = vpop.f32.mrf.mxu0
      %1779 = vmatprep.mubr.f32.mxu0 0.0
      %1780 = vmatmul.mubr.f32.gmra.mxu0 %v1603
      %v1781 = vpop.f32.mrf.mxu0
      %v1782 = vadd.f32 0.0, %v1781
      %v1783 = vpop.f32.mrf.mxu0
      %1784 = vmatprep.mubr.f32.mxu0 0.0
      %1785 = vmatmul.mubr.f32.gmra.mxu0 %v1605
      %v1786 = vpop.f32.mrf.mxu0
      %v1787 = vadd.f32 0.0, %v1786
      %v1788 = vpop.f32.mrf.mxu0
      %1789 = vmatprep.mubr.f32.mxu0 0.0
      %1790 = vmatmul.mubr.f32.gmra.mxu0 %v1607
      %v1791 = vpop.f32.mrf.mxu0
      %v1792 = vadd.f32 0.0, %v1791
      %v1793 = vpop.f32.mrf.mxu0
      %1794 = vmatprep.mubr.f32.mxu0 0.0
      %1795 = vmatmul.mubr.f32.gmra.mxu0 %v1609
      %v1796 = vpop.f32.mrf.mxu0
      %v1797 = vadd.f32 0.0, %v1796
      %v1798 = vpop.f32.mrf.mxu0
      %1799 = vmatprep.mubr.f32.mxu0 0.0
      %1800 = vmatmul.mubr.f32.gmra.mxu0 %v1611
      %v1801 = vpop.f32.mrf.mxu0
      %v1802 = vadd.f32 0.0, %v1801
      %v1803 = vpop.f32.mrf.mxu0
      %1804 = vmatprep.mubr.f32.mxu0 0.0
      %1805 = vmatmul.mubr.f32.gmra.mxu0 %v1613
      %v1806 = vpop.f32.mrf.mxu0
      %v1807 = vadd.f32 0.0, %v1806
      %v1808 = vpop.f32.mrf.mxu0
      %1809 = vmatprep.mubr.f32.mxu0 0.0
      %1810 = vmatmul.mubr.f32.gmra.mxu0 %v1615
      %v1811 = vpop.f32.mrf.mxu0
      %v1812 = vadd.f32 0.0, %v1811
      %v1813 = vpop.f32.mrf.mxu0
      %1814 = vmatprep.mubr.f32.mxu0 0.0
      %1815 = vmatmul.mubr.f32.gmra.mxu0 %v1617
      %v1816 = vpop.f32.mrf.mxu0
      %v1817 = vadd.f32 0.0, %v1816
      %v1818 = vpop.f32.mrf.mxu0
      %1819 = vmatprep.mubr.f32.mxu0 0.0
      %1820 = vmatmul.mubr.f32.gmra.mxu0 %v1619
      %v1821 = vpop.f32.mrf.mxu0
      %v1822 = vadd.f32 0.0, %v1821
      %v1823 = vpop.f32.mrf.mxu0
      %1824 = vmatprep.mubr.f32.mxu0 0.0
      %1825 = vmatmul.mubr.f32.gmra.mxu0 %v1621
      %v1826 = vpop.f32.mrf.mxu0
      %v1827 = vadd.f32 0.0, %v1826
      %v1828 = vpop.f32.mrf.mxu0
      %1829 = vmatprep.mubr.f32.mxu0 0.0
      %1830 = vmatmul.mubr.f32.gmra.mxu0 %v1623
      %v1831 = vpop.f32.mrf.mxu0
      %v1832 = vadd.f32 0.0, %v1831
      %v1833 = vpop.f32.mrf.mxu0
      %1834 = vmatprep.mubr.f32.mxu0 0.0
      %1835 = vmatmul.mubr.f32.gmra.mxu0 %v1625
      %v1836 = vpop.f32.mrf.mxu0
      %v1837 = vadd.f32 0.0, %v1836
      %v1838 = vpop.f32.mrf.mxu0
      %1839 = vmatprep.mubr.f32.mxu0 0.0
      %1840 = vmatmul.mubr.f32.gmra.mxu0 %v1627
      %v1841 = vpop.f32.mrf.mxu0
      %v1842 = vadd.f32 0.0, %v1841
      %v1843 = vpop.f32.mrf.mxu0
      %1844 = vmatprep.mubr.f32.mxu0 0.0
      %1845 = vmatmul.mubr.f32.gmra.mxu0 %v1629
      %v1846 = vpop.f32.mrf.mxu0
      %v1847 = vadd.f32 0.0, %v1846
      %v1848 = vpop.f32.mrf.mxu0
      %1849 = vmatprep.mubr.f32.mxu0 0.0
      %1850 = vmatmul.mubr.f32.gmra.mxu0 %v1631
      %v1851 = vpop.f32.mrf.mxu0
      %v1852 = vadd.f32 0.0, %v1851
      %v1853 = vpop.f32.mrf.mxu0
      %1854 = vmatprep.mubr.f32.mxu0 0.0
      %1855 = vmatmul.mubr.f32.gmra.mxu0 %v1633
      %v1856 = vpop.f32.mrf.mxu0
      %v1857 = vadd.f32 0.0, %v1856
      %v1858 = vpop.f32.mrf.mxu0
      %1859 = vdwg.mxu0
      %v1861 = vsel %vm440, %v404, 0
      %v1864 = vsel %vm440, %v405, 0
      %v1867 = vsel %vm440, %v406, 0
      %v1870 = vsel %vm440, %v407, 0
      %v1873 = vsel %vm440, %v408, 0
      %v1876 = vsel %vm440, %v409, 0
      %v1879 = vsel %vm440, %v410, 0
      %v1882 = vsel %vm440, %v411, 0
      %v1885 = vsel %vm440, %v412, 0
      %v1888 = vsel %vm440, %v413, 0
      %v1891 = vsel %vm440, %v414, 0
      %v1894 = vsel %vm440, %v415, 0
      %v1897 = vsel %vm440, %v416, 0
      %v1900 = vsel %vm440, %v417, 0
      %v1903 = vsel %vm440, %v418, 0
      %v1906 = vsel %vm440, %v419, 0
      %v1909 = vsel %vm440, %v420, 0
      %v1912 = vsel %vm440, %v421, 0
      %v1915 = vsel %vm440, %v422, 0
      %v1918 = vsel %vm440, %v423, 0
      %v1921 = vsel %vm440, %v424, 0
      %v1924 = vsel %vm440, %v425, 0
      %v1927 = vsel %vm440, %v426, 0
      %v1930 = vsel %vm440, %v427, 0
      %v1933 = vsel %vm440, %v428, 0
      %v1936 = vsel %vm440, %v429, 0
      %v1939 = vsel %vm440, %v430, 0
      %v1942 = vsel %vm440, %v431, 0
      %v1945 = vsel %vm440, %v432, 0
      %v1948 = vsel %vm440, %v433, 0
      %v1951 = vsel %vm440, %v434, 0
      %v1954 = vsel %vm440, %v435, 0
      %1956 = vmatprep.subr.mxu0 0.0
      %1957 = vmatpush1.msra.mxu0 0.0
      %1958 = vmatprep.subr.mxu0 0.0
      %1959 = vmatpush1.msra.mxu0 0.0
      %1960 = vmatprep.subr.mxu0 0.0
      %1961 = vmatpush1.msra.mxu0 0.0
      %1962 = vmatprep.subr.mxu0 0.0
      %1963 = vmatpush1.msra.mxu0 0.0
      %1964 = vmatprep.subr.mxu0 0.0
      %1965 = vmatpush1.msra.mxu0 0.0
      %1966 = vmatprep.subr.mxu0 0.0
      %1967 = vmatpush1.msra.mxu0 0.0
      %1968 = vmatprep.subr.mxu0 0.0
      %1969 = vmatpush1.msra.mxu0 0.0
      %1970 = vmatprep.subr.mxu0 0.0
      %1971 = vmatpush1.msra.mxu0 0.0
      %1972 = vmatprep.subr.mxu0 0.0
      %1973 = vmatpush1.msra.mxu0 0.0
      %1974 = vmatprep.subr.mxu0 0.0
      %1975 = vmatpush1.msra.mxu0 0.0
      %1976 = vmatprep.subr.mxu0 0.0
      %1977 = vmatpush1.msra.mxu0 0.0
      %1978 = vmatprep.subr.mxu0 0.0
      %1979 = vmatpush1.msra.mxu0 0.0
      %1980 = vmatprep.subr.mxu0 0.0
      %1981 = vmatpush1.msra.mxu0 %v1470
      %1982 = vmatprep.subr.mxu0 0.0
      %1983 = vmatpush1.msra.mxu0 %v1469
      %1984 = vmatprep.subr.mxu0 0.0
      %1985 = vmatpush1.msra.mxu0 %v1468
      %1986 = vmatprep.subr.mxu0 0.0
      %1987 = vmatpush1.msra.mxu0 %v1467
      %1988 = vmatprep.subr.mxu0 0.0
      %1989 = vmatpush2.msra.mxu0 0.0
      %1990 = vmatprep.subr.mxu0 0.0
      %1991 = vmatpush2.msra.mxu0 0.0
      %1992 = vmatprep.subr.mxu0 0.0
      %1993 = vmatpush2.msra.mxu0 0.0
      %1994 = vmatprep.subr.mxu0 0.0
      %1995 = vmatpush2.msra.mxu0 0.0
      %1996 = vmatprep.subr.mxu0 0.0
      %1997 = vmatpush2.msra.mxu0 0.0
      %1998 = vmatprep.subr.mxu0 0.0
      %1999 = vmatpush2.msra.mxu0 0.0
      %2000 = vmatprep.subr.mxu0 0.0
      %2001 = vmatpush2.msra.mxu0 0.0
      %2002 = vmatprep.subr.mxu0 0.0
      %2003 = vmatpush2.msra.mxu0 0.0
      %2004 = vmatprep.subr.mxu0 0.0
      %2005 = vmatpush2.msra.mxu0 0.0
      %2006 = vmatprep.subr.mxu0 0.0
      %2007 = vmatpush2.msra.mxu0 0.0
      %2008 = vmatprep.subr.mxu0 0.0
      %2009 = vmatpush2.msra.mxu0 0.0
      %2010 = vmatprep.subr.mxu0 0.0
      %2011 = vmatpush2.msra.mxu0 0.0
      %2012 = vmatprep.subr.mxu0 0.0
      %2013 = vmatpush2.msra.mxu0 0.0
      %2014 = vmatprep.subr.mxu0 0.0
      %2015 = vmatpush2.msra.mxu0 0.0
      %2016 = vmatprep.subr.mxu0 0.0
      %2017 = vmatpush2.msra.mxu0 0.0
      %2018 = vmatprep.subr.mxu0 0.0
      %2019 = vmatpush2.msra.mxu0 0.0
      %2020 = vmatprep.mubr.f32.mxu0 0.0
      %2021 = vmatmul.mubr.f32.gmra.mxu0 %v1861
      %v2022 = vpop.f32.mrf.mxu0
      %v2023 = vadd.f32 %v1702, %v2022
      %v2024 = vpop.f32.mrf.mxu0
      %2025 = vmatprep.mubr.f32.mxu0 0.0
      %2026 = vmatmul.mubr.f32.gmra.mxu0 %v1864
      %v2027 = vpop.f32.mrf.mxu0
      %v2028 = vadd.f32 %v1707, %v2027
      %v2029 = vpop.f32.mrf.mxu0
      %2030 = vmatprep.mubr.f32.mxu0 0.0
      %2031 = vmatmul.mubr.f32.gmra.mxu0 %v1867
      %v2032 = vpop.f32.mrf.mxu0
      %v2033 = vadd.f32 %v1712, %v2032
      %v2034 = vpop.f32.mrf.mxu0
      %2035 = vmatprep.mubr.f32.mxu0 0.0
      %2036 = vmatmul.mubr.f32.gmra.mxu0 %v1870
      %v2037 = vpop.f32.mrf.mxu0
      %v2038 = vadd.f32 %v1717, %v2037
      %v2039 = vpop.f32.mrf.mxu0
      %2040 = vmatprep.mubr.f32.mxu0 0.0
      %2041 = vmatmul.mubr.f32.gmra.mxu0 %v1873
      %v2042 = vpop.f32.mrf.mxu0
      %v2043 = vadd.f32 %v1722, %v2042
      %v2044 = vpop.f32.mrf.mxu0
      %2045 = vmatprep.mubr.f32.mxu0 0.0
      %2046 = vmatmul.mubr.f32.gmra.mxu0 %v1876
      %v2047 = vpop.f32.mrf.mxu0
      %v2048 = vadd.f32 %v1727, %v2047
      %v2049 = vpop.f32.mrf.mxu0
      %2050 = vmatprep.mubr.f32.mxu0 0.0
      %2051 = vmatmul.mubr.f32.gmra.mxu0 %v1879
      %v2052 = vpop.f32.mrf.mxu0
      %v2053 = vadd.f32 %v1732, %v2052
      %v2054 = vpop.f32.mrf.mxu0
      %2055 = vmatprep.mubr.f32.mxu0 0.0
      %2056 = vmatmul.mubr.f32.gmra.mxu0 %v1882
      %v2057 = vpop.f32.mrf.mxu0
      %v2058 = vadd.f32 %v1737, %v2057
      %v2059 = vpop.f32.mrf.mxu0
      %2060 = vmatprep.mubr.f32.mxu0 0.0
      %2061 = vmatmul.mubr.f32.gmra.mxu0 %v1885
      %v2062 = vpop.f32.mrf.mxu0
      %v2063 = vadd.f32 %v1742, %v2062
      %v2064 = vpop.f32.mrf.mxu0
      %2065 = vmatprep.mubr.f32.mxu0 0.0
      %2066 = vmatmul.mubr.f32.gmra.mxu0 %v1888
      %v2067 = vpop.f32.mrf.mxu0
      %v2068 = vadd.f32 %v1747, %v2067
      %v2069 = vpop.f32.mrf.mxu0
      %2070 = vmatprep.mubr.f32.mxu0 0.0
      %2071 = vmatmul.mubr.f32.gmra.mxu0 %v1891
      %v2072 = vpop.f32.mrf.mxu0
      %v2073 = vadd.f32 %v1752, %v2072
      %v2074 = vpop.f32.mrf.mxu0
      %2075 = vmatprep.mubr.f32.mxu0 0.0
      %2076 = vmatmul.mubr.f32.gmra.mxu0 %v1894
      %v2077 = vpop.f32.mrf.mxu0
      %v2078 = vadd.f32 %v1757, %v2077
      %v2079 = vpop.f32.mrf.mxu0
      %2080 = vmatprep.mubr.f32.mxu0 0.0
      %2081 = vmatmul.mubr.f32.gmra.mxu0 %v1897
      %v2082 = vpop.f32.mrf.mxu0
      %v2083 = vadd.f32 %v1762, %v2082
      %v2084 = vpop.f32.mrf.mxu0
      %2085 = vmatprep.mubr.f32.mxu0 0.0
      %2086 = vmatmul.mubr.f32.gmra.mxu0 %v1900
      %v2087 = vpop.f32.mrf.mxu0
      %v2088 = vadd.f32 %v1767, %v2087
      %v2089 = vpop.f32.mrf.mxu0
      %2090 = vmatprep.mubr.f32.mxu0 0.0
      %2091 = vmatmul.mubr.f32.gmra.mxu0 %v1903
      %v2092 = vpop.f32.mrf.mxu0
      %v2093 = vadd.f32 %v1772, %v2092
      %v2094 = vpop.f32.mrf.mxu0
      %2095 = vmatprep.mubr.f32.mxu0 0.0
      %2096 = vmatmul.mubr.f32.gmra.mxu0 %v1906
      %v2097 = vpop.f32.mrf.mxu0
      %v2098 = vadd.f32 %v1777, %v2097
      %v2099 = vpop.f32.mrf.mxu0
      %2100 = vmatprep.mubr.f32.mxu0 0.0
      %2101 = vmatmul.mubr.f32.gmra.mxu0 %v1909
      %v2102 = vpop.f32.mrf.mxu0
      %v2103 = vadd.f32 %v1782, %v2102
      %v2104 = vpop.f32.mrf.mxu0
      %2105 = vmatprep.mubr.f32.mxu0 0.0
      %2106 = vmatmul.mubr.f32.gmra.mxu0 %v1912
      %v2107 = vpop.f32.mrf.mxu0
      %v2108 = vadd.f32 %v1787, %v2107
      %v2109 = vpop.f32.mrf.mxu0
      %2110 = vmatprep.mubr.f32.mxu0 0.0
      %2111 = vmatmul.mubr.f32.gmra.mxu0 %v1915
      %v2112 = vpop.f32.mrf.mxu0
      %v2113 = vadd.f32 %v1792, %v2112
      %v2114 = vpop.f32.mrf.mxu0
      %2115 = vmatprep.mubr.f32.mxu0 0.0
      %2116 = vmatmul.mubr.f32.gmra.mxu0 %v1918
      %v2117 = vpop.f32.mrf.mxu0
      %v2118 = vadd.f32 %v1797, %v2117
      %v2119 = vpop.f32.mrf.mxu0
      %2120 = vmatprep.mubr.f32.mxu0 0.0
      %2121 = vmatmul.mubr.f32.gmra.mxu0 %v1921
      %v2122 = vpop.f32.mrf.mxu0
      %v2123 = vadd.f32 %v1802, %v2122
      %v2124 = vpop.f32.mrf.mxu0
      %2125 = vmatprep.mubr.f32.mxu0 0.0
      %2126 = vmatmul.mubr.f32.gmra.mxu0 %v1924
      %v2127 = vpop.f32.mrf.mxu0
      %v2128 = vadd.f32 %v1807, %v2127
      %v2129 = vpop.f32.mrf.mxu0
      %2130 = vmatprep.mubr.f32.mxu0 0.0
      %2131 = vmatmul.mubr.f32.gmra.mxu0 %v1927
      %v2132 = vpop.f32.mrf.mxu0
      %v2133 = vadd.f32 %v1812, %v2132
      %v2134 = vpop.f32.mrf.mxu0
      %2135 = vmatprep.mubr.f32.mxu0 0.0
      %2136 = vmatmul.mubr.f32.gmra.mxu0 %v1930
      %v2137 = vpop.f32.mrf.mxu0
      %v2138 = vadd.f32 %v1817, %v2137
      %v2139 = vpop.f32.mrf.mxu0
      %2140 = vmatprep.mubr.f32.mxu0 0.0
      %2141 = vmatmul.mubr.f32.gmra.mxu0 %v1933
      %v2142 = vpop.f32.mrf.mxu0
      %v2143 = vadd.f32 %v1822, %v2142
      %v2144 = vpop.f32.mrf.mxu0
      %2145 = vmatprep.mubr.f32.mxu0 0.0
      %2146 = vmatmul.mubr.f32.gmra.mxu0 %v1936
      %v2147 = vpop.f32.mrf.mxu0
      %v2148 = vadd.f32 %v1827, %v2147
      %v2149 = vpop.f32.mrf.mxu0
      %2150 = vmatprep.mubr.f32.mxu0 0.0
      %2151 = vmatmul.mubr.f32.gmra.mxu0 %v1939
      %v2152 = vpop.f32.mrf.mxu0
      %v2153 = vadd.f32 %v1832, %v2152
      %v2154 = vpop.f32.mrf.mxu0
      %2155 = vmatprep.mubr.f32.mxu0 0.0
      %2156 = vmatmul.mubr.f32.gmra.mxu0 %v1942
      %v2157 = vpop.f32.mrf.mxu0
      %v2158 = vadd.f32 %v1837, %v2157
      %v2159 = vpop.f32.mrf.mxu0
      %2160 = vmatprep.mubr.f32.mxu0 0.0
      %2161 = vmatmul.mubr.f32.gmra.mxu0 %v1945
      %v2162 = vpop.f32.mrf.mxu0
      %v2163 = vadd.f32 %v1842, %v2162
      %v2164 = vpop.f32.mrf.mxu0
      %2165 = vmatprep.mubr.f32.mxu0 0.0
      %2166 = vmatmul.mubr.f32.gmra.mxu0 %v1948
      %v2167 = vpop.f32.mrf.mxu0
      %v2168 = vadd.f32 %v1847, %v2167
      %v2169 = vpop.f32.mrf.mxu0
      %2170 = vmatprep.mubr.f32.mxu0 0.0
      %2171 = vmatmul.mubr.f32.gmra.mxu0 %v1951
      %v2172 = vpop.f32.mrf.mxu0
      %v2173 = vadd.f32 %v1852, %v2172
      %v2174 = vpop.f32.mrf.mxu0
      %2175 = vmatprep.mubr.f32.mxu0 0.0
      %2176 = vmatmul.mubr.f32.gmra.mxu0 %v1954
      %v2177 = vpop.f32.mrf.mxu0
      %v2178 = vadd.f32 %v1857, %v2177
      %v2179 = vpop.f32.mrf.mxu0
      %2180 = vdwg.mxu0
      %v2181 = vld [vmem:[%s5] sm:$0x1]
      %v2183 = vlaneseq
      %v2184 = vshrl.u32 %v2183, 7
      %v2185 = vsub.s32 0, %v2184
      %v2186 = vrot.slane %v2181, %v2185
      %v2188 = vadd.f32 %v2023, %v2186
      %v2189 = vadd.f32 %v2028, %v2186
      %v2190 = vadd.f32 %v2033, %v2186
      %v2191 = vadd.f32 %v2038, %v2186
      %v2192 = vadd.f32 %v2043, %v2186
      %v2193 = vadd.f32 %v2048, %v2186
      %v2194 = vadd.f32 %v2053, %v2186
      %v2195 = vadd.f32 %v2058, %v2186
      %v2196 = vadd.f32 %v2063, %v2186
      %v2197 = vadd.f32 %v2068, %v2186
      %v2198 = vadd.f32 %v2073, %v2186
      %v2199 = vadd.f32 %v2078, %v2186
      %v2200 = vadd.f32 %v2083, %v2186
      %v2201 = vadd.f32 %v2088, %v2186
      %v2202 = vadd.f32 %v2093, %v2186
      %v2203 = vadd.f32 %v2098, %v2186
      %v2204 = vadd.f32 %v2103, %v2186
      %v2205 = vadd.f32 %v2108, %v2186
      %v2206 = vadd.f32 %v2113, %v2186
      %v2207 = vadd.f32 %v2118, %v2186
      %v2208 = vadd.f32 %v2123, %v2186
      %v2209 = vadd.f32 %v2128, %v2186
      %v2210 = vadd.f32 %v2133, %v2186
      %v2211 = vadd.f32 %v2138, %v2186
      %v2212 = vadd.f32 %v2143, %v2186
      %v2213 = vadd.f32 %v2148, %v2186
      %v2214 = vadd.f32 %v2153, %v2186
      %v2215 = vadd.f32 %v2158, %v2186
      %v2216 = vadd.f32 %v2163, %v2186
      %v2217 = vadd.f32 %v2168, %v2186
      %v2218 = vadd.f32 %v2173, %v2186
      %v2219 = vadd.f32 %v2178, %v2186
      %v2220 = vtanh.pop %v2188
      %v2221 = vtanh.pop %v2189
      %v2222 = vtanh.pop %v2190
      %v2223 = vtanh.pop %v2191
      %v2224 = vtanh.pop %v2192
      %v2225 = vtanh.pop %v2193
      %v2226 = vtanh.pop %v2194
      %v2227 = vtanh.pop %v2195
      %v2228 = vtanh.pop %v2196
      %v2229 = vtanh.pop %v2197
      %v2230 = vtanh.pop %v2198
      %v2231 = vtanh.pop %v2199
      %v2232 = vtanh.pop %v2200
      %v2233 = vtanh.pop %v2201
      %v2234 = vtanh.pop %v2202
      %v2235 = vtanh.pop %v2203
      %v2236 = vtanh.pop %v2204
      %v2237 = vtanh.pop %v2205
      %v2238 = vtanh.pop %v2206
      %v2239 = vtanh.pop %v2207
      %v2240 = vtanh.pop %v2208
      %v2241 = vtanh.pop %v2209
      %v2242 = vtanh.pop %v2210
      %v2243 = vtanh.pop %v2211
      %v2244 = vtanh.pop %v2212
      %v2245 = vtanh.pop %v2213
      %v2246 = vtanh.pop %v2214
      %v2247 = vtanh.pop %v2215
      %v2248 = vtanh.pop %v2216
      %v2249 = vtanh.pop %v2217
      %v2250 = vtanh.pop %v2218
      %v2251 = vtanh.pop %v2219
      %v2252 = vld [vmem:[%s6] sm:$0xff]
      %v2253 = vld [vmem:[%s6 + $0x8] sm:$0xff]
      %v2254 = vld [vmem:[%s6 + $0x10] sm:$0xff]
      %v2255 = vld [vmem:[%s6 + $0x18] sm:$0xff]
      %v2256 = vld [vmem:[%s7] sm:$0x1]
      %v2258 = vlaneseq
      %v2259 = vshrl.u32 %v2258, 7
      %v2260 = vsub.s32 0, %v2259
      %v2261 = vrot.slane %v2256, %v2260
      %v2264 = vsel %vm440, %v2220, 0
      %v2267 = vsel %vm440, %v2221, 0
      %v2270 = vsel %vm440, %v2222, 0
      %v2273 = vsel %vm440, %v2223, 0
      %v2276 = vsel %vm440, %v2224, 0
      %v2279 = vsel %vm440, %v2225, 0
      %v2282 = vsel %vm440, %v2226, 0
      %v2285 = vsel %vm440, %v2227, 0
      %v2288 = vsel %vm440, %v2228, 0
      %v2291 = vsel %vm440, %v2229, 0
      %v2294 = vsel %vm440, %v2230, 0
      %v2297 = vsel %vm440, %v2231, 0
      %v2300 = vsel %vm440, %v2232, 0
      %v2303 = vsel %vm440, %v2233, 0
      %v2306 = vsel %vm440, %v2234, 0
      %v2309 = vsel %vm440, %v2235, 0
      %v2312 = vsel %vm440, %v2236, 0
      %v2315 = vsel %vm440, %v2237, 0
      %v2318 = vsel %vm440, %v2238, 0
      %v2321 = vsel %vm440, %v2239, 0
      %v2324 = vsel %vm440, %v2240, 0
      %v2327 = vsel %vm440, %v2241, 0
      %v2330 = vsel %vm440, %v2242, 0
      %v2333 = vsel %vm440, %v2243, 0
      %v2336 = vsel %vm440, %v2244, 0
      %v2339 = vsel %vm440, %v2245, 0
      %v2342 = vsel %vm440, %v2246, 0
      %v2345 = vsel %vm440, %v2247, 0
      %v2348 = vsel %vm440, %v2248, 0
      %v2351 = vsel %vm440, %v2249, 0
      %v2354 = vsel %vm440, %v2250, 0
      %v2357 = vsel %vm440, %v2251, 0
      %2359 = vmatprep.subr.mxu0 0.0
      %2360 = vmatpush1.msra.mxu0 0.0
      %2361 = vmatprep.subr.mxu0 0.0
      %2362 = vmatpush1.msra.mxu0 0.0
      %2363 = vmatprep.subr.mxu0 0.0
      %2364 = vmatpush1.msra.mxu0 0.0
      %2365 = vmatprep.subr.mxu0 0.0
      %2366 = vmatpush1.msra.mxu0 0.0
      %2367 = vmatprep.subr.mxu0 0.0
      %2368 = vmatpush1.msra.mxu0 0.0
      %2369 = vmatprep.subr.mxu0 0.0
      %2370 = vmatpush1.msra.mxu0 0.0
      %2371 = vmatprep.subr.mxu0 0.0
      %2372 = vmatpush1.msra.mxu0 0.0
      %2373 = vmatprep.subr.mxu0 0.0
      %2374 = vmatpush1.msra.mxu0 0.0
      %2375 = vmatprep.subr.mxu0 0.0
      %2376 = vmatpush1.msra.mxu0 0.0
      %2377 = vmatprep.subr.mxu0 0.0
      %2378 = vmatpush1.msra.mxu0 0.0
      %2379 = vmatprep.subr.mxu0 0.0
      %2380 = vmatpush1.msra.mxu0 0.0
      %2381 = vmatprep.subr.mxu0 0.0
      %2382 = vmatpush1.msra.mxu0 0.0
      %2383 = vmatprep.subr.mxu0 0.0
      %2384 = vmatpush1.msra.mxu0 %v2255
      %2385 = vmatprep.subr.mxu0 0.0
      %2386 = vmatpush1.msra.mxu0 %v2254
      %2387 = vmatprep.subr.mxu0 0.0
      %2388 = vmatpush1.msra.mxu0 %v2253
      %2389 = vmatprep.subr.mxu0 0.0
      %2390 = vmatpush1.msra.mxu0 %v2252
      %2391 = vmatprep.subr.mxu0 0.0
      %2392 = vmatpush2.msra.mxu0 0.0
      %2393 = vmatprep.subr.mxu0 0.0
      %2394 = vmatpush2.msra.mxu0 0.0
      %2395 = vmatprep.subr.mxu0 0.0
      %2396 = vmatpush2.msra.mxu0 0.0
      %2397 = vmatprep.subr.mxu0 0.0
      %2398 = vmatpush2.msra.mxu0 0.0
      %2399 = vmatprep.subr.mxu0 0.0
      %2400 = vmatpush2.msra.mxu0 0.0
      %2401 = vmatprep.subr.mxu0 0.0
      %2402 = vmatpush2.msra.mxu0 0.0
      %2403 = vmatprep.subr.mxu0 0.0
      %2404 = vmatpush2.msra.mxu0 0.0
      %2405 = vmatprep.subr.mxu0 0.0
      %2406 = vmatpush2.msra.mxu0 0.0
      %2407 = vmatprep.subr.mxu0 0.0
      %2408 = vmatpush2.msra.mxu0 0.0
      %2409 = vmatprep.subr.mxu0 0.0
      %2410 = vmatpush2.msra.mxu0 0.0
      %2411 = vmatprep.subr.mxu0 0.0
      %2412 = vmatpush2.msra.mxu0 0.0
      %2413 = vmatprep.subr.mxu0 0.0
      %2414 = vmatpush2.msra.mxu0 0.0
      %2415 = vmatprep.subr.mxu0 0.0
      %2416 = vmatpush2.msra.mxu0 0.0
      %2417 = vmatprep.subr.mxu0 0.0
      %2418 = vmatpush2.msra.mxu0 0.0
      %2419 = vmatprep.subr.mxu0 0.0
      %2420 = vmatpush2.msra.mxu0 0.0
      %2421 = vmatprep.subr.mxu0 0.0
      %2422 = vmatpush2.msra.mxu0 0.0
      %2423 = vmatprep.mubr.f32.mxu0 0.0
      %2424 = vmatmul.mubr.f32.gmra.mxu0 %v2264
      %v2425 = vpop.f32.mrf.mxu0
      %v2426 = vadd.f32 %v2261, %v2425
      %v2427 = vpop.f32.mrf.mxu0
      %2428 = vmatprep.mubr.f32.mxu0 0.0
      %2429 = vmatmul.mubr.f32.gmra.mxu0 %v2267
      %v2430 = vpop.f32.mrf.mxu0
      %v2431 = vadd.f32 %v2261, %v2430
      %v2432 = vpop.f32.mrf.mxu0
      %2433 = vmatprep.mubr.f32.mxu0 0.0
      %2434 = vmatmul.mubr.f32.gmra.mxu0 %v2270
      %v2435 = vpop.f32.mrf.mxu0
      %v2436 = vadd.f32 %v2261, %v2435
      %v2437 = vpop.f32.mrf.mxu0
      %2438 = vmatprep.mubr.f32.mxu0 0.0
      %2439 = vmatmul.mubr.f32.gmra.mxu0 %v2273
      %v2440 = vpop.f32.mrf.mxu0
      %v2441 = vadd.f32 %v2261, %v2440
      %v2442 = vpop.f32.mrf.mxu0
      %2443 = vmatprep.mubr.f32.mxu0 0.0
      %2444 = vmatmul.mubr.f32.gmra.mxu0 %v2276
      %v2445 = vpop.f32.mrf.mxu0
      %v2446 = vadd.f32 %v2261, %v2445
      %v2447 = vpop.f32.mrf.mxu0
      %2448 = vmatprep.mubr.f32.mxu0 0.0
      %2449 = vmatmul.mubr.f32.gmra.mxu0 %v2279
      %v2450 = vpop.f32.mrf.mxu0
      %v2451 = vadd.f32 %v2261, %v2450
      %v2452 = vpop.f32.mrf.mxu0
      %2453 = vmatprep.mubr.f32.mxu0 0.0
      %2454 = vmatmul.mubr.f32.gmra.mxu0 %v2282
      %v2455 = vpop.f32.mrf.mxu0
      %v2456 = vadd.f32 %v2261, %v2455
      %v2457 = vpop.f32.mrf.mxu0
      %2458 = vmatprep.mubr.f32.mxu0 0.0
      %2459 = vmatmul.mubr.f32.gmra.mxu0 %v2285
      %v2460 = vpop.f32.mrf.mxu0
      %v2461 = vadd.f32 %v2261, %v2460
      %v2462 = vpop.f32.mrf.mxu0
      %2463 = vmatprep.mubr.f32.mxu0 0.0
      %2464 = vmatmul.mubr.f32.gmra.mxu0 %v2288
      %v2465 = vpop.f32.mrf.mxu0
      %v2466 = vadd.f32 %v2261, %v2465
      %v2467 = vpop.f32.mrf.mxu0
      %2468 = vmatprep.mubr.f32.mxu0 0.0
      %2469 = vmatmul.mubr.f32.gmra.mxu0 %v2291
      %v2470 = vpop.f32.mrf.mxu0
      %v2471 = vadd.f32 %v2261, %v2470
      %v2472 = vpop.f32.mrf.mxu0
      %2473 = vmatprep.mubr.f32.mxu0 0.0
      %2474 = vmatmul.mubr.f32.gmra.mxu0 %v2294
      %v2475 = vpop.f32.mrf.mxu0
      %v2476 = vadd.f32 %v2261, %v2475
      %v2477 = vpop.f32.mrf.mxu0
      %2478 = vmatprep.mubr.f32.mxu0 0.0
      %2479 = vmatmul.mubr.f32.gmra.mxu0 %v2297
      %v2480 = vpop.f32.mrf.mxu0
      %v2481 = vadd.f32 %v2261, %v2480
      %v2482 = vpop.f32.mrf.mxu0
      %2483 = vmatprep.mubr.f32.mxu0 0.0
      %2484 = vmatmul.mubr.f32.gmra.mxu0 %v2300
      %v2485 = vpop.f32.mrf.mxu0
      %v2486 = vadd.f32 %v2261, %v2485
      %v2487 = vpop.f32.mrf.mxu0
      %2488 = vmatprep.mubr.f32.mxu0 0.0
      %2489 = vmatmul.mubr.f32.gmra.mxu0 %v2303
      %v2490 = vpop.f32.mrf.mxu0
      %v2491 = vadd.f32 %v2261, %v2490
      %v2492 = vpop.f32.mrf.mxu0
      %2493 = vmatprep.mubr.f32.mxu0 0.0
      %2494 = vmatmul.mubr.f32.gmra.mxu0 %v2306
      %v2495 = vpop.f32.mrf.mxu0
      %v2496 = vadd.f32 %v2261, %v2495
      %v2497 = vpop.f32.mrf.mxu0
      %2498 = vmatprep.mubr.f32.mxu0 0.0
      %2499 = vmatmul.mubr.f32.gmra.mxu0 %v2309
      %v2500 = vpop.f32.mrf.mxu0
      %v2501 = vadd.f32 %v2261, %v2500
      %v2502 = vpop.f32.mrf.mxu0
      %2503 = vmatprep.mubr.f32.mxu0 0.0
      %2504 = vmatmul.mubr.f32.gmra.mxu0 %v2312
      %v2505 = vpop.f32.mrf.mxu0
      %v2506 = vadd.f32 %v2261, %v2505
      %v2507 = vpop.f32.mrf.mxu0
      %2508 = vmatprep.mubr.f32.mxu0 0.0
      %2509 = vmatmul.mubr.f32.gmra.mxu0 %v2315
      %v2510 = vpop.f32.mrf.mxu0
      %v2511 = vadd.f32 %v2261, %v2510
      %v2512 = vpop.f32.mrf.mxu0
      %2513 = vmatprep.mubr.f32.mxu0 0.0
      %2514 = vmatmul.mubr.f32.gmra.mxu0 %v2318
      %v2515 = vpop.f32.mrf.mxu0
      %v2516 = vadd.f32 %v2261, %v2515
      %v2517 = vpop.f32.mrf.mxu0
      %2518 = vmatprep.mubr.f32.mxu0 0.0
      %2519 = vmatmul.mubr.f32.gmra.mxu0 %v2321
      %v2520 = vpop.f32.mrf.mxu0
      %v2521 = vadd.f32 %v2261, %v2520
      %v2522 = vpop.f32.mrf.mxu0
      %2523 = vmatprep.mubr.f32.mxu0 0.0
      %2524 = vmatmul.mubr.f32.gmra.mxu0 %v2324
      %v2525 = vpop.f32.mrf.mxu0
      %v2526 = vadd.f32 %v2261, %v2525
      %v2527 = vpop.f32.mrf.mxu0
      %2528 = vmatprep.mubr.f32.mxu0 0.0
      %2529 = vmatmul.mubr.f32.gmra.mxu0 %v2327
      %v2530 = vpop.f32.mrf.mxu0
      %v2531 = vadd.f32 %v2261, %v2530
      %v2532 = vpop.f32.mrf.mxu0
      %2533 = vmatprep.mubr.f32.mxu0 0.0
      %2534 = vmatmul.mubr.f32.gmra.mxu0 %v2330
      %v2535 = vpop.f32.mrf.mxu0
      %v2536 = vadd.f32 %v2261, %v2535
      %v2537 = vpop.f32.mrf.mxu0
      %2538 = vmatprep.mubr.f32.mxu0 0.0
      %2539 = vmatmul.mubr.f32.gmra.mxu0 %v2333
      %v2540 = vpop.f32.mrf.mxu0
      %v2541 = vadd.f32 %v2261, %v2540
      %v2542 = vpop.f32.mrf.mxu0
      %2543 = vmatprep.mubr.f32.mxu0 0.0
      %2544 = vmatmul.mubr.f32.gmra.mxu0 %v2336
      %v2545 = vpop.f32.mrf.mxu0
      %v2546 = vadd.f32 %v2261, %v2545
      %v2547 = vpop.f32.mrf.mxu0
      %2548 = vmatprep.mubr.f32.mxu0 0.0
      %2549 = vmatmul.mubr.f32.gmra.mxu0 %v2339
      %v2550 = vpop.f32.mrf.mxu0
      %v2551 = vadd.f32 %v2261, %v2550
      %v2552 = vpop.f32.mrf.mxu0
      %2553 = vmatprep.mubr.f32.mxu0 0.0
      %2554 = vmatmul.mubr.f32.gmra.mxu0 %v2342
      %v2555 = vpop.f32.mrf.mxu0
      %v2556 = vadd.f32 %v2261, %v2555
      %v2557 = vpop.f32.mrf.mxu0
      %2558 = vmatprep.mubr.f32.mxu0 0.0
      %2559 = vmatmul.mubr.f32.gmra.mxu0 %v2345
      %v2560 = vpop.f32.mrf.mxu0
      %v2561 = vadd.f32 %v2261, %v2560
      %v2562 = vpop.f32.mrf.mxu0
      %2563 = vmatprep.mubr.f32.mxu0 0.0
      %2564 = vmatmul.mubr.f32.gmra.mxu0 %v2348
      %v2565 = vpop.f32.mrf.mxu0
      %v2566 = vadd.f32 %v2261, %v2565
      %v2567 = vpop.f32.mrf.mxu0
      %2568 = vmatprep.mubr.f32.mxu0 0.0
      %2569 = vmatmul.mubr.f32.gmra.mxu0 %v2351
      %v2570 = vpop.f32.mrf.mxu0
      %v2571 = vadd.f32 %v2261, %v2570
      %v2572 = vpop.f32.mrf.mxu0
      %2573 = vmatprep.mubr.f32.mxu0 0.0
      %2574 = vmatmul.mubr.f32.gmra.mxu0 %v2354
      %v2575 = vpop.f32.mrf.mxu0
      %v2576 = vadd.f32 %v2261, %v2575
      %v2577 = vpop.f32.mrf.mxu0
      %2578 = vmatprep.mubr.f32.mxu0 0.0
      %2579 = vmatmul.mubr.f32.gmra.mxu0 %v2357
      %v2580 = vpop.f32.mrf.mxu0
      %v2581 = vadd.f32 %v2261, %v2580
      %v2582 = vpop.f32.mrf.mxu0
      %2583 = vdwg.mxu0
      %v2584 = vmul.f32 %v604, %v2426
      %v2585 = vmul.f32 %v609, %v2431
      %v2586 = vmul.f32 %v614, %v2436
      %v2587 = vmul.f32 %v619, %v2441
      %v2588 = vmul.f32 %v624, %v2446
      %v2589 = vmul.f32 %v629, %v2451
      %v2590 = vmul.f32 %v634, %v2456
      %v2591 = vmul.f32 %v639, %v2461
      %v2592 = vmul.f32 %v644, %v2466
      %v2593 = vmul.f32 %v649, %v2471
      %v2594 = vmul.f32 %v654, %v2476
      %v2595 = vmul.f32 %v659, %v2481
      %v2596 = vmul.f32 %v664, %v2486
      %v2597 = vmul.f32 %v669, %v2491
      %v2598 = vmul.f32 %v674, %v2496
      %v2599 = vmul.f32 %v679, %v2501
      %v2600 = vmul.f32 %v684, %v2506
      %v2601 = vmul.f32 %v689, %v2511
      %v2602 = vmul.f32 %v694, %v2516
      %v2603 = vmul.f32 %v699, %v2521
      %v2604 = vmul.f32 %v704, %v2526
      %v2605 = vmul.f32 %v709, %v2531
      %v2606 = vmul.f32 %v714, %v2536
      %v2607 = vmul.f32 %v719, %v2541
      %v2608 = vmul.f32 %v724, %v2546
      %v2609 = vmul.f32 %v729, %v2551
      %v2610 = vmul.f32 %v734, %v2556
      %v2611 = vmul.f32 %v739, %v2561
      %v2612 = vmul.f32 %v744, %v2566
      %v2613 = vmul.f32 %v749, %v2571
      %v2614 = vmul.f32 %v754, %v2576
      %v2615 = vmul.f32 %v759, %v2581
      %v2616 = vadd.f32 %v372, %v2584
      %v2617 = vadd.f32 %v373, %v2585
      %v2618 = vadd.f32 %v374, %v2586
      %v2619 = vadd.f32 %v375, %v2587
      %v2620 = vadd.f32 %v376, %v2588
      %v2621 = vadd.f32 %v377, %v2589
      %v2622 = vadd.f32 %v378, %v2590
      %v2623 = vadd.f32 %v379, %v2591
      %v2624 = vadd.f32 %v380, %v2592
      %v2625 = vadd.f32 %v381, %v2593
      %v2626 = vadd.f32 %v382, %v2594
      %v2627 = vadd.f32 %v383, %v2595
      %v2628 = vadd.f32 %v384, %v2596
      %v2629 = vadd.f32 %v385, %v2597
      %v2630 = vadd.f32 %v386, %v2598
      %v2631 = vadd.f32 %v387, %v2599
      %v2632 = vadd.f32 %v388, %v2600
      %v2633 = vadd.f32 %v389, %v2601
      %v2634 = vadd.f32 %v390, %v2602
      %v2635 = vadd.f32 %v391, %v2603
      %v2636 = vadd.f32 %v392, %v2604
      %v2637 = vadd.f32 %v393, %v2605
      %v2638 = vadd.f32 %v394, %v2606
      %v2639 = vadd.f32 %v395, %v2607
      %v2640 = vadd.f32 %v396, %v2608
      %v2641 = vadd.f32 %v397, %v2609
      %v2642 = vadd.f32 %v398, %v2610
      %v2643 = vadd.f32 %v399, %v2611
      %v2644 = vadd.f32 %v400, %v2612
      %v2645 = vadd.f32 %v401, %v2613
      %v2646 = vadd.f32 %v402, %v2614
      %v2647 = vadd.f32 %v403, %v2615
      %2648 = vst.msk [vmem:[%s364] sm:$0xff] %vm440, %v2616
      %2649 = vst.msk [vmem:[%s364 + $0x8] sm:$0xff] %vm440, %v2617
      %2650 = vst.msk [vmem:[%s364 + $0x10] sm:$0xff] %vm440, %v2618
      %2651 = vst.msk [vmem:[%s364 + $0x18] sm:$0xff] %vm440, %v2619
      %2652 = vst.msk [vmem:[%s364 + $0x20] sm:$0xff] %vm440, %v2620
      %2653 = vst.msk [vmem:[%s364 + $0x28] sm:$0xff] %vm440, %v2621
      %2654 = vst.msk [vmem:[%s364 + $0x30] sm:$0xff] %vm440, %v2622
      %2655 = vst.msk [vmem:[%s364 + $0x38] sm:$0xff] %vm440, %v2623
      %2656 = vst.msk [vmem:[%s364 + $0x40] sm:$0xff] %vm440, %v2624
      %2657 = vst.msk [vmem:[%s364 + $0x48] sm:$0xff] %vm440, %v2625
      %2658 = vst.msk [vmem:[%s364 + $0x50] sm:$0xff] %vm440, %v2626
      %2659 = vst.msk [vmem:[%s364 + $0x58] sm:$0xff] %vm440, %v2627
      %2660 = vst.msk [vmem:[%s364 + $0x60] sm:$0xff] %vm440, %v2628
      %2661 = vst.msk [vmem:[%s364 + $0x68] sm:$0xff] %vm440, %v2629
      %2662 = vst.msk [vmem:[%s364 + $0x70] sm:$0xff] %vm440, %v2630
      %2663 = vst.msk [vmem:[%s364 + $0x78] sm:$0xff] %vm440, %v2631
      %2664 = vst.msk [vmem:[%s364 + $0x80] sm:$0xff] %vm440, %v2632
      %2665 = vst.msk [vmem:[%s364 + $0x88] sm:$0xff] %vm440, %v2633
      %2666 = vst.msk [vmem:[%s364 + $0x90] sm:$0xff] %vm440, %v2634
      %2667 = vst.msk [vmem:[%s364 + $0x98] sm:$0xff] %vm440, %v2635
      %2668 = vst.msk [vmem:[%s364 + $0xa0] sm:$0xff] %vm440, %v2636
      %2669 = vst.msk [vmem:[%s364 + $0xa8] sm:$0xff] %vm440, %v2637
      %2670 = vst.msk [vmem:[%s364 + $0xb0] sm:$0xff] %vm440, %v2638
      %2671 = vst.msk [vmem:[%s364 + $0xb8] sm:$0xff] %vm440, %v2639
      %2672 = vst.msk [vmem:[%s364 + $0xc0] sm:$0xff] %vm440, %v2640
      %2673 = vst.msk [vmem:[%s364 + $0xc8] sm:$0xff] %vm440, %v2641
      %2674 = vst.msk [vmem:[%s364 + $0xd0] sm:$0xff] %vm440, %v2642
      %2675 = vst.msk [vmem:[%s364 + $0xd8] sm:$0xff] %vm440, %v2643
      %2676 = vst.msk [vmem:[%s364 + $0xe0] sm:$0xff] %vm440, %v2644
      %2677 = vst.msk [vmem:[%s364 + $0xe8] sm:$0xff] %vm440, %v2645
      %2678 = vst.msk [vmem:[%s364 + $0xf0] sm:$0xff] %vm440, %v2646
      %2679 = vst.msk [vmem:[%s364 + $0xf8] sm:$0xff] %vm440, %v2647
      %v2680 = vmul.f32 %v957, %v2426
      %v2681 = vmul.f32 %v962, %v2431
      %v2682 = vmul.f32 %v967, %v2436
      %v2683 = vmul.f32 %v972, %v2441
      %v2684 = vmul.f32 %v977, %v2446
      %v2685 = vmul.f32 %v982, %v2451
      %v2686 = vmul.f32 %v987, %v2456
      %v2687 = vmul.f32 %v992, %v2461
      %v2688 = vmul.f32 %v997, %v2466
      %v2689 = vmul.f32 %v1002, %v2471
      %v2690 = vmul.f32 %v1007, %v2476
      %v2691 = vmul.f32 %v1012, %v2481
      %v2692 = vmul.f32 %v1017, %v2486
      %v2693 = vmul.f32 %v1022, %v2491
      %v2694 = vmul.f32 %v1027, %v2496
      %v2695 = vmul.f32 %v1032, %v2501
      %v2696 = vmul.f32 %v1037, %v2506
      %v2697 = vmul.f32 %v1042, %v2511
      %v2698 = vmul.f32 %v1047, %v2516
      %v2699 = vmul.f32 %v1052, %v2521
      %v2700 = vmul.f32 %v1057, %v2526
      %v2701 = vmul.f32 %v1062, %v2531
      %v2702 = vmul.f32 %v1067, %v2536
      %v2703 = vmul.f32 %v1072, %v2541
      %v2704 = vmul.f32 %v1077, %v2546
      %v2705 = vmul.f32 %v1082, %v2551
      %v2706 = vmul.f32 %v1087, %v2556
      %v2707 = vmul.f32 %v1092, %v2561
      %v2708 = vmul.f32 %v1097, %v2566
      %v2709 = vmul.f32 %v1102, %v2571
      %v2710 = vmul.f32 %v1107, %v2576
      %v2711 = vmul.f32 %v1112, %v2581
      %2744 = vrot.lane.b32.xlu0 %v2680, 32
      %v2745 = vpop.permute.xlu0 %2744
      %2746 = vrot.lane.b32.xlu0 %v2681, 32
      %v2747 = vpop.permute.xlu0 %2746
      %2748 = vrot.lane.b32.xlu0 %v2682, 32
      %v2749 = vpop.permute.xlu0 %2748
      %2750 = vrot.lane.b32.xlu0 %v2683, 32
      %v2751 = vpop.permute.xlu0 %2750
      %2752 = vrot.lane.b32.xlu0 %v2684, 32
      %v2753 = vpop.permute.xlu0 %2752
      %2754 = vrot.lane.b32.xlu0 %v2685, 32
      %v2755 = vpop.permute.xlu0 %2754
      %2756 = vrot.lane.b32.xlu0 %v2686, 32
      %v2757 = vpop.permute.xlu0 %2756
      %2758 = vrot.lane.b32.xlu0 %v2687, 32
      %v2759 = vpop.permute.xlu0 %2758
      %2760 = vrot.lane.b32.xlu0 %v2688, 32
      %v2761 = vpop.permute.xlu0 %2760
      %2762 = vrot.lane.b32.xlu0 %v2689, 32
      %v2763 = vpop.permute.xlu0 %2762
      %2764 = vrot.lane.b32.xlu0 %v2690, 32
      %v2765 = vpop.permute.xlu0 %2764
      %2766 = vrot.lane.b32.xlu0 %v2691, 32
      %v2767 = vpop.permute.xlu0 %2766
      %2768 = vrot.lane.b32.xlu0 %v2692, 32
      %v2769 = vpop.permute.xlu0 %2768
      %2770 = vrot.lane.b32.xlu0 %v2693, 32
      %v2771 = vpop.permute.xlu0 %2770
      %2772 = vrot.lane.b32.xlu0 %v2694, 32
      %v2773 = vpop.permute.xlu0 %2772
      %2774 = vrot.lane.b32.xlu0 %v2695, 32
      %v2775 = vpop.permute.xlu0 %2774
      %2776 = vrot.lane.b32.xlu0 %v2696, 32
      %v2777 = vpop.permute.xlu0 %2776
      %2778 = vrot.lane.b32.xlu0 %v2697, 32
      %v2779 = vpop.permute.xlu0 %2778
      %2780 = vrot.lane.b32.xlu0 %v2698, 32
      %v2781 = vpop.permute.xlu0 %2780
      %2782 = vrot.lane.b32.xlu0 %v2699, 32
      %v2783 = vpop.permute.xlu0 %2782
      %2784 = vrot.lane.b32.xlu0 %v2700, 32
      %v2785 = vpop.permute.xlu0 %2784
      %2786 = vrot.lane.b32.xlu0 %v2701, 32
      %v2787 = vpop.permute.xlu0 %2786
      %2788 = vrot.lane.b32.xlu0 %v2702, 32
      %v2789 = vpop.permute.xlu0 %2788
      %2790 = vrot.lane.b32.xlu0 %v2703, 32
      %v2791 = vpop.permute.xlu0 %2790
      %2792 = vrot.lane.b32.xlu0 %v2704, 32
      %v2793 = vpop.permute.xlu0 %2792
      %2794 = vrot.lane.b32.xlu0 %v2705, 32
      %v2795 = vpop.permute.xlu0 %2794
      %2796 = vrot.lane.b32.xlu0 %v2706, 32
      %v2797 = vpop.permute.xlu0 %2796
      %2798 = vrot.lane.b32.xlu0 %v2707, 32
      %v2799 = vpop.permute.xlu0 %2798
      %2800 = vrot.lane.b32.xlu0 %v2708, 32
      %v2801 = vpop.permute.xlu0 %2800
      %2802 = vrot.lane.b32.xlu0 %v2709, 32
      %v2803 = vpop.permute.xlu0 %2802
      %2804 = vrot.lane.b32.xlu0 %v2710, 32
      %v2805 = vpop.permute.xlu0 %2804
      %2806 = vrot.lane.b32.xlu0 %v2711, 32
      %v2807 = vpop.permute.xlu0 %2806
      %v2840 = vadd.f32 %v372, %v2745
      %v2841 = vadd.f32 %v373, %v2747
      %v2842 = vadd.f32 %v374, %v2749
      %v2843 = vadd.f32 %v375, %v2751
      %v2844 = vadd.f32 %v376, %v2753
      %v2845 = vadd.f32 %v377, %v2755
      %v2846 = vadd.f32 %v378, %v2757
      %v2847 = vadd.f32 %v379, %v2759
      %v2848 = vadd.f32 %v380, %v2761
      %v2849 = vadd.f32 %v381, %v2763
      %v2850 = vadd.f32 %v382, %v2765
      %v2851 = vadd.f32 %v383, %v2767
      %v2852 = vadd.f32 %v384, %v2769
      %v2853 = vadd.f32 %v385, %v2771
      %v2854 = vadd.f32 %v386, %v2773
      %v2855 = vadd.f32 %v387, %v2775
      %v2856 = vadd.f32 %v388, %v2777
      %v2857 = vadd.f32 %v389, %v2779
      %v2858 = vadd.f32 %v390, %v2781
      %v2859 = vadd.f32 %v391, %v2783
      %v2860 = vadd.f32 %v392, %v2785
      %v2861 = vadd.f32 %v393, %v2787
      %v2862 = vadd.f32 %v394, %v2789
      %v2863 = vadd.f32 %v395, %v2791
      %v2864 = vadd.f32 %v396, %v2793
      %v2865 = vadd.f32 %v397, %v2795
      %v2866 = vadd.f32 %v398, %v2797
      %v2867 = vadd.f32 %v399, %v2799
      %v2868 = vadd.f32 %v400, %v2801
      %v2869 = vadd.f32 %v401, %v2803
      %v2870 = vadd.f32 %v402, %v2805
      %v2871 = vadd.f32 %v403, %v2807
      %vm2872 = vcmask 523520
      %2873 = vst.msk [vmem:[%s364] sm:$0xff] %vm2872, %v2840
      %2874 = vst.msk [vmem:[%s364 + $0x8] sm:$0xff] %vm2872, %v2841
      %2875 = vst.msk [vmem:[%s364 + $0x10] sm:$0xff] %vm2872, %v2842
      %2876 = vst.msk [vmem:[%s364 + $0x18] sm:$0xff] %vm2872, %v2843
      %2877 = vst.msk [vmem:[%s364 + $0x20] sm:$0xff] %vm2872, %v2844
      %2878 = vst.msk [vmem:[%s364 + $0x28] sm:$0xff] %vm2872, %v2845
      %2879 = vst.msk [vmem:[%s364 + $0x30] sm:$0xff] %vm2872, %v2846
      %2880 = vst.msk [vmem:[%s364 + $0x38] sm:$0xff] %vm2872, %v2847
      %2881 = vst.msk [vmem:[%s364 + $0x40] sm:$0xff] %vm2872, %v2848
      %2882 = vst.msk [vmem:[%s364 + $0x48] sm:$0xff] %vm2872, %v2849
      %2883 = vst.msk [vmem:[%s364 + $0x50] sm:$0xff] %vm2872, %v2850
      %2884 = vst.msk [vmem:[%s364 + $0x58] sm:$0xff] %vm2872, %v2851
      %2885 = vst.msk [vmem:[%s364 + $0x60] sm:$0xff] %vm2872, %v2852
      %2886 = vst.msk [vmem:[%s364 + $0x68] sm:$0xff] %vm2872, %v2853
      %2887 = vst.msk [vmem:[%s364 + $0x70] sm:$0xff] %vm2872, %v2854
      %2888 = vst.msk [vmem:[%s364 + $0x78] sm:$0xff] %vm2872, %v2855
      %2889 = vst.msk [vmem:[%s364 + $0x80] sm:$0xff] %vm2872, %v2856
      %2890 = vst.msk [vmem:[%s364 + $0x88] sm:$0xff] %vm2872, %v2857
      %2891 = vst.msk [vmem:[%s364 + $0x90] sm:$0xff] %vm2872, %v2858
      %2892 = vst.msk [vmem:[%s364 + $0x98] sm:$0xff] %vm2872, %v2859
      %2893 = vst.msk [vmem:[%s364 + $0xa0] sm:$0xff] %vm2872, %v2860
      %2894 = vst.msk [vmem:[%s364 + $0xa8] sm:$0xff] %vm2872, %v2861
      %2895 = vst.msk [vmem:[%s364 + $0xb0] sm:$0xff] %vm2872, %v2862
      %2896 = vst.msk [vmem:[%s364 + $0xb8] sm:$0xff] %vm2872, %v2863
      %2897 = vst.msk [vmem:[%s364 + $0xc0] sm:$0xff] %vm2872, %v2864
      %2898 = vst.msk [vmem:[%s364 + $0xc8] sm:$0xff] %vm2872, %v2865
      %2899 = vst.msk [vmem:[%s364 + $0xd0] sm:$0xff] %vm2872, %v2866
      %2900 = vst.msk [vmem:[%s364 + $0xd8] sm:$0xff] %vm2872, %v2867
      %2901 = vst.msk [vmem:[%s364 + $0xe0] sm:$0xff] %vm2872, %v2868
      %2902 = vst.msk [vmem:[%s364 + $0xe8] sm:$0xff] %vm2872, %v2869
      %2903 = vst.msk [vmem:[%s364 + $0xf0] sm:$0xff] %vm2872, %v2870
      %2904 = vst.msk [vmem:[%s364 + $0xf8] sm:$0xff] %vm2872, %v2871
      %2937 = vrot.lane.b32.xlu0 %v2426, 64
      %v2938 = vpop.permute.xlu0 %2937
      %2939 = vrot.lane.b32.xlu0 %v2431, 64
      %v2940 = vpop.permute.xlu0 %2939
      %2941 = vrot.lane.b32.xlu0 %v2436, 64
      %v2942 = vpop.permute.xlu0 %2941
      %2943 = vrot.lane.b32.xlu0 %v2441, 64
      %v2944 = vpop.permute.xlu0 %2943
      %2945 = vrot.lane.b32.xlu0 %v2446, 64
      %v2946 = vpop.permute.xlu0 %2945
      %2947 = vrot.lane.b32.xlu0 %v2451, 64
      %v2948 = vpop.permute.xlu0 %2947
      %2949 = vrot.lane.b32.xlu0 %v2456, 64
      %v2950 = vpop.permute.xlu0 %2949
      %2951 = vrot.lane.b32.xlu0 %v2461, 64
      %v2952 = vpop.permute.xlu0 %2951
      %2953 = vrot.lane.b32.xlu0 %v2466, 64
      %v2954 = vpop.permute.xlu0 %2953
      %2955 = vrot.lane.b32.xlu0 %v2471, 64
      %v2956 = vpop.permute.xlu0 %2955
      %2957 = vrot.lane.b32.xlu0 %v2476, 64
      %v2958 = vpop.permute.xlu0 %2957
      %2959 = vrot.lane.b32.xlu0 %v2481, 64
      %v2960 = vpop.permute.xlu0 %2959
      %2961 = vrot.lane.b32.xlu0 %v2486, 64
      %v2962 = vpop.permute.xlu0 %2961
      %2963 = vrot.lane.b32.xlu0 %v2491, 64
      %v2964 = vpop.permute.xlu0 %2963
      %2965 = vrot.lane.b32.xlu0 %v2496, 64
      %v2966 = vpop.permute.xlu0 %2965
      %2967 = vrot.lane.b32.xlu0 %v2501, 64
      %v2968 = vpop.permute.xlu0 %2967
      %2969 = vrot.lane.b32.xlu0 %v2506, 64
      %v2970 = vpop.permute.xlu0 %2969
      %2971 = vrot.lane.b32.xlu0 %v2511, 64
      %v2972 = vpop.permute.xlu0 %2971
      %2973 = vrot.lane.b32.xlu0 %v2516, 64
      %v2974 = vpop.permute.xlu0 %2973
      %2975 = vrot.lane.b32.xlu0 %v2521, 64
      %v2976 = vpop.permute.xlu0 %2975
      %2977 = vrot.lane.b32.xlu0 %v2526, 64
      %v2978 = vpop.permute.xlu0 %2977
      %2979 = vrot.lane.b32.xlu0 %v2531, 64
      %v2980 = vpop.permute.xlu0 %2979
      %2981 = vrot.lane.b32.xlu0 %v2536, 64
      %v2982 = vpop.permute.xlu0 %2981
      %2983 = vrot.lane.b32.xlu0 %v2541, 64
      %v2984 = vpop.permute.xlu0 %2983
      %2985 = vrot.lane.b32.xlu0 %v2546, 64
      %v2986 = vpop.permute.xlu0 %2985
      %2987 = vrot.lane.b32.xlu0 %v2551, 64
      %v2988 = vpop.permute.xlu0 %2987
      %2989 = vrot.lane.b32.xlu0 %v2556, 64
      %v2990 = vpop.permute.xlu0 %2989
      %2991 = vrot.lane.b32.xlu0 %v2561, 64
      %v2992 = vpop.permute.xlu0 %2991
      %2993 = vrot.lane.b32.xlu0 %v2566, 64
      %v2994 = vpop.permute.xlu0 %2993
      %2995 = vrot.lane.b32.xlu0 %v2571, 64
      %v2996 = vpop.permute.xlu0 %2995
      %2997 = vrot.lane.b32.xlu0 %v2576, 64
      %v2998 = vpop.permute.xlu0 %2997
      %2999 = vrot.lane.b32.xlu0 %v2581, 64
      %v3000 = vpop.permute.xlu0 %2999
      %v3033 = vadd.f32 %v404, %v2938
      %v3034 = vadd.f32 %v405, %v2940
      %v3035 = vadd.f32 %v406, %v2942
      %v3036 = vadd.f32 %v407, %v2944
      %v3037 = vadd.f32 %v408, %v2946
      %v3038 = vadd.f32 %v409, %v2948
      %v3039 = vadd.f32 %v410, %v2950
      %v3040 = vadd.f32 %v411, %v2952
      %v3041 = vadd.f32 %v412, %v2954
      %v3042 = vadd.f32 %v413, %v2956
      %v3043 = vadd.f32 %v414, %v2958
      %v3044 = vadd.f32 %v415, %v2960
      %v3045 = vadd.f32 %v416, %v2962
      %v3046 = vadd.f32 %v417, %v2964
      %v3047 = vadd.f32 %v418, %v2966
      %v3048 = vadd.f32 %v419, %v2968
      %v3049 = vadd.f32 %v420, %v2970
      %v3050 = vadd.f32 %v421, %v2972
      %v3051 = vadd.f32 %v422, %v2974
      %v3052 = vadd.f32 %v423, %v2976
      %v3053 = vadd.f32 %v424, %v2978
      %v3054 = vadd.f32 %v425, %v2980
      %v3055 = vadd.f32 %v426, %v2982
      %v3056 = vadd.f32 %v427, %v2984
      %v3057 = vadd.f32 %v428, %v2986
      %v3058 = vadd.f32 %v429, %v2988
      %v3059 = vadd.f32 %v430, %v2990
      %v3060 = vadd.f32 %v431, %v2992
      %v3061 = vadd.f32 %v432, %v2994
      %v3062 = vadd.f32 %v433, %v2996
      %v3063 = vadd.f32 %v434, %v2998
      %v3064 = vadd.f32 %v435, %v3000
      %3097 = vrot.lane.b32.xlu0 %v604, 96
      %v3098 = vpop.permute.xlu0 %3097
      %3099 = vrot.lane.b32.xlu0 %v609, 96
      %v3100 = vpop.permute.xlu0 %3099
      %3101 = vrot.lane.b32.xlu0 %v614, 96
      %v3102 = vpop.permute.xlu0 %3101
      %3103 = vrot.lane.b32.xlu0 %v619, 96
      %v3104 = vpop.permute.xlu0 %3103
      %3105 = vrot.lane.b32.xlu0 %v624, 96
      %v3106 = vpop.permute.xlu0 %3105
      %3107 = vrot.lane.b32.xlu0 %v629, 96
      %v3108 = vpop.permute.xlu0 %3107
      %3109 = vrot.lane.b32.xlu0 %v634, 96
      %v3110 = vpop.permute.xlu0 %3109
      %3111 = vrot.lane.b32.xlu0 %v639, 96
      %v3112 = vpop.permute.xlu0 %3111
      %3113 = vrot.lane.b32.xlu0 %v644, 96
      %v3114 = vpop.permute.xlu0 %3113
      %3115 = vrot.lane.b32.xlu0 %v649, 96
      %v3116 = vpop.permute.xlu0 %3115
      %3117 = vrot.lane.b32.xlu0 %v654, 96
      %v3118 = vpop.permute.xlu0 %3117
      %3119 = vrot.lane.b32.xlu0 %v659, 96
      %v3120 = vpop.permute.xlu0 %3119
      %3121 = vrot.lane.b32.xlu0 %v664, 96
      %v3122 = vpop.permute.xlu0 %3121
      %3123 = vrot.lane.b32.xlu0 %v669, 96
      %v3124 = vpop.permute.xlu0 %3123
      %3125 = vrot.lane.b32.xlu0 %v674, 96
      %v3126 = vpop.permute.xlu0 %3125
      %3127 = vrot.lane.b32.xlu0 %v679, 96
      %v3128 = vpop.permute.xlu0 %3127
      %3129 = vrot.lane.b32.xlu0 %v684, 96
      %v3130 = vpop.permute.xlu0 %3129
      %3131 = vrot.lane.b32.xlu0 %v689, 96
      %v3132 = vpop.permute.xlu0 %3131
      %3133 = vrot.lane.b32.xlu0 %v694, 96
      %v3134 = vpop.permute.xlu0 %3133
      %3135 = vrot.lane.b32.xlu0 %v699, 96
      %v3136 = vpop.permute.xlu0 %3135
      %3137 = vrot.lane.b32.xlu0 %v704, 96
      %v3138 = vpop.permute.xlu0 %3137
      %3139 = vrot.lane.b32.xlu0 %v709, 96
      %v3140 = vpop.permute.xlu0 %3139
      %3141 = vrot.lane.b32.xlu0 %v714, 96
      %v3142 = vpop.permute.xlu0 %3141
      %3143 = vrot.lane.b32.xlu0 %v719, 96
      %v3144 = vpop.permute.xlu0 %3143
      %3145 = vrot.lane.b32.xlu0 %v724, 96
      %v3146 = vpop.permute.xlu0 %3145
      %3147 = vrot.lane.b32.xlu0 %v729, 96
      %v3148 = vpop.permute.xlu0 %3147
      %3149 = vrot.lane.b32.xlu0 %v734, 96
      %v3150 = vpop.permute.xlu0 %3149
      %3151 = vrot.lane.b32.xlu0 %v739, 96
      %v3152 = vpop.permute.xlu0 %3151
      %3153 = vrot.lane.b32.xlu0 %v744, 96
      %v3154 = vpop.permute.xlu0 %3153
      %3155 = vrot.lane.b32.xlu0 %v749, 96
      %v3156 = vpop.permute.xlu0 %3155
      %3157 = vrot.lane.b32.xlu0 %v754, 96
      %v3158 = vpop.permute.xlu0 %3157
      %3159 = vrot.lane.b32.xlu0 %v759, 96
      %v3160 = vpop.permute.xlu0 %3159
      %v3193 = vmul.f32 %v604, %v3098
      %v3194 = vmul.f32 %v609, %v3100
      %v3195 = vmul.f32 %v614, %v3102
      %v3196 = vmul.f32 %v619, %v3104
      %v3197 = vmul.f32 %v624, %v3106
      %v3198 = vmul.f32 %v629, %v3108
      %v3199 = vmul.f32 %v634, %v3110
      %v3200 = vmul.f32 %v639, %v3112
      %v3201 = vmul.f32 %v644, %v3114
      %v3202 = vmul.f32 %v649, %v3116
      %v3203 = vmul.f32 %v654, %v3118
      %v3204 = vmul.f32 %v659, %v3120
      %v3205 = vmul.f32 %v664, %v3122
      %v3206 = vmul.f32 %v669, %v3124
      %v3207 = vmul.f32 %v674, %v3126
      %v3208 = vmul.f32 %v679, %v3128
      %v3209 = vmul.f32 %v684, %v3130
      %v3210 = vmul.f32 %v689, %v3132
      %v3211 = vmul.f32 %v694, %v3134
      %v3212 = vmul.f32 %v699, %v3136
      %v3213 = vmul.f32 %v704, %v3138
      %v3214 = vmul.f32 %v709, %v3140
      %v3215 = vmul.f32 %v714, %v3142
      %v3216 = vmul.f32 %v719, %v3144
      %v3217 = vmul.f32 %v724, %v3146
      %v3218 = vmul.f32 %v729, %v3148
      %v3219 = vmul.f32 %v734, %v3150
      %v3220 = vmul.f32 %v739, %v3152
      %v3221 = vmul.f32 %v744, %v3154
      %v3222 = vmul.f32 %v749, %v3156
      %v3223 = vmul.f32 %v754, %v3158
      %v3224 = vmul.f32 %v759, %v3160
      %3257 = vrot.lane.b32.xlu0 %v957, 96
      %v3258 = vpop.permute.xlu0 %3257
      %3259 = vrot.lane.b32.xlu0 %v962, 96
      %v3260 = vpop.permute.xlu0 %3259
      %3261 = vrot.lane.b32.xlu0 %v967, 96
      %v3262 = vpop.permute.xlu0 %3261
      %3263 = vrot.lane.b32.xlu0 %v972, 96
      %v3264 = vpop.permute.xlu0 %3263
      %3265 = vrot.lane.b32.xlu0 %v977, 96
      %v3266 = vpop.permute.xlu0 %3265
      %3267 = vrot.lane.b32.xlu0 %v982, 96
      %v3268 = vpop.permute.xlu0 %3267
      %3269 = vrot.lane.b32.xlu0 %v987, 96
      %v3270 = vpop.permute.xlu0 %3269
      %3271 = vrot.lane.b32.xlu0 %v992, 96
      %v3272 = vpop.permute.xlu0 %3271
      %3273 = vrot.lane.b32.xlu0 %v997, 96
      %v3274 = vpop.permute.xlu0 %3273
      %3275 = vrot.lane.b32.xlu0 %v1002, 96
      %v3276 = vpop.permute.xlu0 %3275
      %3277 = vrot.lane.b32.xlu0 %v1007, 96
      %v3278 = vpop.permute.xlu0 %3277
      %3279 = vrot.lane.b32.xlu0 %v1012, 96
      %v3280 = vpop.permute.xlu0 %3279
      %3281 = vrot.lane.b32.xlu0 %v1017, 96
      %v3282 = vpop.permute.xlu0 %3281
      %3283 = vrot.lane.b32.xlu0 %v1022, 96
      %v3284 = vpop.permute.xlu0 %3283
      %3285 = vrot.lane.b32.xlu0 %v1027, 96
      %v3286 = vpop.permute.xlu0 %3285
      %3287 = vrot.lane.b32.xlu0 %v1032, 96
      %v3288 = vpop.permute.xlu0 %3287
      %3289 = vrot.lane.b32.xlu0 %v1037, 96
      %v3290 = vpop.permute.xlu0 %3289
      %3291 = vrot.lane.b32.xlu0 %v1042, 96
      %v3292 = vpop.permute.xlu0 %3291
      %3293 = vrot.lane.b32.xlu0 %v1047, 96
      %v3294 = vpop.permute.xlu0 %3293
      %3295 = vrot.lane.b32.xlu0 %v1052, 96
      %v3296 = vpop.permute.xlu0 %3295
      %3297 = vrot.lane.b32.xlu0 %v1057, 96
      %v3298 = vpop.permute.xlu0 %3297
      %3299 = vrot.lane.b32.xlu0 %v1062, 96
      %v3300 = vpop.permute.xlu0 %3299
      %3301 = vrot.lane.b32.xlu0 %v1067, 96
      %v3302 = vpop.permute.xlu0 %3301
      %3303 = vrot.lane.b32.xlu0 %v1072, 96
      %v3304 = vpop.permute.xlu0 %3303
      %3305 = vrot.lane.b32.xlu0 %v1077, 96
      %v3306 = vpop.permute.xlu0 %3305
      %3307 = vrot.lane.b32.xlu0 %v1082, 96
      %v3308 = vpop.permute.xlu0 %3307
      %3309 = vrot.lane.b32.xlu0 %v1087, 96
      %v3310 = vpop.permute.xlu0 %3309
      %3311 = vrot.lane.b32.xlu0 %v1092, 96
      %v3312 = vpop.permute.xlu0 %3311
      %3313 = vrot.lane.b32.xlu0 %v1097, 96
      %v3314 = vpop.permute.xlu0 %3313
      %3315 = vrot.lane.b32.xlu0 %v1102, 96
      %v3316 = vpop.permute.xlu0 %3315
      %3317 = vrot.lane.b32.xlu0 %v1107, 96
      %v3318 = vpop.permute.xlu0 %3317
      %3319 = vrot.lane.b32.xlu0 %v1112, 96
      %v3320 = vpop.permute.xlu0 %3319
      %v3353 = vmul.f32 %v957, %v3258
      %v3354 = vmul.f32 %v962, %v3260
      %v3355 = vmul.f32 %v967, %v3262
      %v3356 = vmul.f32 %v972, %v3264
      %v3357 = vmul.f32 %v977, %v3266
      %v3358 = vmul.f32 %v982, %v3268
      %v3359 = vmul.f32 %v987, %v3270
      %v3360 = vmul.f32 %v992, %v3272
      %v3361 = vmul.f32 %v997, %v3274
      %v3362 = vmul.f32 %v1002, %v3276
      %v3363 = vmul.f32 %v1007, %v3278
      %v3364 = vmul.f32 %v1012, %v3280
      %v3365 = vmul.f32 %v1017, %v3282
      %v3366 = vmul.f32 %v1022, %v3284
      %v3367 = vmul.f32 %v1027, %v3286
      %v3368 = vmul.f32 %v1032, %v3288
      %v3369 = vmul.f32 %v1037, %v3290
      %v3370 = vmul.f32 %v1042, %v3292
      %v3371 = vmul.f32 %v1047, %v3294
      %v3372 = vmul.f32 %v1052, %v3296
      %v3373 = vmul.f32 %v1057, %v3298
      %v3374 = vmul.f32 %v1062, %v3300
      %v3375 = vmul.f32 %v1067, %v3302
      %v3376 = vmul.f32 %v1072, %v3304
      %v3377 = vmul.f32 %v1077, %v3306
      %v3378 = vmul.f32 %v1082, %v3308
      %v3379 = vmul.f32 %v1087, %v3310
      %v3380 = vmul.f32 %v1092, %v3312
      %v3381 = vmul.f32 %v1097, %v3314
      %v3382 = vmul.f32 %v1102, %v3316
      %v3383 = vmul.f32 %v1107, %v3318
      %v3384 = vmul.f32 %v1112, %v3320
      %v3385 = vadd.f32 %v3193, %v3353
      %v3386 = vadd.f32 %v3194, %v3354
      %v3387 = vadd.f32 %v3195, %v3355
      %v3388 = vadd.f32 %v3196, %v3356
      %v3389 = vadd.f32 %v3197, %v3357
      %v3390 = vadd.f32 %v3198, %v3358
      %v3391 = vadd.f32 %v3199, %v3359
      %v3392 = vadd.f32 %v3200, %v3360
      %v3393 = vadd.f32 %v3201, %v3361
      %v3394 = vadd.f32 %v3202, %v3362
      %v3395 = vadd.f32 %v3203, %v3363
      %v3396 = vadd.f32 %v3204, %v3364
      %v3397 = vadd.f32 %v3205, %v3365
      %v3398 = vadd.f32 %v3206, %v3366
      %v3399 = vadd.f32 %v3207, %v3367
      %v3400 = vadd.f32 %v3208, %v3368
      %v3401 = vadd.f32 %v3209, %v3369
      %v3402 = vadd.f32 %v3210, %v3370
      %v3403 = vadd.f32 %v3211, %v3371
      %v3404 = vadd.f32 %v3212, %v3372
      %v3405 = vadd.f32 %v3213, %v3373
      %v3406 = vadd.f32 %v3214, %v3374
      %v3407 = vadd.f32 %v3215, %v3375
      %v3408 = vadd.f32 %v3216, %v3376
      %v3409 = vadd.f32 %v3217, %v3377
      %v3410 = vadd.f32 %v3218, %v3378
      %v3411 = vadd.f32 %v3219, %v3379
      %v3412 = vadd.f32 %v3220, %v3380
      %v3413 = vadd.f32 %v3221, %v3381
      %v3414 = vadd.f32 %v3222, %v3382
      %v3415 = vadd.f32 %v3223, %v3383
      %v3416 = vadd.f32 %v3224, %v3384
      %3417 = vrot.lane.b32.xlu0 %v2426, 96
      %v3418 = vpop.permute.xlu0 %3417
      %3419 = vrot.lane.b32.xlu0 %v2431, 96
      %v3420 = vpop.permute.xlu0 %3419
      %3421 = vrot.lane.b32.xlu0 %v2436, 96
      %v3422 = vpop.permute.xlu0 %3421
      %3423 = vrot.lane.b32.xlu0 %v2441, 96
      %v3424 = vpop.permute.xlu0 %3423
      %3425 = vrot.lane.b32.xlu0 %v2446, 96
      %v3426 = vpop.permute.xlu0 %3425
      %3427 = vrot.lane.b32.xlu0 %v2451, 96
      %v3428 = vpop.permute.xlu0 %3427
      %3429 = vrot.lane.b32.xlu0 %v2456, 96
      %v3430 = vpop.permute.xlu0 %3429
      %3431 = vrot.lane.b32.xlu0 %v2461, 96
      %v3432 = vpop.permute.xlu0 %3431
      %3433 = vrot.lane.b32.xlu0 %v2466, 96
      %v3434 = vpop.permute.xlu0 %3433
      %3435 = vrot.lane.b32.xlu0 %v2471, 96
      %v3436 = vpop.permute.xlu0 %3435
      %3437 = vrot.lane.b32.xlu0 %v2476, 96
      %v3438 = vpop.permute.xlu0 %3437
      %3439 = vrot.lane.b32.xlu0 %v2481, 96
      %v3440 = vpop.permute.xlu0 %3439
      %3441 = vrot.lane.b32.xlu0 %v2486, 96
      %v3442 = vpop.permute.xlu0 %3441
      %3443 = vrot.lane.b32.xlu0 %v2491, 96
      %v3444 = vpop.permute.xlu0 %3443
      %3445 = vrot.lane.b32.xlu0 %v2496, 96
      %v3446 = vpop.permute.xlu0 %3445
      %3447 = vrot.lane.b32.xlu0 %v2501, 96
      %v3448 = vpop.permute.xlu0 %3447
      %3449 = vrot.lane.b32.xlu0 %v2506, 96
      %v3450 = vpop.permute.xlu0 %3449
      %3451 = vrot.lane.b32.xlu0 %v2511, 96
      %v3452 = vpop.permute.xlu0 %3451
      %3453 = vrot.lane.b32.xlu0 %v2516, 96
      %v3454 = vpop.permute.xlu0 %3453
      %3455 = vrot.lane.b32.xlu0 %v2521, 96
      %v3456 = vpop.permute.xlu0 %3455
      %3457 = vrot.lane.b32.xlu0 %v2526, 96
      %v3458 = vpop.permute.xlu0 %3457
      %3459 = vrot.lane.b32.xlu0 %v2531, 96
      %v3460 = vpop.permute.xlu0 %3459
      %3461 = vrot.lane.b32.xlu0 %v2536, 96
      %v3462 = vpop.permute.xlu0 %3461
      %3463 = vrot.lane.b32.xlu0 %v2541, 96
      %v3464 = vpop.permute.xlu0 %3463
      %3465 = vrot.lane.b32.xlu0 %v2546, 96
      %v3466 = vpop.permute.xlu0 %3465
      %3467 = vrot.lane.b32.xlu0 %v2551, 96
      %v3468 = vpop.permute.xlu0 %3467
      %3469 = vrot.lane.b32.xlu0 %v2556, 96
      %v3470 = vpop.permute.xlu0 %3469
      %3471 = vrot.lane.b32.xlu0 %v2561, 96
      %v3472 = vpop.permute.xlu0 %3471
      %3473 = vrot.lane.b32.xlu0 %v2566, 96
      %v3474 = vpop.permute.xlu0 %3473
      %3475 = vrot.lane.b32.xlu0 %v2571, 96
      %v3476 = vpop.permute.xlu0 %3475
      %3477 = vrot.lane.b32.xlu0 %v2576, 96
      %v3478 = vpop.permute.xlu0 %3477
      %3479 = vrot.lane.b32.xlu0 %v2581, 96
      %v3480 = vpop.permute.xlu0 %3479
      %v3513 = vmul.f32 %v3385, %v3418
      %v3514 = vmul.f32 %v3386, %v3420
      %v3515 = vmul.f32 %v3387, %v3422
      %v3516 = vmul.f32 %v3388, %v3424
      %v3517 = vmul.f32 %v3389, %v3426
      %v3518 = vmul.f32 %v3390, %v3428
      %v3519 = vmul.f32 %v3391, %v3430
      %v3520 = vmul.f32 %v3392, %v3432
      %v3521 = vmul.f32 %v3393, %v3434
      %v3522 = vmul.f32 %v3394, %v3436
      %v3523 = vmul.f32 %v3395, %v3438
      %v3524 = vmul.f32 %v3396, %v3440
      %v3525 = vmul.f32 %v3397, %v3442
      %v3526 = vmul.f32 %v3398, %v3444
      %v3527 = vmul.f32 %v3399, %v3446
      %v3528 = vmul.f32 %v3400, %v3448
      %v3529 = vmul.f32 %v3401, %v3450
      %v3530 = vmul.f32 %v3402, %v3452
      %v3531 = vmul.f32 %v3403, %v3454
      %v3532 = vmul.f32 %v3404, %v3456
      %v3533 = vmul.f32 %v3405, %v3458
      %v3534 = vmul.f32 %v3406, %v3460
      %v3535 = vmul.f32 %v3407, %v3462
      %v3536 = vmul.f32 %v3408, %v3464
      %v3537 = vmul.f32 %v3409, %v3466
      %v3538 = vmul.f32 %v3410, %v3468
      %v3539 = vmul.f32 %v3411, %v3470
      %v3540 = vmul.f32 %v3412, %v3472
      %v3541 = vmul.f32 %v3413, %v3474
      %v3542 = vmul.f32 %v3414, %v3476
      %v3543 = vmul.f32 %v3415, %v3478
      %v3544 = vmul.f32 %v3416, %v3480
      %v3545 = vadd.f32 %v3033, %v3513
      %v3546 = vadd.f32 %v3034, %v3514
      %v3547 = vadd.f32 %v3035, %v3515
      %v3548 = vadd.f32 %v3036, %v3516
      %v3549 = vadd.f32 %v3037, %v3517
      %v3550 = vadd.f32 %v3038, %v3518
      %v3551 = vadd.f32 %v3039, %v3519
      %v3552 = vadd.f32 %v3040, %v3520
      %v3553 = vadd.f32 %v3041, %v3521
      %v3554 = vadd.f32 %v3042, %v3522
      %v3555 = vadd.f32 %v3043, %v3523
      %v3556 = vadd.f32 %v3044, %v3524
      %v3557 = vadd.f32 %v3045, %v3525
      %v3558 = vadd.f32 %v3046, %v3526
      %v3559 = vadd.f32 %v3047, %v3527
      %v3560 = vadd.f32 %v3048, %v3528
      %v3561 = vadd.f32 %v3049, %v3529
      %v3562 = vadd.f32 %v3050, %v3530
      %v3563 = vadd.f32 %v3051, %v3531
      %v3564 = vadd.f32 %v3052, %v3532
      %v3565 = vadd.f32 %v3053, %v3533
      %v3566 = vadd.f32 %v3054, %v3534
      %v3567 = vadd.f32 %v3055, %v3535
      %v3568 = vadd.f32 %v3056, %v3536
      %v3569 = vadd.f32 %v3057, %v3537
      %v3570 = vadd.f32 %v3058, %v3538
      %v3571 = vadd.f32 %v3059, %v3539
      %v3572 = vadd.f32 %v3060, %v3540
      %v3573 = vadd.f32 %v3061, %v3541
      %v3574 = vadd.f32 %v3062, %v3542
      %v3575 = vadd.f32 %v3063, %v3543
      %v3576 = vadd.f32 %v3064, %v3544
      %3577 = vst.msk [vmem:[%s370] sm:$0xff] %vm440, %v3545
      %3578 = vst.msk [vmem:[%s370 + $0x8] sm:$0xff] %vm440, %v3546
      %3579 = vst.msk [vmem:[%s370 + $0x10] sm:$0xff] %vm440, %v3547
      %3580 = vst.msk [vmem:[%s370 + $0x18] sm:$0xff] %vm440, %v3548
      %3581 = vst.msk [vmem:[%s370 + $0x20] sm:$0xff] %vm440, %v3549
      %3582 = vst.msk [vmem:[%s370 + $0x28] sm:$0xff] %vm440, %v3550
      %3583 = vst.msk [vmem:[%s370 + $0x30] sm:$0xff] %vm440, %v3551
      %3584 = vst.msk [vmem:[%s370 + $0x38] sm:$0xff] %vm440, %v3552
      %3585 = vst.msk [vmem:[%s370 + $0x40] sm:$0xff] %vm440, %v3553
      %3586 = vst.msk [vmem:[%s370 + $0x48] sm:$0xff] %vm440, %v3554
      %3587 = vst.msk [vmem:[%s370 + $0x50] sm:$0xff] %vm440, %v3555
      %3588 = vst.msk [vmem:[%s370 + $0x58] sm:$0xff] %vm440, %v3556
      %3589 = vst.msk [vmem:[%s370 + $0x60] sm:$0xff] %vm440, %v3557
      %3590 = vst.msk [vmem:[%s370 + $0x68] sm:$0xff] %vm440, %v3558
      %3591 = vst.msk [vmem:[%s370 + $0x70] sm:$0xff] %vm440, %v3559
      %3592 = vst.msk [vmem:[%s370 + $0x78] sm:$0xff] %vm440, %v3560
      %3593 = vst.msk [vmem:[%s370 + $0x80] sm:$0xff] %vm440, %v3561
      %3594 = vst.msk [vmem:[%s370 + $0x88] sm:$0xff] %vm440, %v3562
      %3595 = vst.msk [vmem:[%s370 + $0x90] sm:$0xff] %vm440, %v3563
      %3596 = vst.msk [vmem:[%s370 + $0x98] sm:$0xff] %vm440, %v3564
      %3597 = vst.msk [vmem:[%s370 + $0xa0] sm:$0xff] %vm440, %v3565
      %3598 = vst.msk [vmem:[%s370 + $0xa8] sm:$0xff] %vm440, %v3566
      %3599 = vst.msk [vmem:[%s370 + $0xb0] sm:$0xff] %vm440, %v3567
      %3600 = vst.msk [vmem:[%s370 + $0xb8] sm:$0xff] %vm440, %v3568
      %3601 = vst.msk [vmem:[%s370 + $0xc0] sm:$0xff] %vm440, %v3569
      %3602 = vst.msk [vmem:[%s370 + $0xc8] sm:$0xff] %vm440, %v3570
      %3603 = vst.msk [vmem:[%s370 + $0xd0] sm:$0xff] %vm440, %v3571
      %3604 = vst.msk [vmem:[%s370 + $0xd8] sm:$0xff] %vm440, %v3572
      %3605 = vst.msk [vmem:[%s370 + $0xe0] sm:$0xff] %vm440, %v3573
      %3606 = vst.msk [vmem:[%s370 + $0xe8] sm:$0xff] %vm440, %v3574
      %3607 = vst.msk [vmem:[%s370 + $0xf0] sm:$0xff] %vm440, %v3575
      %3608 = vst.msk [vmem:[%s370 + $0xf8] sm:$0xff] %vm440, %v3576
      %s3609 = smul.u32 32, %s21
      %p3610 = scmp.lt.s32.totalorder %s3609, 63
      %s3611 = scalar_select %p3610, %s3609, 63
      %s3612 = smul.addr %s3611, 8
      %s3613 = scalar_lea.vmem %s8, %s3612
      %s3614 = smul.u32 32, %s21
      %p3615 = scmp.lt.s32.totalorder %s3614, 63
      %s3616 = scalar_select %p3615, %s3614, 63
      %s3617 = smul.addr %s3616, 8
      %s3618 = scalar_lea.vmem %s9, %s3617
      // Predicated region
      $region53: #{equivariant_update.1} parent=51 // pred_check
        %p3619 = pneg %p217
      $region54: #{equivariant_update.1} parent=51 // pred_check_branch
        %3621 = sbr.rel (%p3619) target = $region56
      $region55: #{equivariant_update.1} parent=51 // pred_region
        %s3622 = smul.u32 32, %s21
      $region56: #{equivariant_update.1} parent=51 // pred_fallthru
        _
      // Predicated region
      $region57: #{equivariant_update.1} parent=51 // pred_check
        %p3623 = pneg %p243
      $region58: #{equivariant_update.1} parent=51 // pred_check_branch
        %3625 = sbr.rel (%p3623) target = $region60
      $region59: #{equivariant_update.1} parent=51 // pred_region
        %s3626 = smul.u32 32, %s21
      $region60: #{equivariant_update.1} parent=51 // pred_fallthru
        _
    $region52: #{equivariant_update.1} parent=5 // pred_fallthru
      _
    %p3627 = scmp.le.s32.totalorder 2, %s16
    // Predicated region
    $region61: #{equivariant_update.1} parent=5 // pred_check
      %p3628 = pneg %p3627
    $region62: #{equivariant_update.1} parent=5 // pred_check_branch
      %3630 = sbr.rel (%p3628) target = $region64
    $region63: #{equivariant_update.1} parent=5 // pred_region
      %s3631 = ssub.s32 %s16, 2
      // Predicated region
      $region65: #{equivariant_update.1} parent=63 // pred_check
        %p3632 = pneg %p223
      $region66: #{equivariant_update.1} parent=63 // pred_check_branch
        %3634 = sbr.rel (%p3632) target = $region68
      $region67: #{equivariant_update.1} parent=63 // pred_region
        %s3635 = smul.u32 32, %s22
        %p3636 = scmp.lt.s32.totalorder %s3635, 63
        %s3637 = scalar_select %p3636, %s3635, 63
        %s3638 = smul.addr %s3637, 8
        %s3639 = scalar_lea.vmem %s8, %s3638
      $region68: #{equivariant_update.1} parent=63 // pred_fallthru
        _
      // Predicated region
      $region69: #{equivariant_update.1} parent=63 // pred_check
        %p3640 = pneg %p249
      $region70: #{equivariant_update.1} parent=63 // pred_check_branch
        %3642 = sbr.rel (%p3640) target = $region72
      $region71: #{equivariant_update.1} parent=63 // pred_region
        %s3643 = smul.u32 32, %s22
        %p3644 = scmp.lt.s32.totalorder %s3643, 63
        %s3645 = scalar_select %p3644, %s3643, 63
        %s3646 = smul.addr %s3645, 8
        %s3647 = scalar_lea.vmem %s9, %s3646
      $region72: #{equivariant_update.1} parent=63 // pred_fallthru
        _
    $region64: #{equivariant_update.1} parent=5 // pred_fallthru
      _
  $region6: #{equivariant_update.1} parent=0 // loop_footer
    %s20 = sadd.s32 1, %s16
  $region7: #{equivariant_update.1} parent=0 // loop_footer_branch
    %15 = sbr.rel target = $region3
  $region8: #{equivariant_update.1} parent=0 // loop_exit
    _

</llo_original>
